<compile_context>
chip_gen: v7x
topology: tpu7x:2x2x1
jax: 0.10.0
libtpu: 0.0.40
codegen_flags: <defaults>
</compile_context>

<pallas_src>
import functools

import jax
import jax.numpy as jnp
from jax.experimental import pallas as pl
from jax.experimental.pallas import tpu as pltpu

_SQRT1_2 = 0.7071067811865476
_IM2COL_MAX_C = 256   # below this, one K=5*C matmul beats 5 narrow-K dots


# ----------------------------------------------------------------------------
# Fused kernel factory: all 3 ResConvBlocks, one batch sample per grid step.
# ----------------------------------------------------------------------------
def make_fused_kernel(metas, L):
    n_w = sum(9 + (0 if m['is_last'] else 2) + (1 if m['has_skip'] else 0)
              for m in metas)

    def kernel(*refs):
        x_ref, t_ref = refs[0], refs[1]
        wrefs = refs[2:2 + n_w]
        out_ref = refs[2 + n_w]
        pad_ref = refs[3 + n_w]          # VMEM scratch (L+4, cmax), bf16

        cmax = pad_ref.shape[1]

        # Zero the halo rows; the conv body never writes them.  This must run
        # every grid step: under "parallel" megacore sharding a core may never
        # see program_id==0, so a one-shot init would leave its scratch garbage.
        pad_ref[0:2, :] = jnp.zeros((2, cmax), jnp.bfloat16)
        pad_ref[2 + L:4 + L, :] = jnp.zeros((2, cmax), jnp.bfloat16)

        def gelu(v):
            # Exact (erf) GELU via Abramowitz–Stegun 7.1.26 (|err| < 1.5e-7).
            # The reciprocal rides the EUP slot (approx=True), like the exp,
            # so the VALU only carries the mul/add polynomial.
            z = v * _SQRT1_2
            a = jnp.abs(z)
            t = pl.reciprocal(1.0 + 0.3275911 * a, approx=True)
            poly = ((((1.061405429 * t - 1.453152027) * t + 1.421413741) * t
                     - 0.284496736) * t + 0.254829592) * t
            erf_abs = 1.0 - poly * jnp.exp(-a * a)
            erf_z = jnp.where(z >= 0.0, erf_abs, -erf_abs)
            return 0.5 * v * (1.0 + erf_z)

        def groupnorm(v, w, b):
            # GroupNorm(num_groups=1): per-sample stats over (L, C), eps=1e-5.
            # One-pass stats: sum(v) and sum(v*v) are independent reductions
            # (no serialized centered second pass); var = E[x^2]-E[x]^2 in f32.
            inv_n = 1.0 / (v.shape[0] * v.shape[1])
            mean = jnp.sum(v, keepdims=True) * inv_n
            mean_sq = jnp.sum(v * v, keepdims=True) * inv_n
            var = mean_sq - mean * mean
            return (v - mean) * jax.lax.rsqrt(var + 1e-5) * w + b

        def conv5(v_bf, w_ref):
            # 5-tap 'same' conv.  v_bf: (L, C) bf16.  w_ref: (5*C, Cout) bf16,
            # tap-major.  Taps are read straight from the zero-haloed bf16 pad
            # scratch — no f32 slab, no cast inside the dot.
            C = v_bf.shape[-1]
            pad_ref[2:2 + L, :C] = v_bf
            if C >= _IM2COL_MAX_C:
                # Big C: 5 accumulated full-K dots; no (L, 5C) slab temp at all.
                acc = jnp.dot(pad_ref[0:L, :C], w_ref[0:C, :],
                              preferred_element_type=jnp.float32)
                for k in range(1, 5):
                    acc = acc + jnp.dot(pad_ref[k:k + L, :C],
                                        w_ref[k * C:(k + 1) * C, :],
                                        preferred_element_type=jnp.float32)
                return acc
            # Small C: a single K=5*C matmul keeps the MXU K lanes filled and
            # the bf16 slab temp is tiny at these channel counts.
            slab = jnp.concatenate(
                [pad_ref[k:k + L, :C] for k in range(5)], axis=-1)
            return jnp.dot(slab, w_ref[...], preferred_element_type=jnp.float32)

        t_bf = t_ref[...].astype(jnp.bfloat16)             # (L, T) for the MXU
        h = x_ref[...].astype(jnp.float32)                 # (L, Cin)

        i = 0
        for m in metas:                                    # static Python loop
            c1w, c1b = wrefs[i], wrefs[i + 1]
            gn1w, gn1b = wrefs[i + 2], wrefs[i + 3]
            tw, tb = wrefs[i + 4], wrefs[i + 5]
            c2wh, c2wt, c2b = wrefs[i + 6], wrefs[i + 7], wrefs[i + 8]
            i += 9
            if not m['is_last']:
                gn2w, gn2b = wrefs[i], wrefs[i + 1]
                i += 2
            if m['has_skip']:
                skw = wrefs[i]
                i += 1

            h_bf = h.astype(jnp.bfloat16)  # hoisted: reused by skip + conv_1

            # residual path: 1x1 conv (no bias) or identity
            if m['has_skip']:
                res = jnp.dot(h_bf, skw[...],
                              preferred_element_type=jnp.float32)
            else:
                res = h

            # conv_1 -> group_norm_1
            hh = conv5(h_bf, c1w) + c1b[...]
            hh = groupnorm(hh, gn1w[...], gn1b[...])

            # temb projection (Linear on channel dim)
            tp = jnp.dot(t_bf, tw[...],
                         preferred_element_type=jnp.float32) + tb[...]

            # gelu(cat([hh, tp])) == [gelu(hh), gelu(tp)]; conv_2's weight is
            # split in the wrapper, so no lane-axis concatenate is needed here.
            hh = (conv5(gelu(hh).astype(jnp.bfloat16), c2wh)
                  + conv5(gelu(tp).astype(jnp.bfloat16), c2wt) + c2b[...])

            if not m['is_last']:
                hh = groupnorm(hh, gn2w[...], gn2b[...])
                hh = gelu(hh)

            h = hh + res                                   # residual AFTER gn2/gelu2

        out_ref[...] = h.astype(out_ref.dtype)

    return kernel


# ----------------------------------------------------------------------------
# Wrapper-side weight preparation (free reshapes / casts, outside the kernel)
# ----------------------------------------------------------------------------
def _im2col_weight(w):
    # PyTorch Conv1d weight (Cout, Cin, K) -> (K*Cin, Cout), tap-major, bf16.
    co, ci, k = w.shape
    return jnp.transpose(w, (2, 1, 0)).reshape(k * ci, co).astype(jnp.bfloat16)


def _prep_block(p):
    is_last = 'gn2_w' not in p           # static: derived from pytree structure
    has_skip = 'skip_w' in p
    cmid, cin, _ = p['conv1_w'].shape
    cout = p['conv2_w'].shape[0]
    f32, bf16 = jnp.float32, jnp.bfloat16
    w = [
        _im2col_weight(p['conv1_w']),                      # (5*cin, cmid) bf16
        p['conv1_b'].reshape(1, cmid).astype(f32),
        p['gn1_w'].reshape(1, cmid).astype(f32),
        p['gn1_b'].reshape(1, cmid).astype(f32),
        jnp.transpose(p['temb_w']).astype(bf16),           # (T, cmid) bf16
        p['temb_b'].reshape(1, cmid).astype(f32),
        _im2col_weight(p['conv2_w'][:, :cmid, :]),         # hidden half of cat
        _im2col_weight(p['conv2_w'][:, cmid:, :]),         # temb half of cat
        p['conv2_b'].reshape(1, cout).astype(f32),
    ]
    if not is_last:
        w += [p['gn2_w'].reshape(1, cout).astype(f32),
              p['gn2_b'].reshape(1, cout).astype(f32)]
    if has_skip:
        w += [jnp.transpose(p['skip_w'][:, :, 0]).astype(bf16)]   # (cin, cout)
    meta = dict(is_last=is_last, has_skip=has_skip, cin=cin, cmid=cmid, cout=cout)
    return w, meta


def _grid_invariant_spec(shape):
    # Weights never change across grid steps -> single-buffer them; halves their
    # VMEM residency (matters most on v7x's 64 MiB VMEM). Falls back cleanly on
    # JAX versions without pipeline_mode on BlockSpec.
    try:
        return pl.BlockSpec(shape, lambda b: (0, 0),
                            pipeline_mode=pl.Buffered(1))
    except TypeError:
        return pl.BlockSpec(shape, lambda b: (0, 0))


def _vmem_limit_bytes():
    # Generation-aware budget: ~3/4 of physical VMEM (48 MiB on v7x's 64 MiB,
    # 96 MiB on v5e/v6e's 128 MiB); conservative fallback if the query fails.
    try:
        cap = int(pltpu.get_tpu_info().vmem_capacity_bytes)
    except Exception:
        cap = 64 * 1024 * 1024
    return int(min(96 * 1024 * 1024, (cap * 3) // 4))


# ----------------------------------------------------------------------------
# Full UpBlock1DReallyNoSkip forward (NCL in / NCL out, like PyTorch)
# ----------------------------------------------------------------------------
@functools.partial(jax.jit, static_argnames=('downsampling_fac',))
def up_block_forward(hidden_states, res_hidden_states_tuple, temb, params,
                     downsampling_fac=1):
    del res_hidden_states_tuple          # "ReallyNoSkip": unused, kept for API parity
    if temb is None:
        raise ValueError("cat=True ResConvBlocks require temb")
    B, Cin, L = hidden_states.shape

    if temb.shape[-1] > 1 and downsampling_fac != 1:
        L_in = temb.shape[-1]
        L_out = L_in // downsampling_fac
        # F.interpolate(mode='nearest'): out[i] = in[floor(i * L_in / L_out)]
        idx = (jnp.arange(L_out) * L_in) // L_out
        temb = temb[..., idx]
    if temb.shape[-1] != L:
        raise ValueError(f"temb length {temb.shape[-1]} != hidden length {L}")
    T = temb.shape[1]

    x = jnp.transpose(hidden_states, (0, 2, 1))    # NCL -> NLC (channels on lanes)
    t = jnp.transpose(temb, (0, 2, 1))             # (B, L, T)

    flat_w, metas = [], []
    for p in params:
        w, m = _prep_block(p)
        flat_w += w
        metas.append(m)
    metas = tuple(metas)
    cout = metas[-1]['cout']
    cmax = max(max(m['cin'], m['cmid']) for m in metas)

    in_specs = [pl.BlockSpec((None, L, Cin), lambda b: (b, 0, 0)),
                pl.BlockSpec((None, L, T), lambda b: (b, 0, 0))]
    for w in flat_w:                               # grid-invariant weight blocks
        in_specs.append(_grid_invariant_spec(w.shape))
    out_spec = pl.BlockSpec((None, L, cout), lambda b: (b, 0, 0))

    # Advisory cost hint for the XLA scheduler.
    flops, transc = 0, 0
    for m in metas:
        flops += 2 * B * L * (5 * m['cin'] * m['cmid'] + T * m['cmid']
                              + 2 * 5 * m['cmid'] * m['cout'])
        if m['has_skip']:
            flops += 2 * B * L * m['cin'] * m['cout']
        transc += B * L * (2 * m['cmid'] + (0 if m['is_last'] else m['cout']))
    bytes_accessed = 4 * (x.size + t.size + B * L * cout) + sum(
        int(w.size) * w.dtype.itemsize for w in flat_w)

    # TODO(synk): for B == 1 on v7x, add a second "parallel" grid axis (e.g.
    # split L per core with a cross-core GroupNorm stats exchange) so both
    # TensorCores are used; with grid=(B,) only B >= 2 engages the second core.
    out = pl.pallas_call(
        make_fused_kernel(metas, L),
        out_shape=jax.ShapeDtypeStruct((B, L, cout), jnp.float32),
        grid=(B,),
        in_specs=in_specs,
        out_specs=out_spec,
        scratch_shapes=[pltpu.VMEM((L + 4, cmax), jnp.bfloat16)],
        compiler_params=pltpu.CompilerParams(
            dimension_semantics=("parallel",),          # shards B over v7x's 2 TCs
            vmem_limit_bytes=_vmem_limit_bytes()),
        cost_estimate=pl.CostEstimate(flops=int(flops),
                                      transcendentals=int(transc),
                                      bytes_accessed=int(bytes_accessed)),
    )(x, t, *flat_w)
    return jnp.transpose(out, (0, 2, 1))           # NLC -> NCL


# ----------------------------------------------------------------------------
# Deterministic synthetic parameters (shapes follow ResConvBlock.__init__)
# ----------------------------------------------------------------------------
def init_resblock_params(key, cin, cmid, cout, temb_ch, is_last):
    ks = jax.random.split(key, 11)
    f32 = jnp.float32
    p = {
        'conv1_w': 0.1 * jax.random.normal(ks[0], (cmid, cin, 5), f32),
        'conv1_b': 0.1 * jax.random.normal(ks[1], (cmid,), f32),
        'gn1_w': 1.0 + 0.1 * jax.random.normal(ks[2], (cmid,), f32),
        'gn1_b': 0.1 * jax.random.normal(ks[3], (cmid,), f32),
        'temb_w': 0.1 * jax.random.normal(ks[4], (cmid, temb_ch), f32),  # (out, in)
        'temb_b': 0.1 * jax.random.normal(ks[5], (cmid,), f32),
        'conv2_w': 0.1 * jax.random.normal(ks[6], (cout, 2 * cmid, 5), f32),
        'conv2_b': 0.1 * jax.random.normal(ks[7], (cout,), f32),
    }
    if not is_last:          # structural flag encoded via key presence (static)
        p['gn2_w'] = 1.0 + 0.1 * jax.random.normal(ks[8], (cout,), f32)
        p['gn2_b'] = 0.1 * jax.random.normal(ks[9], (cout,), f32)
    if cin != cout:          # conv_skip: Conv1d(cin, cout, 1, bias=False)
        p['skip_w'] = 0.1 * jax.random.normal(ks[10], (cout, cin, 1), f32)
    return p


def init_up_block_params(key, in_channels, out_channels, mid_channels, temb_channels):
    k1, k2, k3 = jax.random.split(key, 3)
    return (
        init_resblock_params(k1, in_channels, mid_channels, mid_channels,
                             temb_channels, is_last=False),
        init_resblock_params(k2, mid_channels, mid_channels, mid_channels,
                             temb_channels, is_last=False),
        init_resblock_params(k3, mid_channels, mid_channels, out_channels,
                             temb_channels, is_last=True),
    )


# ----------------------------------------------------------------------------
# Pure-JAX reference (mirrors the PyTorch module) for correctness checking
# ----------------------------------------------------------------------------
def _ref_gelu(v):
    return 0.5 * v * (1.0 + jax.lax.erf(v * _SQRT1_2))


def _ref_groupnorm(h, w, b):
    mean = jnp.mean(h, axis=(1, 2), keepdims=True)
    var = jnp.mean((h - mean) ** 2, axis=(1, 2), keepdims=True)
    hn = (h - mean) * jax.lax.rsqrt(var + 1e-5)
    return hn * w[None, :, None] + b[None, :, None]


def _ref_conv1d(x, w, b, pad):
    y = jax.lax.conv_general_dilated(x, w, (1,), [(pad, pad)],
                                     dimension_numbers=('NCH', 'OIH', 'NCH'))
    return y if b is None else y + b[None, :, None]


def _ref_res_conv_block(x, temb, p):
    is_last = 'gn2_w' not in p
    has_skip = 'skip_w' in p
    residual = _ref_conv1d(x, p['skip_w'], None, 0) if has_skip else x
    h = _ref_conv1d(x, p['conv1_w'], p['conv1_b'], 2)
    h = _ref_groupnorm(h, p['gn1_w'], p['gn1_b'])
    tp = jnp.einsum('btl,mt->bml', temb, p['temb_w']) + p['temb_b'][None, :, None]
    h = jnp.concatenate([h, tp], axis=1)
    h = _ref_gelu(h)
    h = _ref_conv1d(h, p['conv2_w'], p['conv2_b'], 2)
    if not is_last:
        h = _ref_groupnorm(h, p['gn2_w'], p['gn2_b'])
        h = _ref_gelu(h)
    return h + residual


def ref_up_block_forward(hidden_states, temb, params, downsampling_fac=1):
    if temb is not None and temb.shape[-1] > 1 and downsampling_fac != 1:
        L_in = temb.shape[-1]
        L_out = L_in // downsampling_fac
        idx = (jnp.arange(L_out) * L_in) // L_out
        temb = temb[..., idx]
    h = hidden_states
    for p in params:
        h = _ref_res_conv_block(h, temb, p)
    return h


if __name__ == "__main__":
    B, Cin, Cmid, Cout, T, L = 2, 8, 16, 8, 8, 16

    key = jax.random.PRNGKey(0)
    kx, kt, kp = jax.random.split(key, 3)
    hidden_states = jax.random.normal(kx, (B, Cin, L), jnp.float32)   # NCL
    temb = jax.random.normal(kt, (B, T, L), jnp.float32)              # NCL

    params = init_up_block_params(kp, Cin, Cout, Cmid, T)

    out = up_block_forward(hidden_states, None, temb, params, downsampling_fac=1)
    out = jax.block_until_ready(out)

    assert out.shape == (B, Cout, L), out.shape
    assert bool(jnp.all(jnp.isfinite(out)))

    ref = ref_up_block_forward(hidden_states, temb, params, downsampling_fac=1)
    rel_err = float(jnp.max(jnp.abs(out - ref)) / (jnp.max(jnp.abs(ref)) + 1e-6))
    assert rel_err < 5e-2, f"mismatch vs reference: rel_err={rel_err}"

    print("KERNEL_OK")
</pallas_src>

<mosaic_0001>
module attributes {stable_mosaic.version = 11 : i64} {
  func.func @kernel(%arg0: i32, %arg1: memref<1x16x8xf32, #tpu.memory_space<vmem>>, %arg2: memref<1x16x8xf32, #tpu.memory_space<vmem>>, %arg3: memref<40x16xbf16, #tpu.memory_space<vmem>>, %arg4: memref<1x16xf32, #tpu.memory_space<vmem>>, %arg5: memref<1x16xf32, #tpu.memory_space<vmem>>, %arg6: memref<1x16xf32, #tpu.memory_space<vmem>>, %arg7: memref<8x16xbf16, #tpu.memory_space<vmem>>, %arg8: memref<1x16xf32, #tpu.memory_space<vmem>>, %arg9: memref<80x16xbf16, #tpu.memory_space<vmem>>, %arg10: memref<80x16xbf16, #tpu.memory_space<vmem>>, %arg11: memref<1x16xf32, #tpu.memory_space<vmem>>, %arg12: memref<1x16xf32, #tpu.memory_space<vmem>>, %arg13: memref<1x16xf32, #tpu.memory_space<vmem>>, %arg14: memref<8x16xbf16, #tpu.memory_space<vmem>>, %arg15: memref<80x16xbf16, #tpu.memory_space<vmem>>, %arg16: memref<1x16xf32, #tpu.memory_space<vmem>>, %arg17: memref<1x16xf32, #tpu.memory_space<vmem>>, %arg18: memref<1x16xf32, #tpu.memory_space<vmem>>, %arg19: memref<8x16xbf16, #tpu.memory_space<vmem>>, %arg20: memref<1x16xf32, #tpu.memory_space<vmem>>, %arg21: memref<80x16xbf16, #tpu.memory_space<vmem>>, %arg22: memref<80x16xbf16, #tpu.memory_space<vmem>>, %arg23: memref<1x16xf32, #tpu.memory_space<vmem>>, %arg24: memref<1x16xf32, #tpu.memory_space<vmem>>, %arg25: memref<1x16xf32, #tpu.memory_space<vmem>>, %arg26: memref<80x16xbf16, #tpu.memory_space<vmem>>, %arg27: memref<1x16xf32, #tpu.memory_space<vmem>>, %arg28: memref<1x16xf32, #tpu.memory_space<vmem>>, %arg29: memref<1x16xf32, #tpu.memory_space<vmem>>, %arg30: memref<8x16xbf16, #tpu.memory_space<vmem>>, %arg31: memref<1x16xf32, #tpu.memory_space<vmem>>, %arg32: memref<80x8xbf16, #tpu.memory_space<vmem>>, %arg33: memref<80x8xbf16, #tpu.memory_space<vmem>>, %arg34: memref<1x8xf32, #tpu.memory_space<vmem>>, %arg35: memref<16x8xbf16, #tpu.memory_space<vmem>>, %arg36: memref<1x16x8xf32, #tpu.memory_space<vmem>>, %arg37: memref<20x16xbf16, #tpu.memory_space<vmem>>) attributes {dimension_semantics = [#tpu.dimension_semantics<parallel>], iteration_bounds = array<i64: 2>, scalar_prefetch = 0 : i64, scratch_operands = 1 : i64, tpu.core_type = #tpu.core_type<tc>, window_params = [{transform_indices = @transform_0, window_bounds = array<i64: 1, 16, 8>}, {transform_indices = @transform_1, window_bounds = array<i64: 1, 16, 8>}, {pipeline_mode = #tpu.pipeline_mode<synchronous>, transform_indices = @transform_2, window_bounds = array<i64: 40, 16>}, {pipeline_mode = #tpu.pipeline_mode<synchronous>, transform_indices = @transform_3, window_bounds = array<i64: 1, 16>}, {pipeline_mode = #tpu.pipeline_mode<synchronous>, transform_indices = @transform_4, window_bounds = array<i64: 1, 16>}, {pipeline_mode = #tpu.pipeline_mode<synchronous>, transform_indices = @transform_5, window_bounds = array<i64: 1, 16>}, {pipeline_mode = #tpu.pipeline_mode<synchronous>, transform_indices = @transform_6, window_bounds = array<i64: 8, 16>}, {pipeline_mode = #tpu.pipeline_mode<synchronous>, transform_indices = @transform_7, window_bounds = array<i64: 1, 16>}, {pipeline_mode = #tpu.pipeline_mode<synchronous>, transform_indices = @transform_8, window_bounds = array<i64: 80, 16>}, {pipeline_mode = #tpu.pipeline_mode<synchronous>, transform_indices = @transform_9, window_bounds = array<i64: 80, 16>}, {pipeline_mode = #tpu.pipeline_mode<synchronous>, transform_indices = @transform_10, window_bounds = array<i64: 1, 16>}, {pipeline_mode = #tpu.pipeline_mode<synchronous>, transform_indices = @transform_11, window_bounds = array<i64: 1, 16>}, {pipeline_mode = #tpu.pipeline_mode<synchronous>, transform_indices = @transform_12, window_bounds = array<i64: 1, 16>}, {pipeline_mode = #tpu.pipeline_mode<synchronous>, transform_indices = @transform_13, window_bounds = array<i64: 8, 16>}, {pipeline_mode = #tpu.pipeline_mode<synchronous>, transform_indices = @transform_14, window_bounds = array<i64: 80, 16>}, {pipeline_mode = #tpu.pipeline_mode<synchronous>, transform_indices = @transform_15, window_bounds = array<i64: 1, 16>}, {pipeline_mode = #tpu.pipeline_mode<synchronous>, transform_indices = @transform_16, window_bounds = array<i64: 1, 16>}, {pipeline_mode = #tpu.pipeline_mode<synchronous>, transform_indices = @transform_17, window_bounds = array<i64: 1, 16>}, {pipeline_mode = #tpu.pipeline_mode<synchronous>, transform_indices = @transform_18, window_bounds = array<i64: 8, 16>}, {pipeline_mode = #tpu.pipeline_mode<synchronous>, transform_indices = @transform_19, window_bounds = array<i64: 1, 16>}, {pipeline_mode = #tpu.pipeline_mode<synchronous>, transform_indices = @transform_20, window_bounds = array<i64: 80, 16>}, {pipeline_mode = #tpu.pipeline_mode<synchronous>, transform_indices = @transform_21, window_bounds = array<i64: 80, 16>}, {pipeline_mode = #tpu.pipeline_mode<synchronous>, transform_indices = @transform_22, window_bounds = array<i64: 1, 16>}, {pipeline_mode = #tpu.pipeline_mode<synchronous>, transform_indices = @transform_23, window_bounds = array<i64: 1, 16>}, {pipeline_mode = #tpu.pipeline_mode<synchronous>, transform_indices = @transform_24, window_bounds = array<i64: 1, 16>}, {pipeline_mode = #tpu.pipeline_mode<synchronous>, transform_indices = @transform_25, window_bounds = array<i64: 80, 16>}, {pipeline_mode = #tpu.pipeline_mode<synchronous>, transform_indices = @transform_26, window_bounds = array<i64: 1, 16>}, {pipeline_mode = #tpu.pipeline_mode<synchronous>, transform_indices = @transform_27, window_bounds = array<i64: 1, 16>}, {pipeline_mode = #tpu.pipeline_mode<synchronous>, transform_indices = @transform_28, window_bounds = array<i64: 1, 16>}, {pipeline_mode = #tpu.pipeline_mode<synchronous>, transform_indices = @transform_29, window_bounds = array<i64: 8, 16>}, {pipeline_mode = #tpu.pipeline_mode<synchronous>, transform_indices = @transform_30, window_bounds = array<i64: 1, 16>}, {pipeline_mode = #tpu.pipeline_mode<synchronous>, transform_indices = @transform_31, window_bounds = array<i64: 80, 8>}, {pipeline_mode = #tpu.pipeline_mode<synchronous>, transform_indices = @transform_32, window_bounds = array<i64: 80, 8>}, {pipeline_mode = #tpu.pipeline_mode<synchronous>, transform_indices = @transform_33, window_bounds = array<i64: 1, 8>}, {pipeline_mode = #tpu.pipeline_mode<synchronous>, transform_indices = @transform_34, window_bounds = array<i64: 16, 8>}, {transform_indices = @transform_35, window_bounds = array<i64: 1, 16, 8>}]} {
    %cst = arith.constant 0.000000e+00 : bf16
    %0 = vector.broadcast %cst : bf16 to vector<2x16xbf16>
    %c0 = arith.constant 0 : index
    %c0_0 = arith.constant 0 : index
    %1 = vector.load %arg37[%c0, %c0_0] : memref<20x16xbf16, #tpu.memory_space<vmem>>, vector<2x16xbf16>
    tpu.vector_store %arg37[%c0, %c0_0], %0 {strides = array<i32>} : memref<20x16xbf16, #tpu.memory_space<vmem>>, vector<2x16xbf16>,
    %cst_1 = arith.constant 0.000000e+00 : bf16
    %2 = vector.broadcast %cst_1 : bf16 to vector<2x16xbf16>
    %c18 = arith.constant 18 : index
    %c0_2 = arith.constant 0 : index
    %3 = vector.load %arg37[%c18, %c0_2] : memref<20x16xbf16, #tpu.memory_space<vmem>>, vector<2x16xbf16>
    tpu.vector_store %arg37[%c18, %c0_2], %2 {strides = array<i32>} : memref<20x16xbf16, #tpu.memory_space<vmem>>, vector<2x16xbf16>,
    %c0_3 = arith.constant 0 : index
    %c0_4 = arith.constant 0 : index
    %c0_5 = arith.constant 0 : index
    %4 = vector.load %arg2[%c0_3, %c0_4, %c0_5] : memref<1x16x8xf32, #tpu.memory_space<vmem>>, vector<1x16x8xf32>
    %5 = vector.shape_cast %4 : vector<1x16x8xf32> to vector<16x8xf32>
    %6 = arith.truncf %5 : vector<16x8xf32> to vector<16x8xbf16>
    %c0_6 = arith.constant 0 : index
    %c0_7 = arith.constant 0 : index
    %c0_8 = arith.constant 0 : index
    %7 = vector.load %arg1[%c0_6, %c0_7, %c0_8] : memref<1x16x8xf32, #tpu.memory_space<vmem>>, vector<1x16x8xf32>
    %8 = vector.shape_cast %7 : vector<1x16x8xf32> to vector<16x8xf32>
    %9 = arith.truncf %8 : vector<16x8xf32> to vector<16x8xbf16>
    %c0_9 = arith.constant 0 : index
    %c0_10 = arith.constant 0 : index
    %10 = vector.load %arg14[%c0_9, %c0_10] : memref<8x16xbf16, #tpu.memory_space<vmem>>, vector<8x16xbf16>
    %cst_11 = arith.constant dense<0.000000e+00> : vector<16x16xf32>
    %11 = tpu.matmul %9, %10, %cst_11 {dimension_numbers = #tpu.dot_dimension_numbers<[1], [0], [0], [1], [0, 0, 1, 1], [], []>} : vector<16x8xbf16>, vector<8x16xbf16>, vector<16x16xf32> -> vector<16x16xf32>
    %c2 = arith.constant 2 : index
    %c0_12 = arith.constant 0 : index
    %12 = vector.load %arg37[%c2, %c0_12] : memref<20x16xbf16, #tpu.memory_space<vmem>>, vector<16x8xbf16>
    tpu.vector_store %arg37[%c2, %c0_12], %9 {strides = array<i32>} : memref<20x16xbf16, #tpu.memory_space<vmem>>, vector<16x8xbf16>,
    %c0_13 = arith.constant 0 : index
    %c0_14 = arith.constant 0 : index
    %13 = vector.load %arg37[%c0_13, %c0_14] : memref<20x16xbf16, #tpu.memory_space<vmem>>, vector<16x8xbf16>
    %c1 = arith.constant 1 : index
    %c0_15 = arith.constant 0 : index
    %14 = vector.load %arg37[%c1, %c0_15] : memref<20x16xbf16, #tpu.memory_space<vmem>>, vector<16x8xbf16>
    %c2_16 = arith.constant 2 : index
    %c0_17 = arith.constant 0 : index
    %15 = vector.load %arg37[%c2_16, %c0_17] : memref<20x16xbf16, #tpu.memory_space<vmem>>, vector<16x8xbf16>
    %c3 = arith.constant 3 : index
    %c0_18 = arith.constant 0 : index
    %16 = vector.load %arg37[%c3, %c0_18] : memref<20x16xbf16, #tpu.memory_space<vmem>>, vector<16x8xbf16>
    %c4 = arith.constant 4 : index
    %c0_19 = arith.constant 0 : index
    %17 = vector.load %arg37[%c4, %c0_19] : memref<20x16xbf16, #tpu.memory_space<vmem>>, vector<16x8xbf16>
    %18 = tpu.concatenate %13, %14, %15, %16, %17 in 1 : vector<16x8xbf16>, vector<16x8xbf16>, vector<16x8xbf16>, vector<16x8xbf16>, vector<16x8xbf16> -> vector<16x40xbf16>
    %c0_20 = arith.constant 0 : index
    %c0_21 = arith.constant 0 : index
    %19 = vector.load %arg3[%c0_20, %c0_21] : memref<40x16xbf16, #tpu.memory_space<vmem>>, vector<40x16xbf16>
    %cst_22 = arith.constant dense<0.000000e+00> : vector<16x16xf32>
    %20 = tpu.matmul %18, %19, %cst_22 {dimension_numbers = #tpu.dot_dimension_numbers<[1], [0], [0], [1], [0, 0, 1, 1], [], []>} : vector<16x40xbf16>, vector<40x16xbf16>, vector<16x16xf32> -> vector<16x16xf32>
    %c0_23 = arith.constant 0 : index
    %c0_24 = arith.constant 0 : index
    %21 = vector.load %arg4[%c0_23, %c0_24] : memref<1x16xf32, #tpu.memory_space<vmem>>, vector<1x16xf32>
    %22 = vector.broadcast %21 : vector<1x16xf32> to vector<16x16xf32>
    %23 = arith.addf %20, %22 : vector<16x16xf32>
    %c0_25 = arith.constant 0 : index
    %c0_26 = arith.constant 0 : index
    %24 = vector.load %arg5[%c0_25, %c0_26] : memref<1x16xf32, #tpu.memory_space<vmem>>, vector<1x16xf32>
    %c0_27 = arith.constant 0 : index
    %c0_28 = arith.constant 0 : index
    %25 = vector.load %arg6[%c0_27, %c0_28] : memref<1x16xf32, #tpu.memory_space<vmem>>, vector<1x16xf32>
    %26 = vector.shape_cast %23 : vector<16x16xf32> to vector<1x16x16xf32>
    %cst_29 = arith.constant dense<0.000000e+00> : vector<1xf32>
    %27 = vector.multi_reduction <add>, %26, %cst_29 [1, 2] : vector<1x16x16xf32> to vector<1xf32>
    %28 = vector.shape_cast %27 : vector<1xf32> to vector<1x1x1xf32>
    %29 = vector.extract %28[0, 0, 0] : f32 from vector<1x1x1xf32>
    %30 = vector.broadcast %29 : f32 to vector<1x1xf32>
    %cst_30 = arith.constant 3.906250e-03 : f32
    %31 = vector.broadcast %cst_30 : f32 to vector<1x1xf32>
    %32 = arith.mulf %30, %31 : vector<1x1xf32>
    %33 = arith.mulf %23, %23 : vector<16x16xf32>
    %34 = vector.shape_cast %33 : vector<16x16xf32> to vector<1x16x16xf32>
    %cst_31 = arith.constant dense<0.000000e+00> : vector<1xf32>
    %35 = vector.multi_reduction <add>, %34, %cst_31 [1, 2] : vector<1x16x16xf32> to vector<1xf32>
    %36 = vector.shape_cast %35 : vector<1xf32> to vector<1x1x1xf32>
    %37 = vector.extract %36[0, 0, 0] : f32 from vector<1x1x1xf32>
    %38 = vector.broadcast %37 : f32 to vector<1x1xf32>
    %cst_32 = arith.constant 3.906250e-03 : f32
    %39 = vector.broadcast %cst_32 : f32 to vector<1x1xf32>
    %40 = arith.mulf %38, %39 : vector<1x1xf32>
    %41 = arith.mulf %32, %32 : vector<1x1xf32>
    %42 = arith.subf %40, %41 : vector<1x1xf32>
    %43 = vector.broadcast %32 : vector<1x1xf32> to vector<16x16xf32>
    %44 = arith.subf %23, %43 : vector<16x16xf32>
    %cst_33 = arith.constant 9.99999974E-6 : f32
    %45 = vector.broadcast %cst_33 : f32 to vector<1x1xf32>
    %46 = arith.addf %42, %45 : vector<1x1xf32>
    %47 = math.rsqrt %46 : vector<1x1xf32>
    %48 = vector.broadcast %47 : vector<1x1xf32> to vector<16x16xf32>
    %49 = arith.mulf %44, %48 : vector<16x16xf32>
    %50 = vector.broadcast %24 : vector<1x16xf32> to vector<16x16xf32>
    %51 = arith.mulf %49, %50 : vector<16x16xf32>
    %52 = vector.broadcast %25 : vector<1x16xf32> to vector<16x16xf32>
    %53 = arith.addf %51, %52 : vector<16x16xf32>
    %c0_34 = arith.constant 0 : index
    %c0_35 = arith.constant 0 : index
    %54 = vector.load %arg7[%c0_34, %c0_35] : memref<8x16xbf16, #tpu.memory_space<vmem>>, vector<8x16xbf16>
    %cst_36 = arith.constant dense<0.000000e+00> : vector<16x16xf32>
    %55 = tpu.matmul %6, %54, %cst_36 {dimension_numbers = #tpu.dot_dimension_numbers<[1], [0], [0], [1], [0, 0, 1, 1], [], []>} : vector<16x8xbf16>, vector<8x16xbf16>, vector<16x16xf32> -> vector<16x16xf32>
    %c0_37 = arith.constant 0 : index
    %c0_38 = arith.constant 0 : index
    %56 = vector.load %arg8[%c0_37, %c0_38] : memref<1x16xf32, #tpu.memory_space<vmem>>, vector<1x16xf32>
    %57 = vector.broadcast %56 : vector<1x16xf32> to vector<16x16xf32>
    %58 = arith.addf %55, %57 : vector<16x16xf32>
    %cst_39 = arith.constant 0.707106769 : f32
    %59 = vector.broadcast %cst_39 : f32 to vector<16x16xf32>
    %60 = arith.mulf %53, %59 : vector<16x16xf32>
    %61 = math.absf %60 : vector<16x16xf32>
    %cst_40 = arith.constant 0.327591091 : f32
    %62 = vector.broadcast %cst_40 : f32 to vector<16x16xf32>
    %63 = arith.mulf %62, %61 : vector<16x16xf32>
    %cst_41 = arith.constant 1.000000e+00 : f32
    %64 = vector.broadcast %cst_41 : f32 to vector<16x16xf32>
    %65 = arith.addf %64, %63 : vector<16x16xf32>
    %66 = tpu.reciprocal %65 {approx = true} : vector<16x16xf32> -> vector<16x16xf32>
    %cst_42 = arith.constant 1.06140542 : f32
    %67 = vector.broadcast %cst_42 : f32 to vector<16x16xf32>
    %68 = arith.mulf %67, %66 : vector<16x16xf32>
    %cst_43 = arith.constant 1.45315206 : f32
    %69 = vector.broadcast %cst_43 : f32 to vector<16x16xf32>
    %70 = arith.subf %68, %69 : vector<16x16xf32>
    %71 = arith.mulf %70, %66 : vector<16x16xf32>
    %cst_44 = arith.constant 1.42141378 : f32
    %72 = vector.broadcast %cst_44 : f32 to vector<16x16xf32>
    %73 = arith.addf %71, %72 : vector<16x16xf32>
    %74 = arith.mulf %73, %66 : vector<16x16xf32>
    %cst_45 = arith.constant 0.284496725 : f32
    %75 = vector.broadcast %cst_45 : f32 to vector<16x16xf32>
    %76 = arith.subf %74, %75 : vector<16x16xf32>
    %77 = arith.mulf %76, %66 : vector<16x16xf32>
    %cst_46 = arith.constant 0.254829586 : f32
    %78 = vector.broadcast %cst_46 : f32 to vector<16x16xf32>
    %79 = arith.addf %77, %78 : vector<16x16xf32>
    %80 = arith.mulf %79, %66 : vector<16x16xf32>
    %cst_47 = arith.constant 0.000000e+00 : f32
    %81 = vector.broadcast %cst_47 : f32 to vector<16x16xf32>
    %82 = arith.subf %81, %61 : vector<16x16xf32>
    %83 = arith.mulf %82, %61 : vector<16x16xf32>
    %84 = math.exp %83 : vector<16x16xf32>
    %85 = arith.mulf %80, %84 : vector<16x16xf32>
    %cst_48 = arith.constant 1.000000e+00 : f32
    %86 = vector.broadcast %cst_48 : f32 to vector<16x16xf32>
    %87 = arith.subf %86, %85 : vector<16x16xf32>
    %cst_49 = arith.constant 0.000000e+00 : f32
    %88 = vector.broadcast %cst_49 : f32 to vector<16x16xf32>
    %89 = arith.cmpf oge, %60, %88 : vector<16x16xf32>
    %cst_50 = arith.constant 0.000000e+00 : f32
    %90 = vector.broadcast %cst_50 : f32 to vector<16x16xf32>
    %91 = arith.subf %90, %87 : vector<16x16xf32>
    %92 = arith.select %89, %87, %91 : vector<16x16xi1>, vector<16x16xf32>
    %cst_51 = arith.constant 5.000000e-01 : f32
    %93 = vector.broadcast %cst_51 : f32 to vector<16x16xf32>
    %94 = arith.mulf %93, %53 : vector<16x16xf32>
    %cst_52 = arith.constant 1.000000e+00 : f32
    %95 = vector.broadcast %cst_52 : f32 to vector<16x16xf32>
    %96 = arith.addf %95, %92 : vector<16x16xf32>
    %97 = arith.mulf %94, %96 : vector<16x16xf32>
    %98 = arith.truncf %97 : vector<16x16xf32> to vector<16x16xbf16>
    %c2_53 = arith.constant 2 : index
    %c0_54 = arith.constant 0 : index
    %99 = vector.load %arg37[%c2_53, %c0_54] : memref<20x16xbf16, #tpu.memory_space<vmem>>, vector<16x16xbf16>
    tpu.vector_store %arg37[%c2_53, %c0_54], %98 {strides = array<i32>} : memref<20x16xbf16, #tpu.memory_space<vmem>>, vector<16x16xbf16>,
    %c0_55 = arith.constant 0 : index
    %c0_56 = arith.constant 0 : index
    %100 = vector.load %arg37[%c0_55, %c0_56] : memref<20x16xbf16, #tpu.memory_space<vmem>>, vector<16x16xbf16>
    %c1_57 = arith.constant 1 : index
    %c0_58 = arith.constant 0 : index
    %101 = vector.load %arg37[%c1_57, %c0_58] : memref<20x16xbf16, #tpu.memory_space<vmem>>, vector<16x16xbf16>
    %c2_59 = arith.constant 2 : index
    %c0_60 = arith.constant 0 : index
    %102 = vector.load %arg37[%c2_59, %c0_60] : memref<20x16xbf16, #tpu.memory_space<vmem>>, vector<16x16xbf16>
    %c3_61 = arith.constant 3 : index
    %c0_62 = arith.constant 0 : index
    %103 = vector.load %arg37[%c3_61, %c0_62] : memref<20x16xbf16, #tpu.memory_space<vmem>>, vector<16x16xbf16>
    %c4_63 = arith.constant 4 : index
    %c0_64 = arith.constant 0 : index
    %104 = vector.load %arg37[%c4_63, %c0_64] : memref<20x16xbf16, #tpu.memory_space<vmem>>, vector<16x16xbf16>
    %105 = tpu.concatenate %100, %101, %102, %103, %104 in 1 : vector<16x16xbf16>, vector<16x16xbf16>, vector<16x16xbf16>, vector<16x16xbf16>, vector<16x16xbf16> -> vector<16x80xbf16>
    %c0_65 = arith.constant 0 : index
    %c0_66 = arith.constant 0 : index
    %106 = vector.load %arg9[%c0_65, %c0_66] : memref<80x16xbf16, #tpu.memory_space<vmem>>, vector<80x16xbf16>
    %cst_67 = arith.constant dense<0.000000e+00> : vector<16x16xf32>
    %107 = tpu.matmul %105, %106, %cst_67 {dimension_numbers = #tpu.dot_dimension_numbers<[1], [0], [0], [1], [0, 0, 1, 1], [], []>} : vector<16x80xbf16>, vector<80x16xbf16>, vector<16x16xf32> -> vector<16x16xf32>
    %cst_68 = arith.constant 0.707106769 : f32
    %108 = vector.broadcast %cst_68 : f32 to vector<16x16xf32>
    %109 = arith.mulf %58, %108 : vector<16x16xf32>
    %110 = math.absf %109 : vector<16x16xf32>
    %cst_69 = arith.constant 0.327591091 : f32
    %111 = vector.broadcast %cst_69 : f32 to vector<16x16xf32>
    %112 = arith.mulf %111, %110 : vector<16x16xf32>
    %cst_70 = arith.constant 1.000000e+00 : f32
    %113 = vector.broadcast %cst_70 : f32 to vector<16x16xf32>
    %114 = arith.addf %113, %112 : vector<16x16xf32>
    %115 = tpu.reciprocal %114 {approx = true} : vector<16x16xf32> -> vector<16x16xf32>
    %cst_71 = arith.constant 1.06140542 : f32
    %116 = vector.broadcast %cst_71 : f32 to vector<16x16xf32>
    %117 = arith.mulf %116, %115 : vector<16x16xf32>
    %cst_72 = arith.constant 1.45315206 : f32
    %118 = vector.broadcast %cst_72 : f32 to vector<16x16xf32>
    %119 = arith.subf %117, %118 : vector<16x16xf32>
    %120 = arith.mulf %119, %115 : vector<16x16xf32>
    %cst_73 = arith.constant 1.42141378 : f32
    %121 = vector.broadcast %cst_73 : f32 to vector<16x16xf32>
    %122 = arith.addf %120, %121 : vector<16x16xf32>
    %123 = arith.mulf %122, %115 : vector<16x16xf32>
    %cst_74 = arith.constant 0.284496725 : f32
    %124 = vector.broadcast %cst_74 : f32 to vector<16x16xf32>
    %125 = arith.subf %123, %124 : vector<16x16xf32>
    %126 = arith.mulf %125, %115 : vector<16x16xf32>
    %cst_75 = arith.constant 0.254829586 : f32
    %127 = vector.broadcast %cst_75 : f32 to vector<16x16xf32>
    %128 = arith.addf %126, %127 : vector<16x16xf32>
    %129 = arith.mulf %128, %115 : vector<16x16xf32>
    %cst_76 = arith.constant 0.000000e+00 : f32
    %130 = vector.broadcast %cst_76 : f32 to vector<16x16xf32>
    %131 = arith.subf %130, %110 : vector<16x16xf32>
    %132 = arith.mulf %131, %110 : vector<16x16xf32>
    %133 = math.exp %132 : vector<16x16xf32>
    %134 = arith.mulf %129, %133 : vector<16x16xf32>
    %cst_77 = arith.constant 1.000000e+00 : f32
    %135 = vector.broadcast %cst_77 : f32 to vector<16x16xf32>
    %136 = arith.subf %135, %134 : vector<16x16xf32>
    %cst_78 = arith.constant 0.000000e+00 : f32
    %137 = vector.broadcast %cst_78 : f32 to vector<16x16xf32>
    %138 = arith.cmpf oge, %109, %137 : vector<16x16xf32>
    %cst_79 = arith.constant 0.000000e+00 : f32
    %139 = vector.broadcast %cst_79 : f32 to vector<16x16xf32>
    %140 = arith.subf %139, %136 : vector<16x16xf32>
    %141 = arith.select %138, %136, %140 : vector<16x16xi1>, vector<16x16xf32>
    %cst_80 = arith.constant 5.000000e-01 : f32
    %142 = vector.broadcast %cst_80 : f32 to vector<16x16xf32>
    %143 = arith.mulf %142, %58 : vector<16x16xf32>
    %cst_81 = arith.constant 1.000000e+00 : f32
    %144 = vector.broadcast %cst_81 : f32 to vector<16x16xf32>
    %145 = arith.addf %144, %141 : vector<16x16xf32>
    %146 = arith.mulf %143, %145 : vector<16x16xf32>
    %147 = arith.truncf %146 : vector<16x16xf32> to vector<16x16xbf16>
    %c2_82 = arith.constant 2 : index
    %c0_83 = arith.constant 0 : index
    %148 = vector.load %arg37[%c2_82, %c0_83] : memref<20x16xbf16, #tpu.memory_space<vmem>>, vector<16x16xbf16>
    tpu.vector_store %arg37[%c2_82, %c0_83], %147 {strides = array<i32>} : memref<20x16xbf16, #tpu.memory_space<vmem>>, vector<16x16xbf16>,
    %c0_84 = arith.constant 0 : index
    %c0_85 = arith.constant 0 : index
    %149 = vector.load %arg37[%c0_84, %c0_85] : memref<20x16xbf16, #tpu.memory_space<vmem>>, vector<16x16xbf16>
    %c1_86 = arith.constant 1 : index
    %c0_87 = arith.constant 0 : index
    %150 = vector.load %arg37[%c1_86, %c0_87] : memref<20x16xbf16, #tpu.memory_space<vmem>>, vector<16x16xbf16>
    %c2_88 = arith.constant 2 : index
    %c0_89 = arith.constant 0 : index
    %151 = vector.load %arg37[%c2_88, %c0_89] : memref<20x16xbf16, #tpu.memory_space<vmem>>, vector<16x16xbf16>
    %c3_90 = arith.constant 3 : index
    %c0_91 = arith.constant 0 : index
    %152 = vector.load %arg37[%c3_90, %c0_91] : memref<20x16xbf16, #tpu.memory_space<vmem>>, vector<16x16xbf16>
    %c4_92 = arith.constant 4 : index
    %c0_93 = arith.constant 0 : index
    %153 = vector.load %arg37[%c4_92, %c0_93] : memref<20x16xbf16, #tpu.memory_space<vmem>>, vector<16x16xbf16>
    %154 = tpu.concatenate %149, %150, %151, %152, %153 in 1 : vector<16x16xbf16>, vector<16x16xbf16>, vector<16x16xbf16>, vector<16x16xbf16>, vector<16x16xbf16> -> vector<16x80xbf16>
    %c0_94 = arith.constant 0 : index
    %c0_95 = arith.constant 0 : index
    %155 = vector.load %arg10[%c0_94, %c0_95] : memref<80x16xbf16, #tpu.memory_space<vmem>>, vector<80x16xbf16>
    %cst_96 = arith.constant dense<0.000000e+00> : vector<16x16xf32>
    %156 = tpu.matmul %154, %155, %cst_96 {dimension_numbers = #tpu.dot_dimension_numbers<[1], [0], [0], [1], [0, 0, 1, 1], [], []>} : vector<16x80xbf16>, vector<80x16xbf16>, vector<16x16xf32> -> vector<16x16xf32>
    %157 = arith.addf %107, %156 : vector<16x16xf32>
    %c0_97 = arith.constant 0 : index
    %c0_98 = arith.constant 0 : index
    %158 = vector.load %arg11[%c0_97, %c0_98] : memref<1x16xf32, #tpu.memory_space<vmem>>, vector<1x16xf32>
    %159 = vector.broadcast %158 : vector<1x16xf32> to vector<16x16xf32>
    %160 = arith.addf %157, %159 : vector<16x16xf32>
    %c0_99 = arith.constant 0 : index
    %c0_100 = arith.constant 0 : index
    %161 = vector.load %arg12[%c0_99, %c0_100] : memref<1x16xf32, #tpu.memory_space<vmem>>, vector<1x16xf32>
    %c0_101 = arith.constant 0 : index
    %c0_102 = arith.constant 0 : index
    %162 = vector.load %arg13[%c0_101, %c0_102] : memref<1x16xf32, #tpu.memory_space<vmem>>, vector<1x16xf32>
    %163 = vector.shape_cast %160 : vector<16x16xf32> to vector<1x16x16xf32>
    %cst_103 = arith.constant dense<0.000000e+00> : vector<1xf32>
    %164 = vector.multi_reduction <add>, %163, %cst_103 [1, 2] : vector<1x16x16xf32> to vector<1xf32>
    %165 = vector.shape_cast %164 : vector<1xf32> to vector<1x1x1xf32>
    %166 = vector.extract %165[0, 0, 0] : f32 from vector<1x1x1xf32>
    %167 = vector.broadcast %166 : f32 to vector<1x1xf32>
    %cst_104 = arith.constant 3.906250e-03 : f32
    %168 = vector.broadcast %cst_104 : f32 to vector<1x1xf32>
    %169 = arith.mulf %167, %168 : vector<1x1xf32>
    %170 = arith.mulf %160, %160 : vector<16x16xf32>
    %171 = vector.shape_cast %170 : vector<16x16xf32> to vector<1x16x16xf32>
    %cst_105 = arith.constant dense<0.000000e+00> : vector<1xf32>
    %172 = vector.multi_reduction <add>, %171, %cst_105 [1, 2] : vector<1x16x16xf32> to vector<1xf32>
    %173 = vector.shape_cast %172 : vector<1xf32> to vector<1x1x1xf32>
    %174 = vector.extract %173[0, 0, 0] : f32 from vector<1x1x1xf32>
    %175 = vector.broadcast %174 : f32 to vector<1x1xf32>
    %cst_106 = arith.constant 3.906250e-03 : f32
    %176 = vector.broadcast %cst_106 : f32 to vector<1x1xf32>
    %177 = arith.mulf %175, %176 : vector<1x1xf32>
    %178 = arith.mulf %169, %169 : vector<1x1xf32>
    %179 = arith.subf %177, %178 : vector<1x1xf32>
    %180 = vector.broadcast %169 : vector<1x1xf32> to vector<16x16xf32>
    %181 = arith.subf %160, %180 : vector<16x16xf32>
    %cst_107 = arith.constant 9.99999974E-6 : f32
    %182 = vector.broadcast %cst_107 : f32 to vector<1x1xf32>
    %183 = arith.addf %179, %182 : vector<1x1xf32>
    %184 = math.rsqrt %183 : vector<1x1xf32>
    %185 = vector.broadcast %184 : vector<1x1xf32> to vector<16x16xf32>
    %186 = arith.mulf %181, %185 : vector<16x16xf32>
    %187 = vector.broadcast %161 : vector<1x16xf32> to vector<16x16xf32>
    %188 = arith.mulf %186, %187 : vector<16x16xf32>
    %189 = vector.broadcast %162 : vector<1x16xf32> to vector<16x16xf32>
    %190 = arith.addf %188, %189 : vector<16x16xf32>
    %cst_108 = arith.constant 0.707106769 : f32
    %191 = vector.broadcast %cst_108 : f32 to vector<16x16xf32>
    %192 = arith.mulf %190, %191 : vector<16x16xf32>
    %193 = math.absf %192 : vector<16x16xf32>
    %cst_109 = arith.constant 0.327591091 : f32
    %194 = vector.broadcast %cst_109 : f32 to vector<16x16xf32>
    %195 = arith.mulf %194, %193 : vector<16x16xf32>
    %cst_110 = arith.constant 1.000000e+00 : f32
    %196 = vector.broadcast %cst_110 : f32 to vector<16x16xf32>
    %197 = arith.addf %196, %195 : vector<16x16xf32>
    %198 = tpu.reciprocal %197 {approx = true} : vector<16x16xf32> -> vector<16x16xf32>
    %cst_111 = arith.constant 1.06140542 : f32
    %199 = vector.broadcast %cst_111 : f32 to vector<16x16xf32>
    %200 = arith.mulf %199, %198 : vector<16x16xf32>
    %cst_112 = arith.constant 1.45315206 : f32
    %201 = vector.broadcast %cst_112 : f32 to vector<16x16xf32>
    %202 = arith.subf %200, %201 : vector<16x16xf32>
    %203 = arith.mulf %202, %198 : vector<16x16xf32>
    %cst_113 = arith.constant 1.42141378 : f32
    %204 = vector.broadcast %cst_113 : f32 to vector<16x16xf32>
    %205 = arith.addf %203, %204 : vector<16x16xf32>
    %206 = arith.mulf %205, %198 : vector<16x16xf32>
    %cst_114 = arith.constant 0.284496725 : f32
    %207 = vector.broadcast %cst_114 : f32 to vector<16x16xf32>
    %208 = arith.subf %206, %207 : vector<16x16xf32>
    %209 = arith.mulf %208, %198 : vector<16x16xf32>
    %cst_115 = arith.constant 0.254829586 : f32
    %210 = vector.broadcast %cst_115 : f32 to vector<16x16xf32>
    %211 = arith.addf %209, %210 : vector<16x16xf32>
    %212 = arith.mulf %211, %198 : vector<16x16xf32>
    %cst_116 = arith.constant 0.000000e+00 : f32
    %213 = vector.broadcast %cst_116 : f32 to vector<16x16xf32>
    %214 = arith.subf %213, %193 : vector<16x16xf32>
    %215 = arith.mulf %214, %193 : vector<16x16xf32>
    %216 = math.exp %215 : vector<16x16xf32>
    %217 = arith.mulf %212, %216 : vector<16x16xf32>
    %cst_117 = arith.constant 1.000000e+00 : f32
    %218 = vector.broadcast %cst_117 : f32 to vector<16x16xf32>
    %219 = arith.subf %218, %217 : vector<16x16xf32>
    %cst_118 = arith.constant 0.000000e+00 : f32
    %220 = vector.broadcast %cst_118 : f32 to vector<16x16xf32>
    %221 = arith.cmpf oge, %192, %220 : vector<16x16xf32>
    %cst_119 = arith.constant 0.000000e+00 : f32
    %222 = vector.broadcast %cst_119 : f32 to vector<16x16xf32>
    %223 = arith.subf %222, %219 : vector<16x16xf32>
    %224 = arith.select %221, %219, %223 : vector<16x16xi1>, vector<16x16xf32>
    %cst_120 = arith.constant 5.000000e-01 : f32
    %225 = vector.broadcast %cst_120 : f32 to vector<16x16xf32>
    %226 = arith.mulf %225, %190 : vector<16x16xf32>
    %cst_121 = arith.constant 1.000000e+00 : f32
    %227 = vector.broadcast %cst_121 : f32 to vector<16x16xf32>
    %228 = arith.addf %227, %224 : vector<16x16xf32>
    %229 = arith.mulf %226, %228 : vector<16x16xf32>
    %230 = arith.addf %229, %11 : vector<16x16xf32>
    %231 = arith.truncf %230 : vector<16x16xf32> to vector<16x16xbf16>
    %c2_122 = arith.constant 2 : index
    %c0_123 = arith.constant 0 : index
    %232 = vector.load %arg37[%c2_122, %c0_123] : memref<20x16xbf16, #tpu.memory_space<vmem>>, vector<16x16xbf16>
    tpu.vector_store %arg37[%c2_122, %c0_123], %231 {strides = array<i32>} : memref<20x16xbf16, #tpu.memory_space<vmem>>, vector<16x16xbf16>,
    %c0_124 = arith.constant 0 : index
    %c0_125 = arith.constant 0 : index
    %233 = vector.load %arg37[%c0_124, %c0_125] : memref<20x16xbf16, #tpu.memory_space<vmem>>, vector<16x16xbf16>
    %c1_126 = arith.constant 1 : index
    %c0_127 = arith.constant 0 : index
    %234 = vector.load %arg37[%c1_126, %c0_127] : memref<20x16xbf16, #tpu.memory_space<vmem>>, vector<16x16xbf16>
    %c2_128 = arith.constant 2 : index
    %c0_129 = arith.constant 0 : index
    %235 = vector.load %arg37[%c2_128, %c0_129] : memref<20x16xbf16, #tpu.memory_space<vmem>>, vector<16x16xbf16>
    %c3_130 = arith.constant 3 : index
    %c0_131 = arith.constant 0 : index
    %236 = vector.load %arg37[%c3_130, %c0_131] : memref<20x16xbf16, #tpu.memory_space<vmem>>, vector<16x16xbf16>
    %c4_132 = arith.constant 4 : index
    %c0_133 = arith.constant 0 : index
    %237 = vector.load %arg37[%c4_132, %c0_133] : memref<20x16xbf16, #tpu.memory_space<vmem>>, vector<16x16xbf16>
    %238 = tpu.concatenate %233, %234, %235, %236, %237 in 1 : vector<16x16xbf16>, vector<16x16xbf16>, vector<16x16xbf16>, vector<16x16xbf16>, vector<16x16xbf16> -> vector<16x80xbf16>
    %c0_134 = arith.constant 0 : index
    %c0_135 = arith.constant 0 : index
    %239 = vector.load %arg15[%c0_134, %c0_135] : memref<80x16xbf16, #tpu.memory_space<vmem>>, vector<80x16xbf16>
    %cst_136 = arith.constant dense<0.000000e+00> : vector<16x16xf32>
    %240 = tpu.matmul %238, %239, %cst_136 {dimension_numbers = #tpu.dot_dimension_numbers<[1], [0], [0], [1], [0, 0, 1, 1], [], []>} : vector<16x80xbf16>, vector<80x16xbf16>, vector<16x16xf32> -> vector<16x16xf32>
    %c0_137 = arith.constant 0 : index
    %c0_138 = arith.constant 0 : index
    %241 = vector.load %arg16[%c0_137, %c0_138] : memref<1x16xf32, #tpu.memory_space<vmem>>, vector<1x16xf32>
    %242 = vector.broadcast %241 : vector<1x16xf32> to vector<16x16xf32>
    %243 = arith.addf %240, %242 : vector<16x16xf32>
    %c0_139 = arith.constant 0 : index
    %c0_140 = arith.constant 0 : index
    %244 = vector.load %arg17[%c0_139, %c0_140] : memref<1x16xf32, #tpu.memory_space<vmem>>, vector<1x16xf32>
    %c0_141 = arith.constant 0 : index
    %c0_142 = arith.constant 0 : index
    %245 = vector.load %arg18[%c0_141, %c0_142] : memref<1x16xf32, #tpu.memory_space<vmem>>, vector<1x16xf32>
    %246 = vector.shape_cast %243 : vector<16x16xf32> to vector<1x16x16xf32>
    %cst_143 = arith.constant dense<0.000000e+00> : vector<1xf32>
    %247 = vector.multi_reduction <add>, %246, %cst_143 [1, 2] : vector<1x16x16xf32> to vector<1xf32>
    %248 = vector.shape_cast %247 : vector<1xf32> to vector<1x1x1xf32>
    %249 = vector.extract %248[0, 0, 0] : f32 from vector<1x1x1xf32>
    %250 = vector.broadcast %249 : f32 to vector<1x1xf32>
    %cst_144 = arith.constant 3.906250e-03 : f32
    %251 = vector.broadcast %cst_144 : f32 to vector<1x1xf32>
    %252 = arith.mulf %250, %251 : vector<1x1xf32>
    %253 = arith.mulf %243, %243 : vector<16x16xf32>
    %254 = vector.shape_cast %253 : vector<16x16xf32> to vector<1x16x16xf32>
    %cst_145 = arith.constant dense<0.000000e+00> : vector<1xf32>
    %255 = vector.multi_reduction <add>, %254, %cst_145 [1, 2] : vector<1x16x16xf32> to vector<1xf32>
    %256 = vector.shape_cast %255 : vector<1xf32> to vector<1x1x1xf32>
    %257 = vector.extract %256[0, 0, 0] : f32 from vector<1x1x1xf32>
    %258 = vector.broadcast %257 : f32 to vector<1x1xf32>
    %cst_146 = arith.constant 3.906250e-03 : f32
    %259 = vector.broadcast %cst_146 : f32 to vector<1x1xf32>
    %260 = arith.mulf %258, %259 : vector<1x1xf32>
    %261 = arith.mulf %252, %252 : vector<1x1xf32>
    %262 = arith.subf %260, %261 : vector<1x1xf32>
    %263 = vector.broadcast %252 : vector<1x1xf32> to vector<16x16xf32>
    %264 = arith.subf %243, %263 : vector<16x16xf32>
    %cst_147 = arith.constant 9.99999974E-6 : f32
    %265 = vector.broadcast %cst_147 : f32 to vector<1x1xf32>
    %266 = arith.addf %262, %265 : vector<1x1xf32>
    %267 = math.rsqrt %266 : vector<1x1xf32>
    %268 = vector.broadcast %267 : vector<1x1xf32> to vector<16x16xf32>
    %269 = arith.mulf %264, %268 : vector<16x16xf32>
    %270 = vector.broadcast %244 : vector<1x16xf32> to vector<16x16xf32>
    %271 = arith.mulf %269, %270 : vector<16x16xf32>
    %272 = vector.broadcast %245 : vector<1x16xf32> to vector<16x16xf32>
    %273 = arith.addf %271, %272 : vector<16x16xf32>
    %c0_148 = arith.constant 0 : index
    %c0_149 = arith.constant 0 : index
    %274 = vector.load %arg19[%c0_148, %c0_149] : memref<8x16xbf16, #tpu.memory_space<vmem>>, vector<8x16xbf16>
    %cst_150 = arith.constant dense<0.000000e+00> : vector<16x16xf32>
    %275 = tpu.matmul %6, %274, %cst_150 {dimension_numbers = #tpu.dot_dimension_numbers<[1], [0], [0], [1], [0, 0, 1, 1], [], []>} : vector<16x8xbf16>, vector<8x16xbf16>, vector<16x16xf32> -> vector<16x16xf32>
    %c0_151 = arith.constant 0 : index
    %c0_152 = arith.constant 0 : index
    %276 = vector.load %arg20[%c0_151, %c0_152] : memref<1x16xf32, #tpu.memory_space<vmem>>, vector<1x16xf32>
    %277 = vector.broadcast %276 : vector<1x16xf32> to vector<16x16xf32>
    %278 = arith.addf %275, %277 : vector<16x16xf32>
    %cst_153 = arith.constant 0.707106769 : f32
    %279 = vector.broadcast %cst_153 : f32 to vector<16x16xf32>
    %280 = arith.mulf %273, %279 : vector<16x16xf32>
    %281 = math.absf %280 : vector<16x16xf32>
    %cst_154 = arith.constant 0.327591091 : f32
    %282 = vector.broadcast %cst_154 : f32 to vector<16x16xf32>
    %283 = arith.mulf %282, %281 : vector<16x16xf32>
    %cst_155 = arith.constant 1.000000e+00 : f32
    %284 = vector.broadcast %cst_155 : f32 to vector<16x16xf32>
    %285 = arith.addf %284, %283 : vector<16x16xf32>
    %286 = tpu.reciprocal %285 {approx = true} : vector<16x16xf32> -> vector<16x16xf32>
    %cst_156 = arith.constant 1.06140542 : f32
    %287 = vector.broadcast %cst_156 : f32 to vector<16x16xf32>
    %288 = arith.mulf %287, %286 : vector<16x16xf32>
    %cst_157 = arith.constant 1.45315206 : f32
    %289 = vector.broadcast %cst_157 : f32 to vector<16x16xf32>
    %290 = arith.subf %288, %289 : vector<16x16xf32>
    %291 = arith.mulf %290, %286 : vector<16x16xf32>
    %cst_158 = arith.constant 1.42141378 : f32
    %292 = vector.broadcast %cst_158 : f32 to vector<16x16xf32>
    %293 = arith.addf %291, %292 : vector<16x16xf32>
    %294 = arith.mulf %293, %286 : vector<16x16xf32>
    %cst_159 = arith.constant 0.284496725 : f32
    %295 = vector.broadcast %cst_159 : f32 to vector<16x16xf32>
    %296 = arith.subf %294, %295 : vector<16x16xf32>
    %297 = arith.mulf %296, %286 : vector<16x16xf32>
    %cst_160 = arith.constant 0.254829586 : f32
    %298 = vector.broadcast %cst_160 : f32 to vector<16x16xf32>
    %299 = arith.addf %297, %298 : vector<16x16xf32>
    %300 = arith.mulf %299, %286 : vector<16x16xf32>
    %cst_161 = arith.constant 0.000000e+00 : f32
    %301 = vector.broadcast %cst_161 : f32 to vector<16x16xf32>
    %302 = arith.subf %301, %281 : vector<16x16xf32>
    %303 = arith.mulf %302, %281 : vector<16x16xf32>
    %304 = math.exp %303 : vector<16x16xf32>
    %305 = arith.mulf %300, %304 : vector<16x16xf32>
    %cst_162 = arith.constant 1.000000e+00 : f32
    %306 = vector.broadcast %cst_162 : f32 to vector<16x16xf32>
    %307 = arith.subf %306, %305 : vector<16x16xf32>
    %cst_163 = arith.constant 0.000000e+00 : f32
    %308 = vector.broadcast %cst_163 : f32 to vector<16x16xf32>
    %309 = arith.cmpf oge, %280, %308 : vector<16x16xf32>
    %cst_164 = arith.constant 0.000000e+00 : f32
    %310 = vector.broadcast %cst_164 : f32 to vector<16x16xf32>
    %311 = arith.subf %310, %307 : vector<16x16xf32>
    %312 = arith.select %309, %307, %311 : vector<16x16xi1>, vector<16x16xf32>
    %cst_165 = arith.constant 5.000000e-01 : f32
    %313 = vector.broadcast %cst_165 : f32 to vector<16x16xf32>
    %314 = arith.mulf %313, %273 : vector<16x16xf32>
    %cst_166 = arith.constant 1.000000e+00 : f32
    %315 = vector.broadcast %cst_166 : f32 to vector<16x16xf32>
    %316 = arith.addf %315, %312 : vector<16x16xf32>
    %317 = arith.mulf %314, %316 : vector<16x16xf32>
    %318 = arith.truncf %317 : vector<16x16xf32> to vector<16x16xbf16>
    %c2_167 = arith.constant 2 : index
    %c0_168 = arith.constant 0 : index
    %319 = vector.load %arg37[%c2_167, %c0_168] : memref<20x16xbf16, #tpu.memory_space<vmem>>, vector<16x16xbf16>
    tpu.vector_store %arg37[%c2_167, %c0_168], %318 {strides = array<i32>} : memref<20x16xbf16, #tpu.memory_space<vmem>>, vector<16x16xbf16>,
    %c0_169 = arith.constant 0 : index
    %c0_170 = arith.constant 0 : index
    %320 = vector.load %arg37[%c0_169, %c0_170] : memref<20x16xbf16, #tpu.memory_space<vmem>>, vector<16x16xbf16>
    %c1_171 = arith.constant 1 : index
    %c0_172 = arith.constant 0 : index
    %321 = vector.load %arg37[%c1_171, %c0_172] : memref<20x16xbf16, #tpu.memory_space<vmem>>, vector<16x16xbf16>
    %c2_173 = arith.constant 2 : index
    %c0_174 = arith.constant 0 : index
    %322 = vector.load %arg37[%c2_173, %c0_174] : memref<20x16xbf16, #tpu.memory_space<vmem>>, vector<16x16xbf16>
    %c3_175 = arith.constant 3 : index
    %c0_176 = arith.constant 0 : index
    %323 = vector.load %arg37[%c3_175, %c0_176] : memref<20x16xbf16, #tpu.memory_space<vmem>>, vector<16x16xbf16>
    %c4_177 = arith.constant 4 : index
    %c0_178 = arith.constant 0 : index
    %324 = vector.load %arg37[%c4_177, %c0_178] : memref<20x16xbf16, #tpu.memory_space<vmem>>, vector<16x16xbf16>
    %325 = tpu.concatenate %320, %321, %322, %323, %324 in 1 : vector<16x16xbf16>, vector<16x16xbf16>, vector<16x16xbf16>, vector<16x16xbf16>, vector<16x16xbf16> -> vector<16x80xbf16>
    %c0_179 = arith.constant 0 : index
    %c0_180 = arith.constant 0 : index
    %326 = vector.load %arg21[%c0_179, %c0_180] : memref<80x16xbf16, #tpu.memory_space<vmem>>, vector<80x16xbf16>
    %cst_181 = arith.constant dense<0.000000e+00> : vector<16x16xf32>
    %327 = tpu.matmul %325, %326, %cst_181 {dimension_numbers = #tpu.dot_dimension_numbers<[1], [0], [0], [1], [0, 0, 1, 1], [], []>} : vector<16x80xbf16>, vector<80x16xbf16>, vector<16x16xf32> -> vector<16x16xf32>
    %cst_182 = arith.constant 0.707106769 : f32
    %328 = vector.broadcast %cst_182 : f32 to vector<16x16xf32>
    %329 = arith.mulf %278, %328 : vector<16x16xf32>
    %330 = math.absf %329 : vector<16x16xf32>
    %cst_183 = arith.constant 0.327591091 : f32
    %331 = vector.broadcast %cst_183 : f32 to vector<16x16xf32>
    %332 = arith.mulf %331, %330 : vector<16x16xf32>
    %cst_184 = arith.constant 1.000000e+00 : f32
    %333 = vector.broadcast %cst_184 : f32 to vector<16x16xf32>
    %334 = arith.addf %333, %332 : vector<16x16xf32>
    %335 = tpu.reciprocal %334 {approx = true} : vector<16x16xf32> -> vector<16x16xf32>
    %cst_185 = arith.constant 1.06140542 : f32
    %336 = vector.broadcast %cst_185 : f32 to vector<16x16xf32>
    %337 = arith.mulf %336, %335 : vector<16x16xf32>
    %cst_186 = arith.constant 1.45315206 : f32
    %338 = vector.broadcast %cst_186 : f32 to vector<16x16xf32>
    %339 = arith.subf %337, %338 : vector<16x16xf32>
    %340 = arith.mulf %339, %335 : vector<16x16xf32>
    %cst_187 = arith.constant 1.42141378 : f32
    %341 = vector.broadcast %cst_187 : f32 to vector<16x16xf32>
    %342 = arith.addf %340, %341 : vector<16x16xf32>
    %343 = arith.mulf %342, %335 : vector<16x16xf32>
    %cst_188 = arith.constant 0.284496725 : f32
    %344 = vector.broadcast %cst_188 : f32 to vector<16x16xf32>
    %345 = arith.subf %343, %344 : vector<16x16xf32>
    %346 = arith.mulf %345, %335 : vector<16x16xf32>
    %cst_189 = arith.constant 0.254829586 : f32
    %347 = vector.broadcast %cst_189 : f32 to vector<16x16xf32>
    %348 = arith.addf %346, %347 : vector<16x16xf32>
    %349 = arith.mulf %348, %335 : vector<16x16xf32>
    %cst_190 = arith.constant 0.000000e+00 : f32
    %350 = vector.broadcast %cst_190 : f32 to vector<16x16xf32>
    %351 = arith.subf %350, %330 : vector<16x16xf32>
    %352 = arith.mulf %351, %330 : vector<16x16xf32>
    %353 = math.exp %352 : vector<16x16xf32>
    %354 = arith.mulf %349, %353 : vector<16x16xf32>
    %cst_191 = arith.constant 1.000000e+00 : f32
    %355 = vector.broadcast %cst_191 : f32 to vector<16x16xf32>
    %356 = arith.subf %355, %354 : vector<16x16xf32>
    %cst_192 = arith.constant 0.000000e+00 : f32
    %357 = vector.broadcast %cst_192 : f32 to vector<16x16xf32>
    %358 = arith.cmpf oge, %329, %357 : vector<16x16xf32>
    %cst_193 = arith.constant 0.000000e+00 : f32
    %359 = vector.broadcast %cst_193 : f32 to vector<16x16xf32>
    %360 = arith.subf %359, %356 : vector<16x16xf32>
    %361 = arith.select %358, %356, %360 : vector<16x16xi1>, vector<16x16xf32>
    %cst_194 = arith.constant 5.000000e-01 : f32
    %362 = vector.broadcast %cst_194 : f32 to vector<16x16xf32>
    %363 = arith.mulf %362, %278 : vector<16x16xf32>
    %cst_195 = arith.constant 1.000000e+00 : f32
    %364 = vector.broadcast %cst_195 : f32 to vector<16x16xf32>
    %365 = arith.addf %364, %361 : vector<16x16xf32>
    %366 = arith.mulf %363, %365 : vector<16x16xf32>
    %367 = arith.truncf %366 : vector<16x16xf32> to vector<16x16xbf16>
    %c2_196 = arith.constant 2 : index
    %c0_197 = arith.constant 0 : index
    %368 = vector.load %arg37[%c2_196, %c0_197] : memref<20x16xbf16, #tpu.memory_space<vmem>>, vector<16x16xbf16>
    tpu.vector_store %arg37[%c2_196, %c0_197], %367 {strides = array<i32>} : memref<20x16xbf16, #tpu.memory_space<vmem>>, vector<16x16xbf16>,
    %c0_198 = arith.constant 0 : index
    %c0_199 = arith.constant 0 : index
    %369 = vector.load %arg37[%c0_198, %c0_199] : memref<20x16xbf16, #tpu.memory_space<vmem>>, vector<16x16xbf16>
    %c1_200 = arith.constant 1 : index
    %c0_201 = arith.constant 0 : index
    %370 = vector.load %arg37[%c1_200, %c0_201] : memref<20x16xbf16, #tpu.memory_space<vmem>>, vector<16x16xbf16>
    %c2_202 = arith.constant 2 : index
    %c0_203 = arith.constant 0 : index
    %371 = vector.load %arg37[%c2_202, %c0_203] : memref<20x16xbf16, #tpu.memory_space<vmem>>, vector<16x16xbf16>
    %c3_204 = arith.constant 3 : index
    %c0_205 = arith.constant 0 : index
    %372 = vector.load %arg37[%c3_204, %c0_205] : memref<20x16xbf16, #tpu.memory_space<vmem>>, vector<16x16xbf16>
    %c4_206 = arith.constant 4 : index
    %c0_207 = arith.constant 0 : index
    %373 = vector.load %arg37[%c4_206, %c0_207] : memref<20x16xbf16, #tpu.memory_space<vmem>>, vector<16x16xbf16>
    %374 = tpu.concatenate %369, %370, %371, %372, %373 in 1 : vector<16x16xbf16>, vector<16x16xbf16>, vector<16x16xbf16>, vector<16x16xbf16>, vector<16x16xbf16> -> vector<16x80xbf16>
    %c0_208 = arith.constant 0 : index
    %c0_209 = arith.constant 0 : index
    %375 = vector.load %arg22[%c0_208, %c0_209] : memref<80x16xbf16, #tpu.memory_space<vmem>>, vector<80x16xbf16>
    %cst_210 = arith.constant dense<0.000000e+00> : vector<16x16xf32>
    %376 = tpu.matmul %374, %375, %cst_210 {dimension_numbers = #tpu.dot_dimension_numbers<[1], [0], [0], [1], [0, 0, 1, 1], [], []>} : vector<16x80xbf16>, vector<80x16xbf16>, vector<16x16xf32> -> vector<16x16xf32>
    %377 = arith.addf %327, %376 : vector<16x16xf32>
    %c0_211 = arith.constant 0 : index
    %c0_212 = arith.constant 0 : index
    %378 = vector.load %arg23[%c0_211, %c0_212] : memref<1x16xf32, #tpu.memory_space<vmem>>, vector<1x16xf32>
    %379 = vector.broadcast %378 : vector<1x16xf32> to vector<16x16xf32>
    %380 = arith.addf %377, %379 : vector<16x16xf32>
    %c0_213 = arith.constant 0 : index
    %c0_214 = arith.constant 0 : index
    %381 = vector.load %arg24[%c0_213, %c0_214] : memref<1x16xf32, #tpu.memory_space<vmem>>, vector<1x16xf32>
    %c0_215 = arith.constant 0 : index
    %c0_216 = arith.constant 0 : index
    %382 = vector.load %arg25[%c0_215, %c0_216] : memref<1x16xf32, #tpu.memory_space<vmem>>, vector<1x16xf32>
    %383 = vector.shape_cast %380 : vector<16x16xf32> to vector<1x16x16xf32>
    %cst_217 = arith.constant dense<0.000000e+00> : vector<1xf32>
    %384 = vector.multi_reduction <add>, %383, %cst_217 [1, 2] : vector<1x16x16xf32> to vector<1xf32>
    %385 = vector.shape_cast %384 : vector<1xf32> to vector<1x1x1xf32>
    %386 = vector.extract %385[0, 0, 0] : f32 from vector<1x1x1xf32>
    %387 = vector.broadcast %386 : f32 to vector<1x1xf32>
    %cst_218 = arith.constant 3.906250e-03 : f32
    %388 = vector.broadcast %cst_218 : f32 to vector<1x1xf32>
    %389 = arith.mulf %387, %388 : vector<1x1xf32>
    %390 = arith.mulf %380, %380 : vector<16x16xf32>
    %391 = vector.shape_cast %390 : vector<16x16xf32> to vector<1x16x16xf32>
    %cst_219 = arith.constant dense<0.000000e+00> : vector<1xf32>
    %392 = vector.multi_reduction <add>, %391, %cst_219 [1, 2] : vector<1x16x16xf32> to vector<1xf32>
    %393 = vector.shape_cast %392 : vector<1xf32> to vector<1x1x1xf32>
    %394 = vector.extract %393[0, 0, 0] : f32 from vector<1x1x1xf32>
    %395 = vector.broadcast %394 : f32 to vector<1x1xf32>
    %cst_220 = arith.constant 3.906250e-03 : f32
    %396 = vector.broadcast %cst_220 : f32 to vector<1x1xf32>
    %397 = arith.mulf %395, %396 : vector<1x1xf32>
    %398 = arith.mulf %389, %389 : vector<1x1xf32>
    %399 = arith.subf %397, %398 : vector<1x1xf32>
    %400 = vector.broadcast %389 : vector<1x1xf32> to vector<16x16xf32>
    %401 = arith.subf %380, %400 : vector<16x16xf32>
    %cst_221 = arith.constant 9.99999974E-6 : f32
    %402 = vector.broadcast %cst_221 : f32 to vector<1x1xf32>
    %403 = arith.addf %399, %402 : vector<1x1xf32>
    %404 = math.rsqrt %403 : vector<1x1xf32>
    %405 = vector.broadcast %404 : vector<1x1xf32> to vector<16x16xf32>
    %406 = arith.mulf %401, %405 : vector<16x16xf32>
    %407 = vector.broadcast %381 : vector<1x16xf32> to vector<16x16xf32>
    %408 = arith.mulf %406, %407 : vector<16x16xf32>
    %409 = vector.broadcast %382 : vector<1x16xf32> to vector<16x16xf32>
    %410 = arith.addf %408, %409 : vector<16x16xf32>
    %cst_222 = arith.constant 0.707106769 : f32
    %411 = vector.broadcast %cst_222 : f32 to vector<16x16xf32>
    %412 = arith.mulf %410, %411 : vector<16x16xf32>
    %413 = math.absf %412 : vector<16x16xf32>
    %cst_223 = arith.constant 0.327591091 : f32
    %414 = vector.broadcast %cst_223 : f32 to vector<16x16xf32>
    %415 = arith.mulf %414, %413 : vector<16x16xf32>
    %cst_224 = arith.constant 1.000000e+00 : f32
    %416 = vector.broadcast %cst_224 : f32 to vector<16x16xf32>
    %417 = arith.addf %416, %415 : vector<16x16xf32>
    %418 = tpu.reciprocal %417 {approx = true} : vector<16x16xf32> -> vector<16x16xf32>
    %cst_225 = arith.constant 1.06140542 : f32
    %419 = vector.broadcast %cst_225 : f32 to vector<16x16xf32>
    %420 = arith.mulf %419, %418 : vector<16x16xf32>
    %cst_226 = arith.constant 1.45315206 : f32
    %421 = vector.broadcast %cst_226 : f32 to vector<16x16xf32>
    %422 = arith.subf %420, %421 : vector<16x16xf32>
    %423 = arith.mulf %422, %418 : vector<16x16xf32>
    %cst_227 = arith.constant 1.42141378 : f32
    %424 = vector.broadcast %cst_227 : f32 to vector<16x16xf32>
    %425 = arith.addf %423, %424 : vector<16x16xf32>
    %426 = arith.mulf %425, %418 : vector<16x16xf32>
    %cst_228 = arith.constant 0.284496725 : f32
    %427 = vector.broadcast %cst_228 : f32 to vector<16x16xf32>
    %428 = arith.subf %426, %427 : vector<16x16xf32>
    %429 = arith.mulf %428, %418 : vector<16x16xf32>
    %cst_229 = arith.constant 0.254829586 : f32
    %430 = vector.broadcast %cst_229 : f32 to vector<16x16xf32>
    %431 = arith.addf %429, %430 : vector<16x16xf32>
    %432 = arith.mulf %431, %418 : vector<16x16xf32>
    %cst_230 = arith.constant 0.000000e+00 : f32
    %433 = vector.broadcast %cst_230 : f32 to vector<16x16xf32>
    %434 = arith.subf %433, %413 : vector<16x16xf32>
    %435 = arith.mulf %434, %413 : vector<16x16xf32>
    %436 = math.exp %435 : vector<16x16xf32>
    %437 = arith.mulf %432, %436 : vector<16x16xf32>
    %cst_231 = arith.constant 1.000000e+00 : f32
    %438 = vector.broadcast %cst_231 : f32 to vector<16x16xf32>
    %439 = arith.subf %438, %437 : vector<16x16xf32>
    %cst_232 = arith.constant 0.000000e+00 : f32
    %440 = vector.broadcast %cst_232 : f32 to vector<16x16xf32>
    %441 = arith.cmpf oge, %412, %440 : vector<16x16xf32>
    %cst_233 = arith.constant 0.000000e+00 : f32
    %442 = vector.broadcast %cst_233 : f32 to vector<16x16xf32>
    %443 = arith.subf %442, %439 : vector<16x16xf32>
    %444 = arith.select %441, %439, %443 : vector<16x16xi1>, vector<16x16xf32>
    %cst_234 = arith.constant 5.000000e-01 : f32
    %445 = vector.broadcast %cst_234 : f32 to vector<16x16xf32>
    %446 = arith.mulf %445, %410 : vector<16x16xf32>
    %cst_235 = arith.constant 1.000000e+00 : f32
    %447 = vector.broadcast %cst_235 : f32 to vector<16x16xf32>
    %448 = arith.addf %447, %444 : vector<16x16xf32>
    %449 = arith.mulf %446, %448 : vector<16x16xf32>
    %450 = arith.addf %449, %230 : vector<16x16xf32>
    %451 = arith.truncf %450 : vector<16x16xf32> to vector<16x16xbf16>
    %c0_236 = arith.constant 0 : index
    %c0_237 = arith.constant 0 : index
    %452 = vector.load %arg35[%c0_236, %c0_237] : memref<16x8xbf16, #tpu.memory_space<vmem>>, vector<16x8xbf16>
    %cst_238 = arith.constant dense<0.000000e+00> : vector<16x8xf32>
    %453 = tpu.matmul %451, %452, %cst_238 {dimension_numbers = #tpu.dot_dimension_numbers<[1], [0], [0], [1], [0, 0, 1, 1], [], []>} : vector<16x16xbf16>, vector<16x8xbf16>, vector<16x8xf32> -> vector<16x8xf32>
    %c2_239 = arith.constant 2 : index
    %c0_240 = arith.constant 0 : index
    %454 = vector.load %arg37[%c2_239, %c0_240] : memref<20x16xbf16, #tpu.memory_space<vmem>>, vector<16x16xbf16>
    tpu.vector_store %arg37[%c2_239, %c0_240], %451 {strides = array<i32>} : memref<20x16xbf16, #tpu.memory_space<vmem>>, vector<16x16xbf16>,
    %c0_241 = arith.constant 0 : index
    %c0_242 = arith.constant 0 : index
    %455 = vector.load %arg37[%c0_241, %c0_242] : memref<20x16xbf16, #tpu.memory_space<vmem>>, vector<16x16xbf16>
    %c1_243 = arith.constant 1 : index
    %c0_244 = arith.constant 0 : index
    %456 = vector.load %arg37[%c1_243, %c0_244] : memref<20x16xbf16, #tpu.memory_space<vmem>>, vector<16x16xbf16>
    %c2_245 = arith.constant 2 : index
    %c0_246 = arith.constant 0 : index
    %457 = vector.load %arg37[%c2_245, %c0_246] : memref<20x16xbf16, #tpu.memory_space<vmem>>, vector<16x16xbf16>
    %c3_247 = arith.constant 3 : index
    %c0_248 = arith.constant 0 : index
    %458 = vector.load %arg37[%c3_247, %c0_248] : memref<20x16xbf16, #tpu.memory_space<vmem>>, vector<16x16xbf16>
    %c4_249 = arith.constant 4 : index
    %c0_250 = arith.constant 0 : index
    %459 = vector.load %arg37[%c4_249, %c0_250] : memref<20x16xbf16, #tpu.memory_space<vmem>>, vector<16x16xbf16>
    %460 = tpu.concatenate %455, %456, %457, %458, %459 in 1 : vector<16x16xbf16>, vector<16x16xbf16>, vector<16x16xbf16>, vector<16x16xbf16>, vector<16x16xbf16> -> vector<16x80xbf16>
    %c0_251 = arith.constant 0 : index
    %c0_252 = arith.constant 0 : index
    %461 = vector.load %arg26[%c0_251, %c0_252] : memref<80x16xbf16, #tpu.memory_space<vmem>>, vector<80x16xbf16>
    %cst_253 = arith.constant dense<0.000000e+00> : vector<16x16xf32>
    %462 = tpu.matmul %460, %461, %cst_253 {dimension_numbers = #tpu.dot_dimension_numbers<[1], [0], [0], [1], [0, 0, 1, 1], [], []>} : vector<16x80xbf16>, vector<80x16xbf16>, vector<16x16xf32> -> vector<16x16xf32>
    %c0_254 = arith.constant 0 : index
    %c0_255 = arith.constant 0 : index
    %463 = vector.load %arg27[%c0_254, %c0_255] : memref<1x16xf32, #tpu.memory_space<vmem>>, vector<1x16xf32>
    %464 = vector.broadcast %463 : vector<1x16xf32> to vector<16x16xf32>
    %465 = arith.addf %462, %464 : vector<16x16xf32>
    %c0_256 = arith.constant 0 : index
    %c0_257 = arith.constant 0 : index
    %466 = vector.load %arg28[%c0_256, %c0_257] : memref<1x16xf32, #tpu.memory_space<vmem>>, vector<1x16xf32>
    %c0_258 = arith.constant 0 : index
    %c0_259 = arith.constant 0 : index
    %467 = vector.load %arg29[%c0_258, %c0_259] : memref<1x16xf32, #tpu.memory_space<vmem>>, vector<1x16xf32>
    %468 = vector.shape_cast %465 : vector<16x16xf32> to vector<1x16x16xf32>
    %cst_260 = arith.constant dense<0.000000e+00> : vector<1xf32>
    %469 = vector.multi_reduction <add>, %468, %cst_260 [1, 2] : vector<1x16x16xf32> to vector<1xf32>
    %470 = vector.shape_cast %469 : vector<1xf32> to vector<1x1x1xf32>
    %471 = vector.extract %470[0, 0, 0] : f32 from vector<1x1x1xf32>
    %472 = vector.broadcast %471 : f32 to vector<1x1xf32>
    %cst_261 = arith.constant 3.906250e-03 : f32
    %473 = vector.broadcast %cst_261 : f32 to vector<1x1xf32>
    %474 = arith.mulf %472, %473 : vector<1x1xf32>
    %475 = arith.mulf %465, %465 : vector<16x16xf32>
    %476 = vector.shape_cast %475 : vector<16x16xf32> to vector<1x16x16xf32>
    %cst_262 = arith.constant dense<0.000000e+00> : vector<1xf32>
    %477 = vector.multi_reduction <add>, %476, %cst_262 [1, 2] : vector<1x16x16xf32> to vector<1xf32>
    %478 = vector.shape_cast %477 : vector<1xf32> to vector<1x1x1xf32>
    %479 = vector.extract %478[0, 0, 0] : f32 from vector<1x1x1xf32>
    %480 = vector.broadcast %479 : f32 to vector<1x1xf32>
    %cst_263 = arith.constant 3.906250e-03 : f32
    %481 = vector.broadcast %cst_263 : f32 to vector<1x1xf32>
    %482 = arith.mulf %480, %481 : vector<1x1xf32>
    %483 = arith.mulf %474, %474 : vector<1x1xf32>
    %484 = arith.subf %482, %483 : vector<1x1xf32>
    %485 = vector.broadcast %474 : vector<1x1xf32> to vector<16x16xf32>
    %486 = arith.subf %465, %485 : vector<16x16xf32>
    %cst_264 = arith.constant 9.99999974E-6 : f32
    %487 = vector.broadcast %cst_264 : f32 to vector<1x1xf32>
    %488 = arith.addf %484, %487 : vector<1x1xf32>
    %489 = math.rsqrt %488 : vector<1x1xf32>
    %490 = vector.broadcast %489 : vector<1x1xf32> to vector<16x16xf32>
    %491 = arith.mulf %486, %490 : vector<16x16xf32>
    %492 = vector.broadcast %466 : vector<1x16xf32> to vector<16x16xf32>
    %493 = arith.mulf %491, %492 : vector<16x16xf32>
    %494 = vector.broadcast %467 : vector<1x16xf32> to vector<16x16xf32>
    %495 = arith.addf %493, %494 : vector<16x16xf32>
    %c0_265 = arith.constant 0 : index
    %c0_266 = arith.constant 0 : index
    %496 = vector.load %arg30[%c0_265, %c0_266] : memref<8x16xbf16, #tpu.memory_space<vmem>>, vector<8x16xbf16>
    %cst_267 = arith.constant dense<0.000000e+00> : vector<16x16xf32>
    %497 = tpu.matmul %6, %496, %cst_267 {dimension_numbers = #tpu.dot_dimension_numbers<[1], [0], [0], [1], [0, 0, 1, 1], [], []>} : vector<16x8xbf16>, vector<8x16xbf16>, vector<16x16xf32> -> vector<16x16xf32>
    %c0_268 = arith.constant 0 : index
    %c0_269 = arith.constant 0 : index
    %498 = vector.load %arg31[%c0_268, %c0_269] : memref<1x16xf32, #tpu.memory_space<vmem>>, vector<1x16xf32>
    %499 = vector.broadcast %498 : vector<1x16xf32> to vector<16x16xf32>
    %500 = arith.addf %497, %499 : vector<16x16xf32>
    %cst_270 = arith.constant 0.707106769 : f32
    %501 = vector.broadcast %cst_270 : f32 to vector<16x16xf32>
    %502 = arith.mulf %495, %501 : vector<16x16xf32>
    %503 = math.absf %502 : vector<16x16xf32>
    %cst_271 = arith.constant 0.327591091 : f32
    %504 = vector.broadcast %cst_271 : f32 to vector<16x16xf32>
    %505 = arith.mulf %504, %503 : vector<16x16xf32>
    %cst_272 = arith.constant 1.000000e+00 : f32
    %506 = vector.broadcast %cst_272 : f32 to vector<16x16xf32>
    %507 = arith.addf %506, %505 : vector<16x16xf32>
    %508 = tpu.reciprocal %507 {approx = true} : vector<16x16xf32> -> vector<16x16xf32>
    %cst_273 = arith.constant 1.06140542 : f32
    %509 = vector.broadcast %cst_273 : f32 to vector<16x16xf32>
    %510 = arith.mulf %509, %508 : vector<16x16xf32>
    %cst_274 = arith.constant 1.45315206 : f32
    %511 = vector.broadcast %cst_274 : f32 to vector<16x16xf32>
    %512 = arith.subf %510, %511 : vector<16x16xf32>
    %513 = arith.mulf %512, %508 : vector<16x16xf32>
    %cst_275 = arith.constant 1.42141378 : f32
    %514 = vector.broadcast %cst_275 : f32 to vector<16x16xf32>
    %515 = arith.addf %513, %514 : vector<16x16xf32>
    %516 = arith.mulf %515, %508 : vector<16x16xf32>
    %cst_276 = arith.constant 0.284496725 : f32
    %517 = vector.broadcast %cst_276 : f32 to vector<16x16xf32>
    %518 = arith.subf %516, %517 : vector<16x16xf32>
    %519 = arith.mulf %518, %508 : vector<16x16xf32>
    %cst_277 = arith.constant 0.254829586 : f32
    %520 = vector.broadcast %cst_277 : f32 to vector<16x16xf32>
    %521 = arith.addf %519, %520 : vector<16x16xf32>
    %522 = arith.mulf %521, %508 : vector<16x16xf32>
    %cst_278 = arith.constant 0.000000e+00 : f32
    %523 = vector.broadcast %cst_278 : f32 to vector<16x16xf32>
    %524 = arith.subf %523, %503 : vector<16x16xf32>
    %525 = arith.mulf %524, %503 : vector<16x16xf32>
    %526 = math.exp %525 : vector<16x16xf32>
    %527 = arith.mulf %522, %526 : vector<16x16xf32>
    %cst_279 = arith.constant 1.000000e+00 : f32
    %528 = vector.broadcast %cst_279 : f32 to vector<16x16xf32>
    %529 = arith.subf %528, %527 : vector<16x16xf32>
    %cst_280 = arith.constant 0.000000e+00 : f32
    %530 = vector.broadcast %cst_280 : f32 to vector<16x16xf32>
    %531 = arith.cmpf oge, %502, %530 : vector<16x16xf32>
    %cst_281 = arith.constant 0.000000e+00 : f32
    %532 = vector.broadcast %cst_281 : f32 to vector<16x16xf32>
    %533 = arith.subf %532, %529 : vector<16x16xf32>
    %534 = arith.select %531, %529, %533 : vector<16x16xi1>, vector<16x16xf32>
    %cst_282 = arith.constant 5.000000e-01 : f32
    %535 = vector.broadcast %cst_282 : f32 to vector<16x16xf32>
    %536 = arith.mulf %535, %495 : vector<16x16xf32>
    %cst_283 = arith.constant 1.000000e+00 : f32
    %537 = vector.broadcast %cst_283 : f32 to vector<16x16xf32>
    %538 = arith.addf %537, %534 : vector<16x16xf32>
    %539 = arith.mulf %536, %538 : vector<16x16xf32>
    %540 = arith.truncf %539 : vector<16x16xf32> to vector<16x16xbf16>
    %c2_284 = arith.constant 2 : index
    %c0_285 = arith.constant 0 : index
    %541 = vector.load %arg37[%c2_284, %c0_285] : memref<20x16xbf16, #tpu.memory_space<vmem>>, vector<16x16xbf16>
    tpu.vector_store %arg37[%c2_284, %c0_285], %540 {strides = array<i32>} : memref<20x16xbf16, #tpu.memory_space<vmem>>, vector<16x16xbf16>,
    %c0_286 = arith.constant 0 : index
    %c0_287 = arith.constant 0 : index
    %542 = vector.load %arg37[%c0_286, %c0_287] : memref<20x16xbf16, #tpu.memory_space<vmem>>, vector<16x16xbf16>
    %c1_288 = arith.constant 1 : index
    %c0_289 = arith.constant 0 : index
    %543 = vector.load %arg37[%c1_288, %c0_289] : memref<20x16xbf16, #tpu.memory_space<vmem>>, vector<16x16xbf16>
    %c2_290 = arith.constant 2 : index
    %c0_291 = arith.constant 0 : index
    %544 = vector.load %arg37[%c2_290, %c0_291] : memref<20x16xbf16, #tpu.memory_space<vmem>>, vector<16x16xbf16>
    %c3_292 = arith.constant 3 : index
    %c0_293 = arith.constant 0 : index
    %545 = vector.load %arg37[%c3_292, %c0_293] : memref<20x16xbf16, #tpu.memory_space<vmem>>, vector<16x16xbf16>
    %c4_294 = arith.constant 4 : index
    %c0_295 = arith.constant 0 : index
    %546 = vector.load %arg37[%c4_294, %c0_295] : memref<20x16xbf16, #tpu.memory_space<vmem>>, vector<16x16xbf16>
    %547 = tpu.concatenate %542, %543, %544, %545, %546 in 1 : vector<16x16xbf16>, vector<16x16xbf16>, vector<16x16xbf16>, vector<16x16xbf16>, vector<16x16xbf16> -> vector<16x80xbf16>
    %c0_296 = arith.constant 0 : index
    %c0_297 = arith.constant 0 : index
    %548 = vector.load %arg32[%c0_296, %c0_297] : memref<80x8xbf16, #tpu.memory_space<vmem>>, vector<80x8xbf16>
    %cst_298 = arith.constant dense<0.000000e+00> : vector<16x8xf32>
    %549 = tpu.matmul %547, %548, %cst_298 {dimension_numbers = #tpu.dot_dimension_numbers<[1], [0], [0], [1], [0, 0, 1, 1], [], []>} : vector<16x80xbf16>, vector<80x8xbf16>, vector<16x8xf32> -> vector<16x8xf32>
    %cst_299 = arith.constant 0.707106769 : f32
    %550 = vector.broadcast %cst_299 : f32 to vector<16x16xf32>
    %551 = arith.mulf %500, %550 : vector<16x16xf32>
    %552 = math.absf %551 : vector<16x16xf32>
    %cst_300 = arith.constant 0.327591091 : f32
    %553 = vector.broadcast %cst_300 : f32 to vector<16x16xf32>
    %554 = arith.mulf %553, %552 : vector<16x16xf32>
    %cst_301 = arith.constant 1.000000e+00 : f32
    %555 = vector.broadcast %cst_301 : f32 to vector<16x16xf32>
    %556 = arith.addf %555, %554 : vector<16x16xf32>
    %557 = tpu.reciprocal %556 {approx = true} : vector<16x16xf32> -> vector<16x16xf32>
    %cst_302 = arith.constant 1.06140542 : f32
    %558 = vector.broadcast %cst_302 : f32 to vector<16x16xf32>
    %559 = arith.mulf %558, %557 : vector<16x16xf32>
    %cst_303 = arith.constant 1.45315206 : f32
    %560 = vector.broadcast %cst_303 : f32 to vector<16x16xf32>
    %561 = arith.subf %559, %560 : vector<16x16xf32>
    %562 = arith.mulf %561, %557 : vector<16x16xf32>
    %cst_304 = arith.constant 1.42141378 : f32
    %563 = vector.broadcast %cst_304 : f32 to vector<16x16xf32>
    %564 = arith.addf %562, %563 : vector<16x16xf32>
    %565 = arith.mulf %564, %557 : vector<16x16xf32>
    %cst_305 = arith.constant 0.284496725 : f32
    %566 = vector.broadcast %cst_305 : f32 to vector<16x16xf32>
    %567 = arith.subf %565, %566 : vector<16x16xf32>
    %568 = arith.mulf %567, %557 : vector<16x16xf32>
    %cst_306 = arith.constant 0.254829586 : f32
    %569 = vector.broadcast %cst_306 : f32 to vector<16x16xf32>
    %570 = arith.addf %568, %569 : vector<16x16xf32>
    %571 = arith.mulf %570, %557 : vector<16x16xf32>
    %cst_307 = arith.constant 0.000000e+00 : f32
    %572 = vector.broadcast %cst_307 : f32 to vector<16x16xf32>
    %573 = arith.subf %572, %552 : vector<16x16xf32>
    %574 = arith.mulf %573, %552 : vector<16x16xf32>
    %575 = math.exp %574 : vector<16x16xf32>
    %576 = arith.mulf %571, %575 : vector<16x16xf32>
    %cst_308 = arith.constant 1.000000e+00 : f32
    %577 = vector.broadcast %cst_308 : f32 to vector<16x16xf32>
    %578 = arith.subf %577, %576 : vector<16x16xf32>
    %cst_309 = arith.constant 0.000000e+00 : f32
    %579 = vector.broadcast %cst_309 : f32 to vector<16x16xf32>
    %580 = arith.cmpf oge, %551, %579 : vector<16x16xf32>
    %cst_310 = arith.constant 0.000000e+00 : f32
    %581 = vector.broadcast %cst_310 : f32 to vector<16x16xf32>
    %582 = arith.subf %581, %578 : vector<16x16xf32>
    %583 = arith.select %580, %578, %582 : vector<16x16xi1>, vector<16x16xf32>
    %cst_311 = arith.constant 5.000000e-01 : f32
    %584 = vector.broadcast %cst_311 : f32 to vector<16x16xf32>
    %585 = arith.mulf %584, %500 : vector<16x16xf32>
    %cst_312 = arith.constant 1.000000e+00 : f32
    %586 = vector.broadcast %cst_312 : f32 to vector<16x16xf32>
    %587 = arith.addf %586, %583 : vector<16x16xf32>
    %588 = arith.mulf %585, %587 : vector<16x16xf32>
    %589 = arith.truncf %588 : vector<16x16xf32> to vector<16x16xbf16>
    %c2_313 = arith.constant 2 : index
    %c0_314 = arith.constant 0 : index
    %590 = vector.load %arg37[%c2_313, %c0_314] : memref<20x16xbf16, #tpu.memory_space<vmem>>, vector<16x16xbf16>
    tpu.vector_store %arg37[%c2_313, %c0_314], %589 {strides = array<i32>} : memref<20x16xbf16, #tpu.memory_space<vmem>>, vector<16x16xbf16>,
    %c0_315 = arith.constant 0 : index
    %c0_316 = arith.constant 0 : index
    %591 = vector.load %arg37[%c0_315, %c0_316] : memref<20x16xbf16, #tpu.memory_space<vmem>>, vector<16x16xbf16>
    %c1_317 = arith.constant 1 : index
    %c0_318 = arith.constant 0 : index
    %592 = vector.load %arg37[%c1_317, %c0_318] : memref<20x16xbf16, #tpu.memory_space<vmem>>, vector<16x16xbf16>
    %c2_319 = arith.constant 2 : index
    %c0_320 = arith.constant 0 : index
    %593 = vector.load %arg37[%c2_319, %c0_320] : memref<20x16xbf16, #tpu.memory_space<vmem>>, vector<16x16xbf16>
    %c3_321 = arith.constant 3 : index
    %c0_322 = arith.constant 0 : index
    %594 = vector.load %arg37[%c3_321, %c0_322] : memref<20x16xbf16, #tpu.memory_space<vmem>>, vector<16x16xbf16>
    %c4_323 = arith.constant 4 : index
    %c0_324 = arith.constant 0 : index
    %595 = vector.load %arg37[%c4_323, %c0_324] : memref<20x16xbf16, #tpu.memory_space<vmem>>, vector<16x16xbf16>
    %596 = tpu.concatenate %591, %592, %593, %594, %595 in 1 : vector<16x16xbf16>, vector<16x16xbf16>, vector<16x16xbf16>, vector<16x16xbf16>, vector<16x16xbf16> -> vector<16x80xbf16>
    %c0_325 = arith.constant 0 : index
    %c0_326 = arith.constant 0 : index
    %597 = vector.load %arg33[%c0_325, %c0_326] : memref<80x8xbf16, #tpu.memory_space<vmem>>, vector<80x8xbf16>
    %cst_327 = arith.constant dense<0.000000e+00> : vector<16x8xf32>
    %598 = tpu.matmul %596, %597, %cst_327 {dimension_numbers = #tpu.dot_dimension_numbers<[1], [0], [0], [1], [0, 0, 1, 1], [], []>} : vector<16x80xbf16>, vector<80x8xbf16>, vector<16x8xf32> -> vector<16x8xf32>
    %599 = arith.addf %549, %598 : vector<16x8xf32>
    %c0_328 = arith.constant 0 : index
    %c0_329 = arith.constant 0 : index
    %600 = vector.load %arg34[%c0_328, %c0_329] : memref<1x8xf32, #tpu.memory_space<vmem>>, vector<1x8xf32>
    %601 = vector.broadcast %600 : vector<1x8xf32> to vector<16x8xf32>
    %602 = arith.addf %599, %601 : vector<16x8xf32>
    %603 = arith.addf %602, %453 : vector<16x8xf32>
    %c0_330 = arith.constant 0 : index
    %c0_331 = arith.constant 0 : index
    %c0_332 = arith.constant 0 : index
    %604 = vector.load %arg36[%c0_330, %c0_331, %c0_332] : memref<1x16x8xf32, #tpu.memory_space<vmem>>, vector<1x16x8xf32>
    %605 = vector.shape_cast %604 : vector<1x16x8xf32> to vector<16x8xf32>
    %606 = vector.shape_cast %603 : vector<16x8xf32> to vector<1x16x8xf32>
    tpu.vector_store %arg36[%c0_330, %c0_331, %c0_332], %606 {strides = array<i32>} : memref<1x16x8xf32, #tpu.memory_space<vmem>>, vector<1x16x8xf32>,
    return
  }
  func.func @transform_0(%arg0: i32) -> (i32, i32, i32) {
    %c0_i32 = arith.constant 0 : i32
    %c0_i32_0 = arith.constant 0 : i32
    %c0_i32_1 = arith.constant 0 : i32
    return %arg0, %c0_i32, %c0_i32_0 : i32, i32, i32
  }
  func.func @transform_1(%arg0: i32) -> (i32, i32, i32) {
    %c0_i32 = arith.constant 0 : i32
    %c0_i32_0 = arith.constant 0 : i32
    %c0_i32_1 = arith.constant 0 : i32
    return %arg0, %c0_i32, %c0_i32_0 : i32, i32, i32
  }
  func.func @transform_2(%arg0: i32) -> (i32, i32) {
    %c0_i32 = arith.constant 0 : i32
    %c0_i32_0 = arith.constant 0 : i32
    %c0_i32_1 = arith.constant 0 : i32
    return %c0_i32, %c0_i32_0 : i32, i32
  }
  func.func @transform_3(%arg0: i32) -> (i32, i32) {
    %c0_i32 = arith.constant 0 : i32
    %c0_i32_0 = arith.constant 0 : i32
    %c0_i32_1 = arith.constant 0 : i32
    return %c0_i32, %c0_i32_0 : i32, i32
  }
  func.func @transform_4(%arg0: i32) -> (i32, i32) {
    %c0_i32 = arith.constant 0 : i32
    %c0_i32_0 = arith.constant 0 : i32
    %c0_i32_1 = arith.constant 0 : i32
    return %c0_i32, %c0_i32_0 : i32, i32
  }
  func.func @transform_5(%arg0: i32) -> (i32, i32) {
    %c0_i32 = arith.constant 0 : i32
    %c0_i32_0 = arith.constant 0 : i32
    %c0_i32_1 = arith.constant 0 : i32
    return %c0_i32, %c0_i32_0 : i32, i32
  }
  func.func @transform_6(%arg0: i32) -> (i32, i32) {
    %c0_i32 = arith.constant 0 : i32
    %c0_i32_0 = arith.constant 0 : i32
    %c0_i32_1 = arith.constant 0 : i32
    return %c0_i32, %c0_i32_0 : i32, i32
  }
  func.func @transform_7(%arg0: i32) -> (i32, i32) {
    %c0_i32 = arith.constant 0 : i32
    %c0_i32_0 = arith.constant 0 : i32
    %c0_i32_1 = arith.constant 0 : i32
    return %c0_i32, %c0_i32_0 : i32, i32
  }
  func.func @transform_8(%arg0: i32) -> (i32, i32) {
    %c0_i32 = arith.constant 0 : i32
    %c0_i32_0 = arith.constant 0 : i32
    %c0_i32_1 = arith.constant 0 : i32
    return %c0_i32, %c0_i32_0 : i32, i32
  }
  func.func @transform_9(%arg0: i32) -> (i32, i32) {
    %c0_i32 = arith.constant 0 : i32
    %c0_i32_0 = arith.constant 0 : i32
    %c0_i32_1 = arith.constant 0 : i32
    return %c0_i32, %c0_i32_0 : i32, i32
  }
  func.func @transform_10(%arg0: i32) -> (i32, i32) {
    %c0_i32 = arith.constant 0 : i32
    %c0_i32_0 = arith.constant 0 : i32
    %c0_i32_1 = arith.constant 0 : i32
    return %c0_i32, %c0_i32_0 : i32, i32
  }
  func.func @transform_11(%arg0: i32) -> (i32, i32) {
    %c0_i32 = arith.constant 0 : i32
    %c0_i32_0 = arith.constant 0 : i32
    %c0_i32_1 = arith.constant 0 : i32
    return %c0_i32, %c0_i32_0 : i32, i32
  }
  func.func @transform_12(%arg0: i32) -> (i32, i32) {
    %c0_i32 = arith.constant 0 : i32
    %c0_i32_0 = arith.constant 0 : i32
    %c0_i32_1 = arith.constant 0 : i32
    return %c0_i32, %c0_i32_0 : i32, i32
  }
  func.func @transform_13(%arg0: i32) -> (i32, i32) {
    %c0_i32 = arith.constant 0 : i32
    %c0_i32_0 = arith.constant 0 : i32
    %c0_i32_1 = arith.constant 0 : i32
    return %c0_i32, %c0_i32_0 : i32, i32
  }
  func.func @transform_14(%arg0: i32) -> (i32, i32) {
    %c0_i32 = arith.constant 0 : i32
    %c0_i32_0 = arith.constant 0 : i32
    %c0_i32_1 = arith.constant 0 : i32
    return %c0_i32, %c0_i32_0 : i32, i32
  }
  func.func @transform_15(%arg0: i32) -> (i32, i32) {
    %c0_i32 = arith.constant 0 : i32
    %c0_i32_0 = arith.constant 0 : i32
    %c0_i32_1 = arith.constant 0 : i32
    return %c0_i32, %c0_i32_0 : i32, i32
  }
  func.func @transform_16(%arg0: i32) -> (i32, i32) {
    %c0_i32 = arith.constant 0 : i32
    %c0_i32_0 = arith.constant 0 : i32
    %c0_i32_1 = arith.constant 0 : i32
    return %c0_i32, %c0_i32_0 : i32, i32
  }
  func.func @transform_17(%arg0: i32) -> (i32, i32) {
    %c0_i32 = arith.constant 0 : i32
    %c0_i32_0 = arith.constant 0 : i32
    %c0_i32_1 = arith.constant 0 : i32
    return %c0_i32, %c0_i32_0 : i32, i32
  }
  func.func @transform_18(%arg0: i32) -> (i32, i32) {
    %c0_i32 = arith.constant 0 : i32
    %c0_i32_0 = arith.constant 0 : i32
    %c0_i32_1 = arith.constant 0 : i32
    return %c0_i32, %c0_i32_0 : i32, i32
  }
  func.func @transform_19(%arg0: i32) -> (i32, i32) {
    %c0_i32 = arith.constant 0 : i32
    %c0_i32_0 = arith.constant 0 : i32
    %c0_i32_1 = arith.constant 0 : i32
    return %c0_i32, %c0_i32_0 : i32, i32
  }
  func.func @transform_20(%arg0: i32) -> (i32, i32) {
    %c0_i32 = arith.constant 0 : i32
    %c0_i32_0 = arith.constant 0 : i32
    %c0_i32_1 = arith.constant 0 : i32
    return %c0_i32, %c0_i32_0 : i32, i32
  }
  func.func @transform_21(%arg0: i32) -> (i32, i32) {
    %c0_i32 = arith.constant 0 : i32
    %c0_i32_0 = arith.constant 0 : i32
    %c0_i32_1 = arith.constant 0 : i32
    return %c0_i32, %c0_i32_0 : i32, i32
  }
  func.func @transform_22(%arg0: i32) -> (i32, i32) {
    %c0_i32 = arith.constant 0 : i32
    %c0_i32_0 = arith.constant 0 : i32
    %c0_i32_1 = arith.constant 0 : i32
    return %c0_i32, %c0_i32_0 : i32, i32
  }
  func.func @transform_23(%arg0: i32) -> (i32, i32) {
    %c0_i32 = arith.constant 0 : i32
    %c0_i32_0 = arith.constant 0 : i32
    %c0_i32_1 = arith.constant 0 : i32
    return %c0_i32, %c0_i32_0 : i32, i32
  }
  func.func @transform_24(%arg0: i32) -> (i32, i32) {
    %c0_i32 = arith.constant 0 : i32
    %c0_i32_0 = arith.constant 0 : i32
    %c0_i32_1 = arith.constant 0 : i32
    return %c0_i32, %c0_i32_0 : i32, i32
  }
  func.func @transform_25(%arg0: i32) -> (i32, i32) {
    %c0_i32 = arith.constant 0 : i32
    %c0_i32_0 = arith.constant 0 : i32
    %c0_i32_1 = arith.constant 0 : i32
    return %c0_i32, %c0_i32_0 : i32, i32
  }
  func.func @transform_26(%arg0: i32) -> (i32, i32) {
    %c0_i32 = arith.constant 0 : i32
    %c0_i32_0 = arith.constant 0 : i32
    %c0_i32_1 = arith.constant 0 : i32
    return %c0_i32, %c0_i32_0 : i32, i32
  }
  func.func @transform_27(%arg0: i32) -> (i32, i32) {
    %c0_i32 = arith.constant 0 : i32
    %c0_i32_0 = arith.constant 0 : i32
    %c0_i32_1 = arith.constant 0 : i32
    return %c0_i32, %c0_i32_0 : i32, i32
  }
  func.func @transform_28(%arg0: i32) -> (i32, i32) {
    %c0_i32 = arith.constant 0 : i32
    %c0_i32_0 = arith.constant 0 : i32
    %c0_i32_1 = arith.constant 0 : i32
    return %c0_i32, %c0_i32_0 : i32, i32
  }
  func.func @transform_29(%arg0: i32) -> (i32, i32) {
    %c0_i32 = arith.constant 0 : i32
    %c0_i32_0 = arith.constant 0 : i32
    %c0_i32_1 = arith.constant 0 : i32
    return %c0_i32, %c0_i32_0 : i32, i32
  }
  func.func @transform_30(%arg0: i32) -> (i32, i32) {
    %c0_i32 = arith.constant 0 : i32
    %c0_i32_0 = arith.constant 0 : i32
    %c0_i32_1 = arith.constant 0 : i32
    return %c0_i32, %c0_i32_0 : i32, i32
  }
  func.func @transform_31(%arg0: i32) -> (i32, i32) {
    %c0_i32 = arith.constant 0 : i32
    %c0_i32_0 = arith.constant 0 : i32
    %c0_i32_1 = arith.constant 0 : i32
    return %c0_i32, %c0_i32_0 : i32, i32
  }
  func.func @transform_32(%arg0: i32) -> (i32, i32) {
    %c0_i32 = arith.constant 0 : i32
    %c0_i32_0 = arith.constant 0 : i32
    %c0_i32_1 = arith.constant 0 : i32
    return %c0_i32, %c0_i32_0 : i32, i32
  }
  func.func @transform_33(%arg0: i32) -> (i32, i32) {
    %c0_i32 = arith.constant 0 : i32
    %c0_i32_0 = arith.constant 0 : i32
    %c0_i32_1 = arith.constant 0 : i32
    return %c0_i32, %c0_i32_0 : i32, i32
  }
  func.func @transform_34(%arg0: i32) -> (i32, i32) {
    %c0_i32 = arith.constant 0 : i32
    %c0_i32_0 = arith.constant 0 : i32
    %c0_i32_1 = arith.constant 0 : i32
    return %c0_i32, %c0_i32_0 : i32, i32
  }
  func.func @transform_35(%arg0: i32) -> (i32, i32, i32) {
    %c0_i32 = arith.constant 0 : i32
    %c0_i32_0 = arith.constant 0 : i32
    %c0_i32_1 = arith.constant 0 : i32
    return %arg0, %c0_i32, %c0_i32_0 : i32, i32, i32
  }
}

</mosaic_0001>

<llo_original>
// kernel: up_block_forward.1
$region0: #{up_block_forward.1}
  #allocation0 [shape = 'u32[]', space=smem, size = 0x4, offset = 0x4, fixed_abs, tag = 'smem constant byte address 0x4 - core index']
  #allocation1 [shape = 'u32[144,128]{1,0:T(1,128)}', space=vmem, size = 0x12000, scoped, tag = 'internal scratch']
  #allocation2 [shape = 'bf16[20,16]{1,0:T(8,128)(2,1)}', space=vmem, size = 0x1800, scoped, tag = 'scratch operand']
  %s0 = inlined_call_operand.smem [shape: u32[36], index: -1, kind: input, shape index: {}]
  %s1 = sld [smem:[%s0]]
  %s2 = scalar_lea.smem %s0, 1
  %s3 = sld [smem:[%s2]]
  %s4 = scalar_lea.smem %s0, 2
  %s5 = sld [smem:[%s4]]
  %s6 = scalar_lea.smem %s0, 3
  %s7 = sld [smem:[%s6]]
  %s8 = scalar_lea.smem %s0, 4
  %s9 = sld [smem:[%s8]]
  %s10 = scalar_lea.smem %s0, 5
  %s11 = sld [smem:[%s10]]
  %s12 = scalar_lea.smem %s0, 6
  %s13 = sld [smem:[%s12]]
  %s14 = scalar_lea.smem %s0, 7
  %s15 = sld [smem:[%s14]]
  %s16 = scalar_lea.smem %s0, 8
  %s17 = sld [smem:[%s16]]
  %s18 = scalar_lea.smem %s0, 9
  %s19 = sld [smem:[%s18]]
  %s20 = scalar_lea.smem %s0, 10
  %s21 = sld [smem:[%s20]]
  %s22 = scalar_lea.smem %s0, 11
  %s23 = sld [smem:[%s22]]
  %s24 = scalar_lea.smem %s0, 12
  %s25 = sld [smem:[%s24]]
  %s26 = scalar_lea.smem %s0, 13
  %s27 = sld [smem:[%s26]]
  %s28 = scalar_lea.smem %s0, 14
  %s29 = sld [smem:[%s28]]
  %s30 = scalar_lea.smem %s0, 15
  %s31 = sld [smem:[%s30]]
  %s32 = scalar_lea.smem %s0, 16
  %s33 = sld [smem:[%s32]]
  %s34 = scalar_lea.smem %s0, 17
  %s35 = sld [smem:[%s34]]
  %s36 = scalar_lea.smem %s0, 18
  %s37 = sld [smem:[%s36]]
  %s38 = scalar_lea.smem %s0, 19
  %s39 = sld [smem:[%s38]]
  %s40 = scalar_lea.smem %s0, 20
  %s41 = sld [smem:[%s40]]
  %s42 = scalar_lea.smem %s0, 21
  %s43 = sld [smem:[%s42]]
  %s44 = scalar_lea.smem %s0, 22
  %s45 = sld [smem:[%s44]]
  %s46 = scalar_lea.smem %s0, 23
  %s47 = sld [smem:[%s46]]
  %s48 = scalar_lea.smem %s0, 24
  %s49 = sld [smem:[%s48]]
  %s50 = scalar_lea.smem %s0, 25
  %s51 = sld [smem:[%s50]]
  %s52 = scalar_lea.smem %s0, 26
  %s53 = sld [smem:[%s52]]
  %s54 = scalar_lea.smem %s0, 27
  %s55 = sld [smem:[%s54]]
  %s56 = scalar_lea.smem %s0, 28
  %s57 = sld [smem:[%s56]]
  %s58 = scalar_lea.smem %s0, 29
  %s59 = sld [smem:[%s58]]
  %s60 = scalar_lea.smem %s0, 30
  %s61 = sld [smem:[%s60]]
  %s62 = scalar_lea.smem %s0, 31
  %s63 = sld [smem:[%s62]]
  %s64 = scalar_lea.smem %s0, 32
  %s65 = sld [smem:[%s64]]
  %s66 = scalar_lea.smem %s0, 33
  %s67 = sld [smem:[%s66]]
  %s68 = scalar_lea.smem %s0, 34
  %s69 = sld [smem:[%s68]]
  %s70 = scalar_lea.smem %s0, 35
  %s71 = sld [smem:[%s70]]
  %s72 = sld [smem:[#allocation0]]
  $region173: #{up_block_forward.1} parent=0
    _
  %s74 = ssub.s32 1, %s72
  %s75 = scalar_select 0, %s74, %s72
  loop: start=0, step=1, limit=4
  $region2: #{up_block_forward.1} parent=0 // loop_pre_header
    _
  $region3: #{up_block_forward.1} parent=0 // loop_header
    %s77 = sphi 0, %s81
    %p78 = scmp.ge.s32.totalorder %s77, 4
    %s87 = sphi 0, %s89
    %s90 = sphi 0, %s87
    %s91 = sphi 0, %s90
    %s107 = sphi 0, %s91
    %s113 = sphi 0, %s115
    %s116 = sphi 0, %s113
    %s117 = sphi 0, %s116
    %s133 = sphi 0, %s117
    %s137 = sphi 0, %s137
    %s139 = sphi 0, %s137
    %s140 = sphi 0, %s139
    %s154 = sphi 0, %s140
    %s158 = sphi 0, %s158
    %s160 = sphi 0, %s158
    %s161 = sphi 0, %s160
    %s175 = sphi 0, %s161
    %s179 = sphi 0, %s179
    %s181 = sphi 0, %s179
    %s182 = sphi 0, %s181
    %s196 = sphi 0, %s182
    %s200 = sphi 0, %s200
    %s202 = sphi 0, %s200
    %s203 = sphi 0, %s202
    %s217 = sphi 0, %s203
    %s221 = sphi 0, %s221
    %s223 = sphi 0, %s221
    %s224 = sphi 0, %s223
    %s238 = sphi 0, %s224
    %s242 = sphi 0, %s242
    %s244 = sphi 0, %s242
    %s245 = sphi 0, %s244
    %s259 = sphi 0, %s245
    %s263 = sphi 0, %s263
    %s265 = sphi 0, %s263
    %s266 = sphi 0, %s265
    %s280 = sphi 0, %s266
    %s284 = sphi 0, %s284
    %s286 = sphi 0, %s284
    %s287 = sphi 0, %s286
    %s301 = sphi 0, %s287
    %s305 = sphi 0, %s305
    %s307 = sphi 0, %s305
    %s308 = sphi 0, %s307
    %s322 = sphi 0, %s308
    %s326 = sphi 0, %s326
    %s328 = sphi 0, %s326
    %s329 = sphi 0, %s328
    %s343 = sphi 0, %s329
    %s347 = sphi 0, %s347
    %s349 = sphi 0, %s347
    %s350 = sphi 0, %s349
    %s364 = sphi 0, %s350
    %s368 = sphi 0, %s368
    %s370 = sphi 0, %s368
    %s371 = sphi 0, %s370
    %s385 = sphi 0, %s371
    %s389 = sphi 0, %s389
    %s391 = sphi 0, %s389
    %s392 = sphi 0, %s391
    %s406 = sphi 0, %s392
    %s410 = sphi 0, %s410
    %s412 = sphi 0, %s410
    %s413 = sphi 0, %s412
    %s427 = sphi 0, %s413
    %s431 = sphi 0, %s431
    %s433 = sphi 0, %s431
    %s434 = sphi 0, %s433
    %s448 = sphi 0, %s434
    %s452 = sphi 0, %s452
    %s454 = sphi 0, %s452
    %s455 = sphi 0, %s454
    %s469 = sphi 0, %s455
    %s473 = sphi 0, %s473
    %s475 = sphi 0, %s473
    %s476 = sphi 0, %s475
    %s490 = sphi 0, %s476
    %s494 = sphi 0, %s494
    %s496 = sphi 0, %s494
    %s497 = sphi 0, %s496
    %s511 = sphi 0, %s497
    %s515 = sphi 0, %s515
    %s517 = sphi 0, %s515
    %s518 = sphi 0, %s517
    %s532 = sphi 0, %s518
    %s536 = sphi 0, %s536
    %s538 = sphi 0, %s536
    %s539 = sphi 0, %s538
    %s553 = sphi 0, %s539
    %s557 = sphi 0, %s557
    %s559 = sphi 0, %s557
    %s560 = sphi 0, %s559
    %s574 = sphi 0, %s560
    %s578 = sphi 0, %s578
    %s580 = sphi 0, %s578
    %s581 = sphi 0, %s580
    %s595 = sphi 0, %s581
    %s599 = sphi 0, %s599
    %s601 = sphi 0, %s599
    %s602 = sphi 0, %s601
    %s616 = sphi 0, %s602
    %s620 = sphi 0, %s620
    %s622 = sphi 0, %s620
    %s623 = sphi 0, %s622
    %s637 = sphi 0, %s623
    %s641 = sphi 0, %s641
    %s643 = sphi 0, %s641
    %s644 = sphi 0, %s643
    %s658 = sphi 0, %s644
    %s662 = sphi 0, %s662
    %s664 = sphi 0, %s662
    %s665 = sphi 0, %s664
    %s679 = sphi 0, %s665
    %s683 = sphi 0, %s683
    %s685 = sphi 0, %s683
    %s686 = sphi 0, %s685
    %s700 = sphi 0, %s686
    %s704 = sphi 0, %s704
    %s706 = sphi 0, %s704
    %s707 = sphi 0, %s706
    %s721 = sphi 0, %s707
    %s725 = sphi 0, %s725
    %s727 = sphi 0, %s725
    %s728 = sphi 0, %s727
    %s742 = sphi 0, %s728
    %s746 = sphi 0, %s746
    %s748 = sphi 0, %s746
    %s749 = sphi 0, %s748
    %s763 = sphi 0, %s749
    %s767 = sphi 0, %s767
    %s769 = sphi 0, %s767
    %s770 = sphi 0, %s769
    %s784 = sphi 0, %s770
    %s788 = sphi 0, %s788
    %s790 = sphi 0, %s788
    %s791 = sphi 0, %s790
    %s805 = sphi 0, %s791
    %s809 = sphi 0, %s809
    %s811 = sphi 0, %s809
    %s812 = sphi 0, %s811
    %s826 = sphi 0, %s812
    %s832 = sphi 0, %s834
    %s835 = sphi 0, %s832
    %s836 = sphi 0, %s835
    %s852 = sphi 0, %s836
  $region4: #{up_block_forward.1} parent=0 // loop_header_branch
    %80 = sbr.rel (%p78) target = $region8
  $region5: #{up_block_forward.1} parent=0 // loop_body
    %s82 = ssub.s32 %s77, 1
    %s83 = ssub.s32 %s77, 2
    %s84 = sadd.s32 %s77, 1
    %s85 = ssub.s32 %s77, %s84
    %p86 = scmp.eq.s32.totalorder %s85, 0
    %s88 = sadd.s32 %s87, 1
    %s89 = scalar_select %p86, %s87, %s88
    %p92 = pneg %p86
    %p93 = scmp.eq.s32.totalorder %s77, 1
    %p94 = por %p92, %p93
    %p95 = scmp.ne.s32.totalorder %s87, %s90
    %p96 = scmp.eq.s32.totalorder %s77, 0
    %p97 = por %p95, %p96
    %p98 = scmp.ne.s32.totalorder %s87, %s90
    %p99 = scmp.eq.s32.totalorder %s82, 1
    %p100 = por %p98, %p99
    %p101 = scmp.ne.s32.totalorder %s90, %s91
    %p102 = scmp.eq.s32.totalorder %s82, 0
    %p103 = por %p101, %p102
    %p104 = scmp.ne.s32.totalorder %s90, %s91
    %p105 = scmp.eq.s32.totalorder %s83, 1
    %p106 = por %p104, %p105
    %p108 = scmp.ne.s32.totalorder %s91, %s107
    %p109 = scmp.eq.s32.totalorder %s83, 0
    %p110 = por %p108, %p109
    %s111 = ssub.s32 %s77, %s84
    %p112 = scmp.eq.s32.totalorder %s111, 0
    %s114 = sadd.s32 %s113, 1
    %s115 = scalar_select %p112, %s113, %s114
    %p118 = pneg %p112
    %p119 = scmp.eq.s32.totalorder %s77, 1
    %p120 = por %p118, %p119
    %p121 = scmp.ne.s32.totalorder %s113, %s116
    %p122 = scmp.eq.s32.totalorder %s77, 0
    %p123 = por %p121, %p122
    %p124 = scmp.ne.s32.totalorder %s113, %s116
    %p125 = scmp.eq.s32.totalorder %s82, 1
    %p126 = por %p124, %p125
    %p127 = scmp.ne.s32.totalorder %s116, %s117
    %p128 = scmp.eq.s32.totalorder %s82, 0
    %p129 = por %p127, %p128
    %p130 = scmp.ne.s32.totalorder %s116, %s117
    %p131 = scmp.eq.s32.totalorder %s83, 1
    %p132 = por %p130, %p131
    %p134 = scmp.ne.s32.totalorder %s117, %s133
    %p135 = scmp.eq.s32.totalorder %s83, 0
    %p136 = por %p134, %p135
    %s138 = sadd.s32 %s137, 1
    %p141 = scmp.eq.s32.totalorder %s77, 1
    %p142 = scmp.ne.s32.totalorder %s137, %s139
    %p143 = scmp.eq.s32.totalorder %s77, 0
    %p144 = por %p142, %p143
    %p145 = scmp.ne.s32.totalorder %s137, %s139
    %p146 = scmp.eq.s32.totalorder %s82, 1
    %p147 = por %p145, %p146
    %p148 = scmp.ne.s32.totalorder %s139, %s140
    %p149 = scmp.eq.s32.totalorder %s82, 0
    %p150 = por %p148, %p149
    %p151 = scmp.ne.s32.totalorder %s139, %s140
    %p152 = scmp.eq.s32.totalorder %s83, 1
    %p153 = por %p151, %p152
    %p155 = scmp.ne.s32.totalorder %s140, %s154
    %p156 = scmp.eq.s32.totalorder %s83, 0
    %p157 = por %p155, %p156
    %s159 = sadd.s32 %s158, 1
    %p162 = scmp.eq.s32.totalorder %s77, 1
    %p163 = scmp.ne.s32.totalorder %s158, %s160
    %p164 = scmp.eq.s32.totalorder %s77, 0
    %p165 = por %p163, %p164
    %p166 = scmp.ne.s32.totalorder %s158, %s160
    %p167 = scmp.eq.s32.totalorder %s82, 1
    %p168 = por %p166, %p167
    %p169 = scmp.ne.s32.totalorder %s160, %s161
    %p170 = scmp.eq.s32.totalorder %s82, 0
    %p171 = por %p169, %p170
    %p172 = scmp.ne.s32.totalorder %s160, %s161
    %p173 = scmp.eq.s32.totalorder %s83, 1
    %p174 = por %p172, %p173
    %p176 = scmp.ne.s32.totalorder %s161, %s175
    %p177 = scmp.eq.s32.totalorder %s83, 0
    %p178 = por %p176, %p177
    %s180 = sadd.s32 %s179, 1
    %p183 = scmp.eq.s32.totalorder %s77, 1
    %p184 = scmp.ne.s32.totalorder %s179, %s181
    %p185 = scmp.eq.s32.totalorder %s77, 0
    %p186 = por %p184, %p185
    %p187 = scmp.ne.s32.totalorder %s179, %s181
    %p188 = scmp.eq.s32.totalorder %s82, 1
    %p189 = por %p187, %p188
    %p190 = scmp.ne.s32.totalorder %s181, %s182
    %p191 = scmp.eq.s32.totalorder %s82, 0
    %p192 = por %p190, %p191
    %p193 = scmp.ne.s32.totalorder %s181, %s182
    %p194 = scmp.eq.s32.totalorder %s83, 1
    %p195 = por %p193, %p194
    %p197 = scmp.ne.s32.totalorder %s182, %s196
    %p198 = scmp.eq.s32.totalorder %s83, 0
    %p199 = por %p197, %p198
    %s201 = sadd.s32 %s200, 1
    %p204 = scmp.eq.s32.totalorder %s77, 1
    %p205 = scmp.ne.s32.totalorder %s200, %s202
    %p206 = scmp.eq.s32.totalorder %s77, 0
    %p207 = por %p205, %p206
    %p208 = scmp.ne.s32.totalorder %s200, %s202
    %p209 = scmp.eq.s32.totalorder %s82, 1
    %p210 = por %p208, %p209
    %p211 = scmp.ne.s32.totalorder %s202, %s203
    %p212 = scmp.eq.s32.totalorder %s82, 0
    %p213 = por %p211, %p212
    %p214 = scmp.ne.s32.totalorder %s202, %s203
    %p215 = scmp.eq.s32.totalorder %s83, 1
    %p216 = por %p214, %p215
    %p218 = scmp.ne.s32.totalorder %s203, %s217
    %p219 = scmp.eq.s32.totalorder %s83, 0
    %p220 = por %p218, %p219
    %s222 = sadd.s32 %s221, 1
    %p225 = scmp.eq.s32.totalorder %s77, 1
    %p226 = scmp.ne.s32.totalorder %s221, %s223
    %p227 = scmp.eq.s32.totalorder %s77, 0
    %p228 = por %p226, %p227
    %p229 = scmp.ne.s32.totalorder %s221, %s223
    %p230 = scmp.eq.s32.totalorder %s82, 1
    %p231 = por %p229, %p230
    %p232 = scmp.ne.s32.totalorder %s223, %s224
    %p233 = scmp.eq.s32.totalorder %s82, 0
    %p234 = por %p232, %p233
    %p235 = scmp.ne.s32.totalorder %s223, %s224
    %p236 = scmp.eq.s32.totalorder %s83, 1
    %p237 = por %p235, %p236
    %p239 = scmp.ne.s32.totalorder %s224, %s238
    %p240 = scmp.eq.s32.totalorder %s83, 0
    %p241 = por %p239, %p240
    %s243 = sadd.s32 %s242, 1
    %p246 = scmp.eq.s32.totalorder %s77, 1
    %p247 = scmp.ne.s32.totalorder %s242, %s244
    %p248 = scmp.eq.s32.totalorder %s77, 0
    %p249 = por %p247, %p248
    %p250 = scmp.ne.s32.totalorder %s242, %s244
    %p251 = scmp.eq.s32.totalorder %s82, 1
    %p252 = por %p250, %p251
    %p253 = scmp.ne.s32.totalorder %s244, %s245
    %p254 = scmp.eq.s32.totalorder %s82, 0
    %p255 = por %p253, %p254
    %p256 = scmp.ne.s32.totalorder %s244, %s245
    %p257 = scmp.eq.s32.totalorder %s83, 1
    %p258 = por %p256, %p257
    %p260 = scmp.ne.s32.totalorder %s245, %s259
    %p261 = scmp.eq.s32.totalorder %s83, 0
    %p262 = por %p260, %p261
    %s264 = sadd.s32 %s263, 1
    %p267 = scmp.eq.s32.totalorder %s77, 1
    %p268 = scmp.ne.s32.totalorder %s263, %s265
    %p269 = scmp.eq.s32.totalorder %s77, 0
    %p270 = por %p268, %p269
    %p271 = scmp.ne.s32.totalorder %s263, %s265
    %p272 = scmp.eq.s32.totalorder %s82, 1
    %p273 = por %p271, %p272
    %p274 = scmp.ne.s32.totalorder %s265, %s266
    %p275 = scmp.eq.s32.totalorder %s82, 0
    %p276 = por %p274, %p275
    %p277 = scmp.ne.s32.totalorder %s265, %s266
    %p278 = scmp.eq.s32.totalorder %s83, 1
    %p279 = por %p277, %p278
    %p281 = scmp.ne.s32.totalorder %s266, %s280
    %p282 = scmp.eq.s32.totalorder %s83, 0
    %p283 = por %p281, %p282
    %s285 = sadd.s32 %s284, 1
    %p288 = scmp.eq.s32.totalorder %s77, 1
    %p289 = scmp.ne.s32.totalorder %s284, %s286
    %p290 = scmp.eq.s32.totalorder %s77, 0
    %p291 = por %p289, %p290
    %p292 = scmp.ne.s32.totalorder %s284, %s286
    %p293 = scmp.eq.s32.totalorder %s82, 1
    %p294 = por %p292, %p293
    %p295 = scmp.ne.s32.totalorder %s286, %s287
    %p296 = scmp.eq.s32.totalorder %s82, 0
    %p297 = por %p295, %p296
    %p298 = scmp.ne.s32.totalorder %s286, %s287
    %p299 = scmp.eq.s32.totalorder %s83, 1
    %p300 = por %p298, %p299
    %p302 = scmp.ne.s32.totalorder %s287, %s301
    %p303 = scmp.eq.s32.totalorder %s83, 0
    %p304 = por %p302, %p303
    %s306 = sadd.s32 %s305, 1
    %p309 = scmp.eq.s32.totalorder %s77, 1
    %p310 = scmp.ne.s32.totalorder %s305, %s307
    %p311 = scmp.eq.s32.totalorder %s77, 0
    %p312 = por %p310, %p311
    %p313 = scmp.ne.s32.totalorder %s305, %s307
    %p314 = scmp.eq.s32.totalorder %s82, 1
    %p315 = por %p313, %p314
    %p316 = scmp.ne.s32.totalorder %s307, %s308
    %p317 = scmp.eq.s32.totalorder %s82, 0
    %p318 = por %p316, %p317
    %p319 = scmp.ne.s32.totalorder %s307, %s308
    %p320 = scmp.eq.s32.totalorder %s83, 1
    %p321 = por %p319, %p320
    %p323 = scmp.ne.s32.totalorder %s308, %s322
    %p324 = scmp.eq.s32.totalorder %s83, 0
    %p325 = por %p323, %p324
    %s327 = sadd.s32 %s326, 1
    %p330 = scmp.eq.s32.totalorder %s77, 1
    %p331 = scmp.ne.s32.totalorder %s326, %s328
    %p332 = scmp.eq.s32.totalorder %s77, 0
    %p333 = por %p331, %p332
    %p334 = scmp.ne.s32.totalorder %s326, %s328
    %p335 = scmp.eq.s32.totalorder %s82, 1
    %p336 = por %p334, %p335
    %p337 = scmp.ne.s32.totalorder %s328, %s329
    %p338 = scmp.eq.s32.totalorder %s82, 0
    %p339 = por %p337, %p338
    %p340 = scmp.ne.s32.totalorder %s328, %s329
    %p341 = scmp.eq.s32.totalorder %s83, 1
    %p342 = por %p340, %p341
    %p344 = scmp.ne.s32.totalorder %s329, %s343
    %p345 = scmp.eq.s32.totalorder %s83, 0
    %p346 = por %p344, %p345
    %s348 = sadd.s32 %s347, 1
    %p351 = scmp.eq.s32.totalorder %s77, 1
    %p352 = scmp.ne.s32.totalorder %s347, %s349
    %p353 = scmp.eq.s32.totalorder %s77, 0
    %p354 = por %p352, %p353
    %p355 = scmp.ne.s32.totalorder %s347, %s349
    %p356 = scmp.eq.s32.totalorder %s82, 1
    %p357 = por %p355, %p356
    %p358 = scmp.ne.s32.totalorder %s349, %s350
    %p359 = scmp.eq.s32.totalorder %s82, 0
    %p360 = por %p358, %p359
    %p361 = scmp.ne.s32.totalorder %s349, %s350
    %p362 = scmp.eq.s32.totalorder %s83, 1
    %p363 = por %p361, %p362
    %p365 = scmp.ne.s32.totalorder %s350, %s364
    %p366 = scmp.eq.s32.totalorder %s83, 0
    %p367 = por %p365, %p366
    %s369 = sadd.s32 %s368, 1
    %p372 = scmp.eq.s32.totalorder %s77, 1
    %p373 = scmp.ne.s32.totalorder %s368, %s370
    %p374 = scmp.eq.s32.totalorder %s77, 0
    %p375 = por %p373, %p374
    %p376 = scmp.ne.s32.totalorder %s368, %s370
    %p377 = scmp.eq.s32.totalorder %s82, 1
    %p378 = por %p376, %p377
    %p379 = scmp.ne.s32.totalorder %s370, %s371
    %p380 = scmp.eq.s32.totalorder %s82, 0
    %p381 = por %p379, %p380
    %p382 = scmp.ne.s32.totalorder %s370, %s371
    %p383 = scmp.eq.s32.totalorder %s83, 1
    %p384 = por %p382, %p383
    %p386 = scmp.ne.s32.totalorder %s371, %s385
    %p387 = scmp.eq.s32.totalorder %s83, 0
    %p388 = por %p386, %p387
    %s390 = sadd.s32 %s389, 1
    %p393 = scmp.eq.s32.totalorder %s77, 1
    %p394 = scmp.ne.s32.totalorder %s389, %s391
    %p395 = scmp.eq.s32.totalorder %s77, 0
    %p396 = por %p394, %p395
    %p397 = scmp.ne.s32.totalorder %s389, %s391
    %p398 = scmp.eq.s32.totalorder %s82, 1
    %p399 = por %p397, %p398
    %p400 = scmp.ne.s32.totalorder %s391, %s392
    %p401 = scmp.eq.s32.totalorder %s82, 0
    %p402 = por %p400, %p401
    %p403 = scmp.ne.s32.totalorder %s391, %s392
    %p404 = scmp.eq.s32.totalorder %s83, 1
    %p405 = por %p403, %p404
    %p407 = scmp.ne.s32.totalorder %s392, %s406
    %p408 = scmp.eq.s32.totalorder %s83, 0
    %p409 = por %p407, %p408
    %s411 = sadd.s32 %s410, 1
    %p414 = scmp.eq.s32.totalorder %s77, 1
    %p415 = scmp.ne.s32.totalorder %s410, %s412
    %p416 = scmp.eq.s32.totalorder %s77, 0
    %p417 = por %p415, %p416
    %p418 = scmp.ne.s32.totalorder %s410, %s412
    %p419 = scmp.eq.s32.totalorder %s82, 1
    %p420 = por %p418, %p419
    %p421 = scmp.ne.s32.totalorder %s412, %s413
    %p422 = scmp.eq.s32.totalorder %s82, 0
    %p423 = por %p421, %p422
    %p424 = scmp.ne.s32.totalorder %s412, %s413
    %p425 = scmp.eq.s32.totalorder %s83, 1
    %p426 = por %p424, %p425
    %p428 = scmp.ne.s32.totalorder %s413, %s427
    %p429 = scmp.eq.s32.totalorder %s83, 0
    %p430 = por %p428, %p429
    %s432 = sadd.s32 %s431, 1
    %p435 = scmp.eq.s32.totalorder %s77, 1
    %p436 = scmp.ne.s32.totalorder %s431, %s433
    %p437 = scmp.eq.s32.totalorder %s77, 0
    %p438 = por %p436, %p437
    %p439 = scmp.ne.s32.totalorder %s431, %s433
    %p440 = scmp.eq.s32.totalorder %s82, 1
    %p441 = por %p439, %p440
    %p442 = scmp.ne.s32.totalorder %s433, %s434
    %p443 = scmp.eq.s32.totalorder %s82, 0
    %p444 = por %p442, %p443
    %p445 = scmp.ne.s32.totalorder %s433, %s434
    %p446 = scmp.eq.s32.totalorder %s83, 1
    %p447 = por %p445, %p446
    %p449 = scmp.ne.s32.totalorder %s434, %s448
    %p450 = scmp.eq.s32.totalorder %s83, 0
    %p451 = por %p449, %p450
    %s453 = sadd.s32 %s452, 1
    %p456 = scmp.eq.s32.totalorder %s77, 1
    %p457 = scmp.ne.s32.totalorder %s452, %s454
    %p458 = scmp.eq.s32.totalorder %s77, 0
    %p459 = por %p457, %p458
    %p460 = scmp.ne.s32.totalorder %s452, %s454
    %p461 = scmp.eq.s32.totalorder %s82, 1
    %p462 = por %p460, %p461
    %p463 = scmp.ne.s32.totalorder %s454, %s455
    %p464 = scmp.eq.s32.totalorder %s82, 0
    %p465 = por %p463, %p464
    %p466 = scmp.ne.s32.totalorder %s454, %s455
    %p467 = scmp.eq.s32.totalorder %s83, 1
    %p468 = por %p466, %p467
    %p470 = scmp.ne.s32.totalorder %s455, %s469
    %p471 = scmp.eq.s32.totalorder %s83, 0
    %p472 = por %p470, %p471
    %s474 = sadd.s32 %s473, 1
    %p477 = scmp.eq.s32.totalorder %s77, 1
    %p478 = scmp.ne.s32.totalorder %s473, %s475
    %p479 = scmp.eq.s32.totalorder %s77, 0
    %p480 = por %p478, %p479
    %p481 = scmp.ne.s32.totalorder %s473, %s475
    %p482 = scmp.eq.s32.totalorder %s82, 1
    %p483 = por %p481, %p482
    %p484 = scmp.ne.s32.totalorder %s475, %s476
    %p485 = scmp.eq.s32.totalorder %s82, 0
    %p486 = por %p484, %p485
    %p487 = scmp.ne.s32.totalorder %s475, %s476
    %p488 = scmp.eq.s32.totalorder %s83, 1
    %p489 = por %p487, %p488
    %p491 = scmp.ne.s32.totalorder %s476, %s490
    %p492 = scmp.eq.s32.totalorder %s83, 0
    %p493 = por %p491, %p492
    %s495 = sadd.s32 %s494, 1
    %p498 = scmp.eq.s32.totalorder %s77, 1
    %p499 = scmp.ne.s32.totalorder %s494, %s496
    %p500 = scmp.eq.s32.totalorder %s77, 0
    %p501 = por %p499, %p500
    %p502 = scmp.ne.s32.totalorder %s494, %s496
    %p503 = scmp.eq.s32.totalorder %s82, 1
    %p504 = por %p502, %p503
    %p505 = scmp.ne.s32.totalorder %s496, %s497
    %p506 = scmp.eq.s32.totalorder %s82, 0
    %p507 = por %p505, %p506
    %p508 = scmp.ne.s32.totalorder %s496, %s497
    %p509 = scmp.eq.s32.totalorder %s83, 1
    %p510 = por %p508, %p509
    %p512 = scmp.ne.s32.totalorder %s497, %s511
    %p513 = scmp.eq.s32.totalorder %s83, 0
    %p514 = por %p512, %p513
    %s516 = sadd.s32 %s515, 1
    %p519 = scmp.eq.s32.totalorder %s77, 1
    %p520 = scmp.ne.s32.totalorder %s515, %s517
    %p521 = scmp.eq.s32.totalorder %s77, 0
    %p522 = por %p520, %p521
    %p523 = scmp.ne.s32.totalorder %s515, %s517
    %p524 = scmp.eq.s32.totalorder %s82, 1
    %p525 = por %p523, %p524
    %p526 = scmp.ne.s32.totalorder %s517, %s518
    %p527 = scmp.eq.s32.totalorder %s82, 0
    %p528 = por %p526, %p527
    %p529 = scmp.ne.s32.totalorder %s517, %s518
    %p530 = scmp.eq.s32.totalorder %s83, 1
    %p531 = por %p529, %p530
    %p533 = scmp.ne.s32.totalorder %s518, %s532
    %p534 = scmp.eq.s32.totalorder %s83, 0
    %p535 = por %p533, %p534
    %s537 = sadd.s32 %s536, 1
    %p540 = scmp.eq.s32.totalorder %s77, 1
    %p541 = scmp.ne.s32.totalorder %s536, %s538
    %p542 = scmp.eq.s32.totalorder %s77, 0
    %p543 = por %p541, %p542
    %p544 = scmp.ne.s32.totalorder %s536, %s538
    %p545 = scmp.eq.s32.totalorder %s82, 1
    %p546 = por %p544, %p545
    %p547 = scmp.ne.s32.totalorder %s538, %s539
    %p548 = scmp.eq.s32.totalorder %s82, 0
    %p549 = por %p547, %p548
    %p550 = scmp.ne.s32.totalorder %s538, %s539
    %p551 = scmp.eq.s32.totalorder %s83, 1
    %p552 = por %p550, %p551
    %p554 = scmp.ne.s32.totalorder %s539, %s553
    %p555 = scmp.eq.s32.totalorder %s83, 0
    %p556 = por %p554, %p555
    %s558 = sadd.s32 %s557, 1
    %p561 = scmp.eq.s32.totalorder %s77, 1
    %p562 = scmp.ne.s32.totalorder %s557, %s559
    %p563 = scmp.eq.s32.totalorder %s77, 0
    %p564 = por %p562, %p563
    %p565 = scmp.ne.s32.totalorder %s557, %s559
    %p566 = scmp.eq.s32.totalorder %s82, 1
    %p567 = por %p565, %p566
    %p568 = scmp.ne.s32.totalorder %s559, %s560
    %p569 = scmp.eq.s32.totalorder %s82, 0
    %p570 = por %p568, %p569
    %p571 = scmp.ne.s32.totalorder %s559, %s560
    %p572 = scmp.eq.s32.totalorder %s83, 1
    %p573 = por %p571, %p572
    %p575 = scmp.ne.s32.totalorder %s560, %s574
    %p576 = scmp.eq.s32.totalorder %s83, 0
    %p577 = por %p575, %p576
    %s579 = sadd.s32 %s578, 1
    %p582 = scmp.eq.s32.totalorder %s77, 1
    %p583 = scmp.ne.s32.totalorder %s578, %s580
    %p584 = scmp.eq.s32.totalorder %s77, 0
    %p585 = por %p583, %p584
    %p586 = scmp.ne.s32.totalorder %s578, %s580
    %p587 = scmp.eq.s32.totalorder %s82, 1
    %p588 = por %p586, %p587
    %p589 = scmp.ne.s32.totalorder %s580, %s581
    %p590 = scmp.eq.s32.totalorder %s82, 0
    %p591 = por %p589, %p590
    %p592 = scmp.ne.s32.totalorder %s580, %s581
    %p593 = scmp.eq.s32.totalorder %s83, 1
    %p594 = por %p592, %p593
    %p596 = scmp.ne.s32.totalorder %s581, %s595
    %p597 = scmp.eq.s32.totalorder %s83, 0
    %p598 = por %p596, %p597
    %s600 = sadd.s32 %s599, 1
    %p603 = scmp.eq.s32.totalorder %s77, 1
    %p604 = scmp.ne.s32.totalorder %s599, %s601
    %p605 = scmp.eq.s32.totalorder %s77, 0
    %p606 = por %p604, %p605
    %p607 = scmp.ne.s32.totalorder %s599, %s601
    %p608 = scmp.eq.s32.totalorder %s82, 1
    %p609 = por %p607, %p608
    %p610 = scmp.ne.s32.totalorder %s601, %s602
    %p611 = scmp.eq.s32.totalorder %s82, 0
    %p612 = por %p610, %p611
    %p613 = scmp.ne.s32.totalorder %s601, %s602
    %p614 = scmp.eq.s32.totalorder %s83, 1
    %p615 = por %p613, %p614
    %p617 = scmp.ne.s32.totalorder %s602, %s616
    %p618 = scmp.eq.s32.totalorder %s83, 0
    %p619 = por %p617, %p618
    %s621 = sadd.s32 %s620, 1
    %p624 = scmp.eq.s32.totalorder %s77, 1
    %p625 = scmp.ne.s32.totalorder %s620, %s622
    %p626 = scmp.eq.s32.totalorder %s77, 0
    %p627 = por %p625, %p626
    %p628 = scmp.ne.s32.totalorder %s620, %s622
    %p629 = scmp.eq.s32.totalorder %s82, 1
    %p630 = por %p628, %p629
    %p631 = scmp.ne.s32.totalorder %s622, %s623
    %p632 = scmp.eq.s32.totalorder %s82, 0
    %p633 = por %p631, %p632
    %p634 = scmp.ne.s32.totalorder %s622, %s623
    %p635 = scmp.eq.s32.totalorder %s83, 1
    %p636 = por %p634, %p635
    %p638 = scmp.ne.s32.totalorder %s623, %s637
    %p639 = scmp.eq.s32.totalorder %s83, 0
    %p640 = por %p638, %p639
    %s642 = sadd.s32 %s641, 1
    %p645 = scmp.eq.s32.totalorder %s77, 1
    %p646 = scmp.ne.s32.totalorder %s641, %s643
    %p647 = scmp.eq.s32.totalorder %s77, 0
    %p648 = por %p646, %p647
    %p649 = scmp.ne.s32.totalorder %s641, %s643
    %p650 = scmp.eq.s32.totalorder %s82, 1
    %p651 = por %p649, %p650
    %p652 = scmp.ne.s32.totalorder %s643, %s644
    %p653 = scmp.eq.s32.totalorder %s82, 0
    %p654 = por %p652, %p653
    %p655 = scmp.ne.s32.totalorder %s643, %s644
    %p656 = scmp.eq.s32.totalorder %s83, 1
    %p657 = por %p655, %p656
    %p659 = scmp.ne.s32.totalorder %s644, %s658
    %p660 = scmp.eq.s32.totalorder %s83, 0
    %p661 = por %p659, %p660
    %s663 = sadd.s32 %s662, 1
    %p666 = scmp.eq.s32.totalorder %s77, 1
    %p667 = scmp.ne.s32.totalorder %s662, %s664
    %p668 = scmp.eq.s32.totalorder %s77, 0
    %p669 = por %p667, %p668
    %p670 = scmp.ne.s32.totalorder %s662, %s664
    %p671 = scmp.eq.s32.totalorder %s82, 1
    %p672 = por %p670, %p671
    %p673 = scmp.ne.s32.totalorder %s664, %s665
    %p674 = scmp.eq.s32.totalorder %s82, 0
    %p675 = por %p673, %p674
    %p676 = scmp.ne.s32.totalorder %s664, %s665
    %p677 = scmp.eq.s32.totalorder %s83, 1
    %p678 = por %p676, %p677
    %p680 = scmp.ne.s32.totalorder %s665, %s679
    %p681 = scmp.eq.s32.totalorder %s83, 0
    %p682 = por %p680, %p681
    %s684 = sadd.s32 %s683, 1
    %p687 = scmp.eq.s32.totalorder %s77, 1
    %p688 = scmp.ne.s32.totalorder %s683, %s685
    %p689 = scmp.eq.s32.totalorder %s77, 0
    %p690 = por %p688, %p689
    %p691 = scmp.ne.s32.totalorder %s683, %s685
    %p692 = scmp.eq.s32.totalorder %s82, 1
    %p693 = por %p691, %p692
    %p694 = scmp.ne.s32.totalorder %s685, %s686
    %p695 = scmp.eq.s32.totalorder %s82, 0
    %p696 = por %p694, %p695
    %p697 = scmp.ne.s32.totalorder %s685, %s686
    %p698 = scmp.eq.s32.totalorder %s83, 1
    %p699 = por %p697, %p698
    %p701 = scmp.ne.s32.totalorder %s686, %s700
    %p702 = scmp.eq.s32.totalorder %s83, 0
    %p703 = por %p701, %p702
    %s705 = sadd.s32 %s704, 1
    %p708 = scmp.eq.s32.totalorder %s77, 1
    %p709 = scmp.ne.s32.totalorder %s704, %s706
    %p710 = scmp.eq.s32.totalorder %s77, 0
    %p711 = por %p709, %p710
    %p712 = scmp.ne.s32.totalorder %s704, %s706
    %p713 = scmp.eq.s32.totalorder %s82, 1
    %p714 = por %p712, %p713
    %p715 = scmp.ne.s32.totalorder %s706, %s707
    %p716 = scmp.eq.s32.totalorder %s82, 0
    %p717 = por %p715, %p716
    %p718 = scmp.ne.s32.totalorder %s706, %s707
    %p719 = scmp.eq.s32.totalorder %s83, 1
    %p720 = por %p718, %p719
    %p722 = scmp.ne.s32.totalorder %s707, %s721
    %p723 = scmp.eq.s32.totalorder %s83, 0
    %p724 = por %p722, %p723
    %s726 = sadd.s32 %s725, 1
    %p729 = scmp.eq.s32.totalorder %s77, 1
    %p730 = scmp.ne.s32.totalorder %s725, %s727
    %p731 = scmp.eq.s32.totalorder %s77, 0
    %p732 = por %p730, %p731
    %p733 = scmp.ne.s32.totalorder %s725, %s727
    %p734 = scmp.eq.s32.totalorder %s82, 1
    %p735 = por %p733, %p734
    %p736 = scmp.ne.s32.totalorder %s727, %s728
    %p737 = scmp.eq.s32.totalorder %s82, 0
    %p738 = por %p736, %p737
    %p739 = scmp.ne.s32.totalorder %s727, %s728
    %p740 = scmp.eq.s32.totalorder %s83, 1
    %p741 = por %p739, %p740
    %p743 = scmp.ne.s32.totalorder %s728, %s742
    %p744 = scmp.eq.s32.totalorder %s83, 0
    %p745 = por %p743, %p744
    %s747 = sadd.s32 %s746, 1
    %p750 = scmp.eq.s32.totalorder %s77, 1
    %p751 = scmp.ne.s32.totalorder %s746, %s748
    %p752 = scmp.eq.s32.totalorder %s77, 0
    %p753 = por %p751, %p752
    %p754 = scmp.ne.s32.totalorder %s746, %s748
    %p755 = scmp.eq.s32.totalorder %s82, 1
    %p756 = por %p754, %p755
    %p757 = scmp.ne.s32.totalorder %s748, %s749
    %p758 = scmp.eq.s32.totalorder %s82, 0
    %p759 = por %p757, %p758
    %p760 = scmp.ne.s32.totalorder %s748, %s749
    %p761 = scmp.eq.s32.totalorder %s83, 1
    %p762 = por %p760, %p761
    %p764 = scmp.ne.s32.totalorder %s749, %s763
    %p765 = scmp.eq.s32.totalorder %s83, 0
    %p766 = por %p764, %p765
    %s768 = sadd.s32 %s767, 1
    %p771 = scmp.eq.s32.totalorder %s77, 1
    %p772 = scmp.ne.s32.totalorder %s767, %s769
    %p773 = scmp.eq.s32.totalorder %s77, 0
    %p774 = por %p772, %p773
    %p775 = scmp.ne.s32.totalorder %s767, %s769
    %p776 = scmp.eq.s32.totalorder %s82, 1
    %p777 = por %p775, %p776
    %p778 = scmp.ne.s32.totalorder %s769, %s770
    %p779 = scmp.eq.s32.totalorder %s82, 0
    %p780 = por %p778, %p779
    %p781 = scmp.ne.s32.totalorder %s769, %s770
    %p782 = scmp.eq.s32.totalorder %s83, 1
    %p783 = por %p781, %p782
    %p785 = scmp.ne.s32.totalorder %s770, %s784
    %p786 = scmp.eq.s32.totalorder %s83, 0
    %p787 = por %p785, %p786
    %s789 = sadd.s32 %s788, 1
    %p792 = scmp.eq.s32.totalorder %s77, 1
    %p793 = scmp.ne.s32.totalorder %s788, %s790
    %p794 = scmp.eq.s32.totalorder %s77, 0
    %p795 = por %p793, %p794
    %p796 = scmp.ne.s32.totalorder %s788, %s790
    %p797 = scmp.eq.s32.totalorder %s82, 1
    %p798 = por %p796, %p797
    %p799 = scmp.ne.s32.totalorder %s790, %s791
    %p800 = scmp.eq.s32.totalorder %s82, 0
    %p801 = por %p799, %p800
    %p802 = scmp.ne.s32.totalorder %s790, %s791
    %p803 = scmp.eq.s32.totalorder %s83, 1
    %p804 = por %p802, %p803
    %p806 = scmp.ne.s32.totalorder %s791, %s805
    %p807 = scmp.eq.s32.totalorder %s83, 0
    %p808 = por %p806, %p807
    %s810 = sadd.s32 %s809, 1
    %p813 = scmp.eq.s32.totalorder %s77, 1
    %p814 = scmp.ne.s32.totalorder %s809, %s811
    %p815 = scmp.eq.s32.totalorder %s77, 0
    %p816 = por %p814, %p815
    %p817 = scmp.ne.s32.totalorder %s809, %s811
    %p818 = scmp.eq.s32.totalorder %s82, 1
    %p819 = por %p817, %p818
    %p820 = scmp.ne.s32.totalorder %s811, %s812
    %p821 = scmp.eq.s32.totalorder %s82, 0
    %p822 = por %p820, %p821
    %p823 = scmp.ne.s32.totalorder %s811, %s812
    %p824 = scmp.eq.s32.totalorder %s83, 1
    %p825 = por %p823, %p824
    %p827 = scmp.ne.s32.totalorder %s812, %s826
    %p828 = scmp.eq.s32.totalorder %s83, 0
    %p829 = por %p827, %p828
    %s830 = ssub.s32 %s77, %s84
    %p831 = scmp.eq.s32.totalorder %s830, 0
    %s833 = sadd.s32 %s832, 1
    %s834 = scalar_select %p831, %s832, %s833
    %p837 = pneg %p831
    %p838 = scmp.eq.s32.totalorder %s77, 1
    %p839 = por %p837, %p838
    %p840 = scmp.ne.s32.totalorder %s832, %s835
    %p841 = scmp.eq.s32.totalorder %s77, 0
    %p842 = por %p840, %p841
    %p843 = scmp.ne.s32.totalorder %s832, %s835
    %p844 = scmp.eq.s32.totalorder %s82, 1
    %p845 = por %p843, %p844
    %p846 = scmp.ne.s32.totalorder %s835, %s836
    %p847 = scmp.eq.s32.totalorder %s82, 0
    %p848 = por %p846, %p847
    %p849 = scmp.ne.s32.totalorder %s835, %s836
    %p850 = scmp.eq.s32.totalorder %s83, 1
    %p851 = por %p849, %p850
    %p853 = scmp.ne.s32.totalorder %s836, %s852
    %p854 = scmp.eq.s32.totalorder %s83, 0
    %p855 = por %p853, %p854
    %p856 = scmp.le.s32.totalorder 1, %s77
    %p857 = scmp.lt.s32.totalorder %s77, 3
    %p858 = pnand %p856, %p857
    %p859 = pneg %p858
    // Predicated region
    $region9: #{up_block_forward.1} parent=5 // pred_check
      _
    $region10: #{up_block_forward.1} parent=5 // pred_check_branch
      %861 = sbr.rel (%p858) target = $region12
    $region11: #{up_block_forward.1} parent=5 // pred_region
      %s862 = ssub.s32 %s77, 1
      // Predicated region
      $region13: #{up_block_forward.1} parent=11 // pred_check
        %p863 = pneg %p150
      $region14: #{up_block_forward.1} parent=11 // pred_check_branch
        %865 = sbr.rel (%p863) target = $region16
      $region15: #{up_block_forward.1} parent=11 // pred_region
        _
      $region16: #{up_block_forward.1} parent=11 // pred_fallthru
        _
      // Predicated region
      $region17: #{up_block_forward.1} parent=11 // pred_check
        %p866 = pneg %p171
      $region18: #{up_block_forward.1} parent=11 // pred_check_branch
        %868 = sbr.rel (%p866) target = $region20
      $region19: #{up_block_forward.1} parent=11 // pred_region
        _
      $region20: #{up_block_forward.1} parent=11 // pred_fallthru
        _
      // Predicated region
      $region21: #{up_block_forward.1} parent=11 // pred_check
        %p869 = pneg %p192
      $region22: #{up_block_forward.1} parent=11 // pred_check_branch
        %871 = sbr.rel (%p869) target = $region24
      $region23: #{up_block_forward.1} parent=11 // pred_region
        _
      $region24: #{up_block_forward.1} parent=11 // pred_fallthru
        _
      // Predicated region
      $region25: #{up_block_forward.1} parent=11 // pred_check
        %p872 = pneg %p213
      $region26: #{up_block_forward.1} parent=11 // pred_check_branch
        %874 = sbr.rel (%p872) target = $region28
      $region27: #{up_block_forward.1} parent=11 // pred_region
        _
      $region28: #{up_block_forward.1} parent=11 // pred_fallthru
        _
      // Predicated region
      $region29: #{up_block_forward.1} parent=11 // pred_check
        %p875 = pneg %p234
      $region30: #{up_block_forward.1} parent=11 // pred_check_branch
        %877 = sbr.rel (%p875) target = $region32
      $region31: #{up_block_forward.1} parent=11 // pred_region
        _
      $region32: #{up_block_forward.1} parent=11 // pred_fallthru
        _
      // Predicated region
      $region33: #{up_block_forward.1} parent=11 // pred_check
        %p878 = pneg %p255
      $region34: #{up_block_forward.1} parent=11 // pred_check_branch
        %880 = sbr.rel (%p878) target = $region36
      $region35: #{up_block_forward.1} parent=11 // pred_region
        _
      $region36: #{up_block_forward.1} parent=11 // pred_fallthru
        _
      // Predicated region
      $region37: #{up_block_forward.1} parent=11 // pred_check
        %p881 = pneg %p276
      $region38: #{up_block_forward.1} parent=11 // pred_check_branch
        %883 = sbr.rel (%p881) target = $region40
      $region39: #{up_block_forward.1} parent=11 // pred_region
        _
      $region40: #{up_block_forward.1} parent=11 // pred_fallthru
        _
      // Predicated region
      $region41: #{up_block_forward.1} parent=11 // pred_check
        %p884 = pneg %p297
      $region42: #{up_block_forward.1} parent=11 // pred_check_branch
        %886 = sbr.rel (%p884) target = $region44
      $region43: #{up_block_forward.1} parent=11 // pred_region
        _
      $region44: #{up_block_forward.1} parent=11 // pred_fallthru
        _
      // Predicated region
      $region45: #{up_block_forward.1} parent=11 // pred_check
        %p887 = pneg %p318
      $region46: #{up_block_forward.1} parent=11 // pred_check_branch
        %889 = sbr.rel (%p887) target = $region48
      $region47: #{up_block_forward.1} parent=11 // pred_region
        _
      $region48: #{up_block_forward.1} parent=11 // pred_fallthru
        _
      // Predicated region
      $region49: #{up_block_forward.1} parent=11 // pred_check
        %p890 = pneg %p339
      $region50: #{up_block_forward.1} parent=11 // pred_check_branch
        %892 = sbr.rel (%p890) target = $region52
      $region51: #{up_block_forward.1} parent=11 // pred_region
        _
      $region52: #{up_block_forward.1} parent=11 // pred_fallthru
        _
      // Predicated region
      $region53: #{up_block_forward.1} parent=11 // pred_check
        %p893 = pneg %p360
      $region54: #{up_block_forward.1} parent=11 // pred_check_branch
        %895 = sbr.rel (%p893) target = $region56
      $region55: #{up_block_forward.1} parent=11 // pred_region
        _
      $region56: #{up_block_forward.1} parent=11 // pred_fallthru
        _
      // Predicated region
      $region57: #{up_block_forward.1} parent=11 // pred_check
        %p896 = pneg %p381
      $region58: #{up_block_forward.1} parent=11 // pred_check_branch
        %898 = sbr.rel (%p896) target = $region60
      $region59: #{up_block_forward.1} parent=11 // pred_region
        _
      $region60: #{up_block_forward.1} parent=11 // pred_fallthru
        _
      // Predicated region
      $region61: #{up_block_forward.1} parent=11 // pred_check
        %p899 = pneg %p402
      $region62: #{up_block_forward.1} parent=11 // pred_check_branch
        %901 = sbr.rel (%p899) target = $region64
      $region63: #{up_block_forward.1} parent=11 // pred_region
        _
      $region64: #{up_block_forward.1} parent=11 // pred_fallthru
        _
      // Predicated region
      $region65: #{up_block_forward.1} parent=11 // pred_check
        %p902 = pneg %p423
      $region66: #{up_block_forward.1} parent=11 // pred_check_branch
        %904 = sbr.rel (%p902) target = $region68
      $region67: #{up_block_forward.1} parent=11 // pred_region
        _
      $region68: #{up_block_forward.1} parent=11 // pred_fallthru
        _
      // Predicated region
      $region69: #{up_block_forward.1} parent=11 // pred_check
        %p905 = pneg %p444
      $region70: #{up_block_forward.1} parent=11 // pred_check_branch
        %907 = sbr.rel (%p905) target = $region72
      $region71: #{up_block_forward.1} parent=11 // pred_region
        _
      $region72: #{up_block_forward.1} parent=11 // pred_fallthru
        _
      // Predicated region
      $region73: #{up_block_forward.1} parent=11 // pred_check
        %p908 = pneg %p465
      $region74: #{up_block_forward.1} parent=11 // pred_check_branch
        %910 = sbr.rel (%p908) target = $region76
      $region75: #{up_block_forward.1} parent=11 // pred_region
        _
      $region76: #{up_block_forward.1} parent=11 // pred_fallthru
        _
      // Predicated region
      $region77: #{up_block_forward.1} parent=11 // pred_check
        %p911 = pneg %p486
      $region78: #{up_block_forward.1} parent=11 // pred_check_branch
        %913 = sbr.rel (%p911) target = $region80
      $region79: #{up_block_forward.1} parent=11 // pred_region
        _
      $region80: #{up_block_forward.1} parent=11 // pred_fallthru
        _
      // Predicated region
      $region81: #{up_block_forward.1} parent=11 // pred_check
        %p914 = pneg %p507
      $region82: #{up_block_forward.1} parent=11 // pred_check_branch
        %916 = sbr.rel (%p914) target = $region84
      $region83: #{up_block_forward.1} parent=11 // pred_region
        _
      $region84: #{up_block_forward.1} parent=11 // pred_fallthru
        _
      // Predicated region
      $region85: #{up_block_forward.1} parent=11 // pred_check
        %p917 = pneg %p528
      $region86: #{up_block_forward.1} parent=11 // pred_check_branch
        %919 = sbr.rel (%p917) target = $region88
      $region87: #{up_block_forward.1} parent=11 // pred_region
        _
      $region88: #{up_block_forward.1} parent=11 // pred_fallthru
        _
      // Predicated region
      $region89: #{up_block_forward.1} parent=11 // pred_check
        %p920 = pneg %p549
      $region90: #{up_block_forward.1} parent=11 // pred_check_branch
        %922 = sbr.rel (%p920) target = $region92
      $region91: #{up_block_forward.1} parent=11 // pred_region
        _
      $region92: #{up_block_forward.1} parent=11 // pred_fallthru
        _
      // Predicated region
      $region93: #{up_block_forward.1} parent=11 // pred_check
        %p923 = pneg %p570
      $region94: #{up_block_forward.1} parent=11 // pred_check_branch
        %925 = sbr.rel (%p923) target = $region96
      $region95: #{up_block_forward.1} parent=11 // pred_region
        _
      $region96: #{up_block_forward.1} parent=11 // pred_fallthru
        _
      // Predicated region
      $region97: #{up_block_forward.1} parent=11 // pred_check
        %p926 = pneg %p591
      $region98: #{up_block_forward.1} parent=11 // pred_check_branch
        %928 = sbr.rel (%p926) target = $region100
      $region99: #{up_block_forward.1} parent=11 // pred_region
        _
      $region100: #{up_block_forward.1} parent=11 // pred_fallthru
        _
      // Predicated region
      $region101: #{up_block_forward.1} parent=11 // pred_check
        %p929 = pneg %p612
      $region102: #{up_block_forward.1} parent=11 // pred_check_branch
        %931 = sbr.rel (%p929) target = $region104
      $region103: #{up_block_forward.1} parent=11 // pred_region
        _
      $region104: #{up_block_forward.1} parent=11 // pred_fallthru
        _
      // Predicated region
      $region105: #{up_block_forward.1} parent=11 // pred_check
        %p932 = pneg %p633
      $region106: #{up_block_forward.1} parent=11 // pred_check_branch
        %934 = sbr.rel (%p932) target = $region108
      $region107: #{up_block_forward.1} parent=11 // pred_region
        _
      $region108: #{up_block_forward.1} parent=11 // pred_fallthru
        _
      // Predicated region
      $region109: #{up_block_forward.1} parent=11 // pred_check
        %p935 = pneg %p654
      $region110: #{up_block_forward.1} parent=11 // pred_check_branch
        %937 = sbr.rel (%p935) target = $region112
      $region111: #{up_block_forward.1} parent=11 // pred_region
        _
      $region112: #{up_block_forward.1} parent=11 // pred_fallthru
        _
      // Predicated region
      $region113: #{up_block_forward.1} parent=11 // pred_check
        %p938 = pneg %p675
      $region114: #{up_block_forward.1} parent=11 // pred_check_branch
        %940 = sbr.rel (%p938) target = $region116
      $region115: #{up_block_forward.1} parent=11 // pred_region
        _
      $region116: #{up_block_forward.1} parent=11 // pred_fallthru
        _
      // Predicated region
      $region117: #{up_block_forward.1} parent=11 // pred_check
        %p941 = pneg %p696
      $region118: #{up_block_forward.1} parent=11 // pred_check_branch
        %943 = sbr.rel (%p941) target = $region120
      $region119: #{up_block_forward.1} parent=11 // pred_region
        _
      $region120: #{up_block_forward.1} parent=11 // pred_fallthru
        _
      // Predicated region
      $region121: #{up_block_forward.1} parent=11 // pred_check
        %p944 = pneg %p717
      $region122: #{up_block_forward.1} parent=11 // pred_check_branch
        %946 = sbr.rel (%p944) target = $region124
      $region123: #{up_block_forward.1} parent=11 // pred_region
        _
      $region124: #{up_block_forward.1} parent=11 // pred_fallthru
        _
      // Predicated region
      $region125: #{up_block_forward.1} parent=11 // pred_check
        %p947 = pneg %p738
      $region126: #{up_block_forward.1} parent=11 // pred_check_branch
        %949 = sbr.rel (%p947) target = $region128
      $region127: #{up_block_forward.1} parent=11 // pred_region
        _
      $region128: #{up_block_forward.1} parent=11 // pred_fallthru
        _
      // Predicated region
      $region129: #{up_block_forward.1} parent=11 // pred_check
        %p950 = pneg %p759
      $region130: #{up_block_forward.1} parent=11 // pred_check_branch
        %952 = sbr.rel (%p950) target = $region132
      $region131: #{up_block_forward.1} parent=11 // pred_region
        _
      $region132: #{up_block_forward.1} parent=11 // pred_fallthru
        _
      // Predicated region
      $region133: #{up_block_forward.1} parent=11 // pred_check
        %p953 = pneg %p780
      $region134: #{up_block_forward.1} parent=11 // pred_check_branch
        %955 = sbr.rel (%p953) target = $region136
      $region135: #{up_block_forward.1} parent=11 // pred_region
        _
      $region136: #{up_block_forward.1} parent=11 // pred_fallthru
        _
      // Predicated region
      $region137: #{up_block_forward.1} parent=11 // pred_check
        %p956 = pneg %p801
      $region138: #{up_block_forward.1} parent=11 // pred_check_branch
        %958 = sbr.rel (%p956) target = $region140
      $region139: #{up_block_forward.1} parent=11 // pred_region
        _
      $region140: #{up_block_forward.1} parent=11 // pred_fallthru
        _
      // Predicated region
      $region141: #{up_block_forward.1} parent=11 // pred_check
        %p959 = pneg %p822
      $region142: #{up_block_forward.1} parent=11 // pred_check_branch
        %961 = sbr.rel (%p959) target = $region144
      $region143: #{up_block_forward.1} parent=11 // pred_region
        _
      $region144: #{up_block_forward.1} parent=11 // pred_fallthru
        _
    $region12: #{up_block_forward.1} parent=5 // pred_fallthru
      _
    %p962 = scmp.lt.s32.totalorder %s77, 2
    // Predicated region
    $region145: #{up_block_forward.1} parent=5 // pred_check
      %p963 = pneg %p962
    $region146: #{up_block_forward.1} parent=5 // pred_check_branch
      %965 = sbr.rel (%p963) target = $region148
    $region147: #{up_block_forward.1} parent=5 // pred_region
      // Predicated region
      $region149: #{up_block_forward.1} parent=147 // pred_check
        %p966 = pneg %p97
      $region150: #{up_block_forward.1} parent=147 // pred_check_branch
        %968 = sbr.rel (%p966) target = $region152
      $region151: #{up_block_forward.1} parent=147 // pred_region
        %p969 = scmp.lt.s32.totalorder %s77, 1
        %s970 = scalar_select %p969, %s77, 1
        %s971 = smul.addr %s970, 2
        %s972 = smul.addr %s971, 8
        %s973 = scalar_lea.vmem %s1, %s972
      $region152: #{up_block_forward.1} parent=147 // pred_fallthru
        _
      // Predicated region
      $region153: #{up_block_forward.1} parent=147 // pred_check
        %p974 = pneg %p123
      $region154: #{up_block_forward.1} parent=147 // pred_check_branch
        %976 = sbr.rel (%p974) target = $region156
      $region155: #{up_block_forward.1} parent=147 // pred_region
        %p977 = scmp.lt.s32.totalorder %s77, 1
        %s978 = scalar_select %p977, %s77, 1
        %s979 = smul.addr %s978, 2
        %s980 = smul.addr %s979, 8
        %s981 = scalar_lea.vmem %s3, %s980
      $region156: #{up_block_forward.1} parent=147 // pred_fallthru
        _
    $region148: #{up_block_forward.1} parent=5 // pred_fallthru
      _
    %p982 = scmp.le.s32.totalorder 1, %s77
    %p983 = scmp.lt.s32.totalorder %s77, 3
    %p984 = pnand %p982, %p983
    %p985 = pneg %p984
    // Predicated region
    $region157: #{up_block_forward.1} parent=5 // pred_check
      _
    $region158: #{up_block_forward.1} parent=5 // pred_check_branch
      %987 = sbr.rel (%p984) target = $region160
    $region159: #{up_block_forward.1} parent=5 // pred_region
      %s988 = ssub.s32 %s77, 1
      %p989 = scmp.lt.s32.totalorder %s82, 1
      %s990 = scalar_select %p989, %s82, 1
      %s991 = smul.addr %s990, 2
      %s992 = smul.addr %s991, 8
      %s993 = scalar_lea.vmem %s1, %s992
      %p994 = pneg %p103
      %p995 = pneg %p100
      %p996 = scmp.lt.s32.totalorder %s82, 1
      %s997 = scalar_select %p996, %s82, 1
      %s998 = smul.addr %s997, 2
      %s999 = smul.addr %s998, 8
      %s1000 = scalar_lea.vmem %s3, %s999
      %p1001 = pneg %p129
      %p1002 = pneg %p126
      %p1003 = pneg %p150
      %p1004 = pneg %p147
      %p1005 = pneg %p171
      %p1006 = pneg %p168
      %p1007 = pneg %p192
      %p1008 = pneg %p189
      %p1009 = pneg %p213
      %p1010 = pneg %p210
      %p1011 = pneg %p234
      %p1012 = pneg %p231
      %p1013 = pneg %p255
      %p1014 = pneg %p252
      %p1015 = pneg %p276
      %p1016 = pneg %p273
      %p1017 = pneg %p297
      %p1018 = pneg %p294
      %p1019 = pneg %p318
      %p1020 = pneg %p315
      %p1021 = pneg %p339
      %p1022 = pneg %p336
      %p1023 = pneg %p360
      %p1024 = pneg %p357
      %p1025 = pneg %p381
      %p1026 = pneg %p378
      %p1027 = pneg %p402
      %p1028 = pneg %p399
      %p1029 = pneg %p423
      %p1030 = pneg %p420
      %p1031 = pneg %p444
      %p1032 = pneg %p441
      %p1033 = pneg %p465
      %p1034 = pneg %p462
      %p1035 = pneg %p486
      %p1036 = pneg %p483
      %p1037 = pneg %p507
      %p1038 = pneg %p504
      %p1039 = pneg %p528
      %p1040 = pneg %p525
      %p1041 = pneg %p549
      %p1042 = pneg %p546
      %p1043 = pneg %p570
      %p1044 = pneg %p567
      %p1045 = pneg %p591
      %p1046 = pneg %p588
      %p1047 = pneg %p612
      %p1048 = pneg %p609
      %p1049 = pneg %p633
      %p1050 = pneg %p630
      %p1051 = pneg %p654
      %p1052 = pneg %p651
      %p1053 = pneg %p675
      %p1054 = pneg %p672
      %p1055 = pneg %p696
      %p1056 = pneg %p693
      %p1057 = pneg %p717
      %p1058 = pneg %p714
      %p1059 = pneg %p738
      %p1060 = pneg %p735
      %p1061 = pneg %p759
      %p1062 = pneg %p756
      %p1063 = pneg %p780
      %p1064 = pneg %p777
      %p1065 = pneg %p801
      %p1066 = pneg %p798
      %p1067 = pneg %p822
      %p1068 = pneg %p819
      %p1069 = pneg %p848
      %p1070 = pneg %p845
      %p1071 = scmp.lt.s32.totalorder %s82, 1
      %s1072 = scalar_select %p1071, %s82, 1
      %s1073 = smul.addr %s1072, 2
      %s1074 = smul.addr %s1073, 8
      %s1075 = scalar_lea.vmem %s71, %s1074
      %p1076 = scmp.lt.s32.totalorder %s82, 1
      %s1077 = scalar_select %p1076, %s82, 1
      %s1078 = smul.addr %s1077, 2
      %s1079 = smul.addr %s1078, 8
      %s1080 = scalar_lea.vmem %s1, %s1079
      %p1081 = scmp.lt.s32.totalorder %s82, 1
      %s1082 = scalar_select %p1081, %s82, 1
      %s1083 = smul.addr %s1082, 2
      %s1084 = smul.addr %s1083, 8
      %s1085 = scalar_lea.vmem %s3, %s1084
      %p1086 = scmp.lt.s32.totalorder %s82, 1
      %s1087 = scalar_select %p1086, %s82, 1
      %s1088 = smul.addr %s1087, 2
      %s1089 = smul.addr %s1088, 8
      %s1090 = scalar_lea.vmem %s71, %s1089
      %vm1092 = vcmask 122880
      %1093 = vst.msk [vmem:[#allocation2] sm:$0x1] %vm1092, 0
      %vm1094 = vcmask 123905
      %1095 = vst.msk [vmem:[#allocation2 + $0x8] sm:$0x2] %vm1094, 0
      %v1096 = vld [vmem:[%s1085] sm:$0xff]
      %v1097 = vld [vmem:[%s1085 + $0x8] sm:$0xff]
      %v1098 = vpack.c.bf16 %v1097, %v1096
      %v1099 = vld [vmem:[%s1080] sm:$0xff]
      %v1100 = vld [vmem:[%s1080 + $0x8] sm:$0xff]
      %v1101 = vpack.c.bf16 %v1100, %v1099
      %v1102 = vld [vmem:[%s27] sm:$0xf]
      %vm1103 = vcmask 64512
      %v1105 = vsel %vm1103, %v1101, 0
      %vm1107 = vcmask 1043456
      %v1109 = vsel %vm1107, %v1102, 0
      %1111 = vmatprep.subr.bf16.mxu0 0
      %1112 = vmatpush1.bf16.msra.mxu0 %v1109
      %1113 = vmatprep.subr.bf16.mxu0 0
      %1114 = vmatpush1.bf16.msra.mxu0 0
      %1115 = vmatprep.subr.bf16.mxu0 0
      %1116 = vmatpush1.bf16.msra.mxu0 0
      %1117 = vmatprep.subr.bf16.mxu0 0
      %1118 = vmatpush1.bf16.msra.mxu0 0
      %1119 = vmatprep.subr.bf16.mxu0 0
      %1120 = vmatpush1.bf16.msra.mxu0 0
      %1121 = vmatprep.subr.bf16.mxu0 0
      %1122 = vmatpush1.bf16.msra.mxu0 0
      %1123 = vmatprep.subr.bf16.mxu0 0
      %1124 = vmatpush1.bf16.msra.mxu0 0
      %1125 = vmatprep.subr.bf16.mxu0 0
      %1126 = vmatpush1.bf16.msra.mxu0 0
      %1127 = vmatprep.subr.bf16.mxu0 0
      %1128 = vmatpush1.bf16.msra.mxu0 0
      %1129 = vmatprep.subr.bf16.mxu0 0
      %1130 = vmatpush1.bf16.msra.mxu0 0
      %1131 = vmatprep.subr.bf16.mxu0 0
      %1132 = vmatpush1.bf16.msra.mxu0 0
      %1133 = vmatprep.subr.bf16.mxu0 0
      %1134 = vmatpush1.bf16.msra.mxu0 0
      %1135 = vmatprep.subr.bf16.mxu0 0
      %1136 = vmatpush1.bf16.msra.mxu0 0
      %1137 = vmatprep.subr.bf16.mxu0 0
      %1138 = vmatpush1.bf16.msra.mxu0 0
      %1139 = vmatprep.subr.bf16.mxu0 0
      %1140 = vmatpush1.bf16.msra.mxu0 0
      %1141 = vmatprep.subr.bf16.mxu0 0
      %1142 = vmatpush1.bf16.msra.mxu0 0
      %1143 = vmatprep.mubr.bf16.mxu0 0
      %1144 = vmatmul.mubr.bf16.gmra.mrb[0].mxu0 %v1105
      %v1145 = vpop.f32.mrb[0].mxu0
      %v1146 = vadd.f32 0.0, %v1145
      %v1147 = vpop.f32.mrb[0].mxu0
      %v1148 = vpop.f32.mrb[0].mxu0
      %v1149 = vadd.f32 0.0, %v1148
      %v1150 = vpop.f32.mrb[0].mxu0
      %1151 = vdwg.mxu0
      %v1153 = vunpack.c.l.b16 %v1101
      %v1154 = vunpack.c.h.b16 %v1101
      %v1155 = vpack.c.b16 %v1153, %v1153
      %v1156 = vpack.c.b16 %v1154, %v1154
      %vm1157 = vcmask 1040384
      %vm1158 = vcmask 1044484
      %vm1159 = vmor %vm1157, %vm1158
      %v1160 = vrot.slane %v1155, 7
      %v1161 = vrot.slane %v1160, 4
      %v1162 = vrot.slane %v1156, 7
      %v1163 = vsel %vm1159, %v1161, %v1162
      %v1164 = vrot.slane %v1162, 4
      %vm1168 = vcmask 60417
      %1169 = vst.msk [vmem:[#allocation2] sm:$0xe] %vm1168, %v1160
      %vm1170 = vcmask 60416
      %1171 = vst.msk [vmem:[#allocation2 + $0x4] sm:$0xf] %vm1170, %v1163
      %vm1172 = vcmask 57344
      %1173 = vst.msk [vmem:[#allocation2 + $0x8] sm:$0x1] %vm1172, %v1164
      %v1174 = vld [vmem:[#allocation2] sm:$0xf]
      %v1175 = vld [vmem:[#allocation2 + $0x4] sm:$0xf]
      %v1176 = vld [vmem:[#allocation2 + $0x8] sm:$0x1]
      %v1177 = vld [vmem:[#allocation2] sm:$0xe]
      %v1178 = vld [vmem:[#allocation2 + $0x8] sm:$0x3]
      %v1179 = vld [vmem:[#allocation2] sm:$0xc]
      %v1182 = vunpack.c.l.b16 %v1174
      %v1183 = vunpack.c.l.b16 %v1175
      %v1184 = vpack.c.b16 %v1183, %v1182
      %v1186 = vunpack.c.l.b16 %v1176
      %v1187 = vpack.c.b16 %v1186, %v1186
      %vm1188 = vsmask.f32 7424
      %v1190 = vshrl.u32 %v1184, 16
      %v1192 = vshll.u32 %v1184, 16
      %v1194 = vrot.slane %v1192, 1
      %v1195 = vor.u32 %v1190, %v1194
      %v1197 = vshll.u32 %v1187, 16
      %v1199 = vrot.slane %v1197, 1
      %v1200 = vsel %vm1188, %v1195, %v1199
      %1201 = vrot.lane.b32.xlu0 %v1200, 8
      %v1202 = vpop.permute.xlu0 %1201
      %v1204 = vunpack.c.l.b16 %v1177
      %v1205 = vpack.c.b16 %v1183, %v1204
      %vm1206 = vcmask 1046528
      %v1207 = vrot.slane %v1205, 1
      %v1208 = vrot.slane %v1187, 1
      %v1209 = vsel %vm1206, %v1207, %v1208
      %1210 = vrot.lane.b32.xlu0 %v1209, 16
      %v1211 = vpop.permute.xlu0 %1210
      %v1213 = vunpack.c.l.b16 %v1178
      %v1214 = vpack.c.b16 %v1213, %v1213
      %vm1215 = vsmask.f32 6400
      %v1217 = vshrl.u32 %v1205, 16
      %v1219 = vrot.slane %v1217, 1
      %v1220 = vshll.u32 %v1205, 16
      %v1222 = vrot.slane %v1220, 2
      %v1223 = vor.u32 %v1219, %v1222
      %v1225 = vshrl.u32 %v1214, 16
      %v1227 = vrot.slane %v1225, 1
      %v1228 = vshll.u32 %v1214, 16
      %v1230 = vrot.slane %v1228, 2
      %v1231 = vor.u32 %v1227, %v1230
      %v1232 = vsel %vm1215, %v1223, %v1231
      %1233 = vrot.lane.b32.xlu0 %v1232, 24
      %v1234 = vpop.permute.xlu0 %1233
      %v1236 = vunpack.c.l.b16 %v1179
      %v1237 = vpack.c.b16 %v1183, %v1236
      %vm1238 = vcmask 1045504
      %v1239 = vrot.slane %v1237, 2
      %v1240 = vrot.slane %v1214, 2
      %v1241 = vsel %vm1238, %v1239, %v1240
      %1242 = vrot.lane.b32.xlu0 %v1241, 32
      %v1243 = vpop.permute.xlu0 %1242
      %v1245 = vsel %vm1103, %v1184, %v1202
      %vm1246 = vcmask 130048
      %v1248 = vsel %vm1246, %v1245, %v1211
      %vm1249 = vcmask 195584
      %v1251 = vsel %vm1249, %v1248, %v1234
      %vm1252 = vcmask 261120
      %v1254 = vsel %vm1252, %v1251, %v1243
      %v1255 = vld [vmem:[%s5] sm:$0xf]
      %v1256 = vld [vmem:[%s5 + $0x4] sm:$0xf]
      %v1257 = vld [vmem:[%s5 + $0x8] sm:$0xf]
      %v1258 = vld [vmem:[%s5 + $0xc] sm:$0xf]
      %v1259 = vld [vmem:[%s5 + $0x10] sm:$0xf]
      %v1260 = vld [vmem:[%s7] sm:$0x1]
      %v1262 = vlaneseq
      %v1263 = vshrl.u32 %v1262, 7
      %v1264 = vsub.s32 0, %v1263
      %v1265 = vrot.slane %v1260, %v1264
      %v1272 = vunpack.c.l.b16 %v1255
      %v1273 = vunpack.c.l.b16 %v1256
      %v1274 = vunpack.c.l.b16 %v1257
      %v1275 = vunpack.c.l.b16 %v1258
      %v1276 = vunpack.c.l.b16 %v1259
      %v1277 = vpack.c.b16 %v1273, %v1272
      %v1278 = vpack.c.b16 %v1275, %v1274
      %v1279 = vpack.c.b16 %v1276, %v1276
      %vm1282 = vcmask 326656
      %v1283 = vsel %vm1282, %v1254, 0
      %v1286 = vsel %vm1107, %v1279, 0
      %1288 = vmatprep.subr.bf16.mxu0 0
      %1289 = vmatpush1.bf16.msra.mxu0 %v1277
      %1290 = vmatprep.subr.bf16.mxu0 0
      %1291 = vmatpush1.bf16.msra.mxu0 %v1278
      %1292 = vmatprep.subr.bf16.mxu0 0
      %1293 = vmatpush1.bf16.msra.mxu0 %v1286
      %1294 = vmatprep.subr.bf16.mxu0 0
      %1295 = vmatpush1.bf16.msra.mxu0 0
      %1296 = vmatprep.subr.bf16.mxu0 0
      %1297 = vmatpush1.bf16.msra.mxu0 0
      %1298 = vmatprep.subr.bf16.mxu0 0
      %1299 = vmatpush1.bf16.msra.mxu0 0
      %1300 = vmatprep.subr.bf16.mxu0 0
      %1301 = vmatpush1.bf16.msra.mxu0 0
      %1302 = vmatprep.subr.bf16.mxu0 0
      %1303 = vmatpush1.bf16.msra.mxu0 0
      %1304 = vmatprep.subr.bf16.mxu0 0
      %1305 = vmatpush1.bf16.msra.mxu0 0
      %1306 = vmatprep.subr.bf16.mxu0 0
      %1307 = vmatpush1.bf16.msra.mxu0 0
      %1308 = vmatprep.subr.bf16.mxu0 0
      %1309 = vmatpush1.bf16.msra.mxu0 0
      %1310 = vmatprep.subr.bf16.mxu0 0
      %1311 = vmatpush1.bf16.msra.mxu0 0
      %1312 = vmatprep.subr.bf16.mxu0 0
      %1313 = vmatpush1.bf16.msra.mxu0 0
      %1314 = vmatprep.subr.bf16.mxu0 0
      %1315 = vmatpush1.bf16.msra.mxu0 0
      %1316 = vmatprep.subr.bf16.mxu0 0
      %1317 = vmatpush1.bf16.msra.mxu0 0
      %1318 = vmatprep.subr.bf16.mxu0 0
      %1319 = vmatpush1.bf16.msra.mxu0 0
      %1320 = vmatprep.mubr.bf16.mxu0 0
      %1321 = vmatmul.mubr.bf16.gmra.mrb[0].mxu0 %v1283
      %v1322 = vpop.f32.mrb[0].mxu0
      %v1323 = vadd.f32 %v1265, %v1322
      %v1324 = vpop.f32.mrb[0].mxu0
      %v1325 = vpop.f32.mrb[0].mxu0
      %v1326 = vadd.f32 %v1265, %v1325
      %v1327 = vpop.f32.mrb[0].mxu0
      %1328 = vdwg.mxu0
      %v1329 = vld [vmem:[%s9] sm:$0x1]
      %v1330 = vld [vmem:[%s11] sm:$0x1]
      %v1331 = vsel %vm1246, %v1323, 0.0
      %v1332 = vsel %vm1246, %v1326, 0.0
      %v1333 = vadd.f32 %v1331, %v1332
      %1334 = vadd.xlane.f32.xlu0 %v1333
      %v1335 = vpop.xlane.xlu0 %1334
      %v1336 = vrot.slane %v1335, 4
      %v1337 = vadd.f32 %v1335, %v1336
      %v1338 = vrot.slane %v1337, 2
      %v1339 = vadd.f32 %v1337, %v1338
      %v1340 = vrot.slane %v1339, 1
      %v1341 = vadd.f32 %v1339, %v1340
      %s1342 = vtos %v1341
      %v1343 = vstv %s1342
      %v1344 = vmul.f32 %v1343, 0.00390625
      %v1345 = vmul.f32 %v1323, %v1323
      %v1346 = vmul.f32 %v1326, %v1326
      %v1347 = vsel %vm1246, %v1345, 0.0
      %v1348 = vsel %vm1246, %v1346, 0.0
      %v1349 = vadd.f32 %v1347, %v1348
      %1350 = vadd.xlane.f32.xlu0 %v1349
      %v1351 = vpop.xlane.xlu0 %1350
      %v1352 = vrot.slane %v1351, 4
      %v1353 = vadd.f32 %v1351, %v1352
      %v1354 = vrot.slane %v1353, 2
      %v1355 = vadd.f32 %v1353, %v1354
      %v1356 = vrot.slane %v1355, 1
      %v1357 = vadd.f32 %v1355, %v1356
      %s1358 = vtos %v1357
      %v1359 = vstv %s1358
      %v1360 = vmul.f32 %v1359, 0.00390625
      %v1361 = vmul.f32 %v1344, %v1344
      %v1362 = vsub.f32 %v1360, %v1361
      %v1363 = vsub.f32 %v1323, %v1344
      %v1364 = vsub.f32 %v1326, %v1344
      %v1365 = vadd.f32 %v1362, 1e-05
      %v1366 = vrsqrt.pop %v1365
      %v1367 = vmul.f32 %v1363, %v1366
      %v1368 = vmul.f32 %v1364, %v1366
      %v1370 = vlaneseq
      %v1371 = vshrl.u32 %v1370, 7
      %v1372 = vsub.s32 0, %v1371
      %v1373 = vrot.slane %v1329, %v1372
      %v1375 = vmul.f32 %v1367, %v1373
      %v1376 = vmul.f32 %v1368, %v1373
      %v1378 = vlaneseq
      %v1379 = vshrl.u32 %v1378, 7
      %v1380 = vsub.s32 0, %v1379
      %v1381 = vrot.slane %v1330, %v1380
      %v1383 = vadd.f32 %v1375, %v1381
      %v1384 = vadd.f32 %v1376, %v1381
      %v1385 = vld [vmem:[%s13] sm:$0xf]
      %v1386 = vld [vmem:[%s15] sm:$0x1]
      %v1388 = vlaneseq
      %v1389 = vshrl.u32 %v1388, 7
      %v1390 = vsub.s32 0, %v1389
      %v1391 = vrot.slane %v1386, %v1390
      %v1394 = vsel %vm1103, %v1098, 0
      %v1397 = vsel %vm1107, %v1385, 0
      %1399 = vmatprep.subr.bf16.mxu0 0
      %1400 = vmatpush1.bf16.msra.mxu0 %v1397
      %1401 = vmatprep.subr.bf16.mxu0 0
      %1402 = vmatpush1.bf16.msra.mxu0 0
      %1403 = vmatprep.subr.bf16.mxu0 0
      %1404 = vmatpush1.bf16.msra.mxu0 0
      %1405 = vmatprep.subr.bf16.mxu0 0
      %1406 = vmatpush1.bf16.msra.mxu0 0
      %1407 = vmatprep.subr.bf16.mxu0 0
      %1408 = vmatpush1.bf16.msra.mxu0 0
      %1409 = vmatprep.subr.bf16.mxu0 0
      %1410 = vmatpush1.bf16.msra.mxu0 0
      %1411 = vmatprep.subr.bf16.mxu0 0
      %1412 = vmatpush1.bf16.msra.mxu0 0
      %1413 = vmatprep.subr.bf16.mxu0 0
      %1414 = vmatpush1.bf16.msra.mxu0 0
      %1415 = vmatprep.subr.bf16.mxu0 0
      %1416 = vmatpush1.bf16.msra.mxu0 0
      %1417 = vmatprep.subr.bf16.mxu0 0
      %1418 = vmatpush1.bf16.msra.mxu0 0
      %1419 = vmatprep.subr.bf16.mxu0 0
      %1420 = vmatpush1.bf16.msra.mxu0 0
      %1421 = vmatprep.subr.bf16.mxu0 0
      %1422 = vmatpush1.bf16.msra.mxu0 0
      %1423 = vmatprep.subr.bf16.mxu0 0
      %1424 = vmatpush1.bf16.msra.mxu0 0
      %1425 = vmatprep.subr.bf16.mxu0 0
      %1426 = vmatpush1.bf16.msra.mxu0 0
      %1427 = vmatprep.subr.bf16.mxu0 0
      %1428 = vmatpush1.bf16.msra.mxu0 0
      %1429 = vmatprep.subr.bf16.mxu0 0
      %1430 = vmatpush1.bf16.msra.mxu0 0
      %1431 = vmatprep.mubr.bf16.mxu0 0
      %1432 = vmatmul.mubr.bf16.gmra.mrb[0].mxu0 %v1394
      %v1433 = vpop.f32.mrb[0].mxu0
      %v1434 = vadd.f32 %v1391, %v1433
      %v1435 = vpop.f32.mrb[0].mxu0
      %v1436 = vpop.f32.mrb[0].mxu0
      %v1437 = vadd.f32 %v1391, %v1436
      %v1438 = vpop.f32.mrb[0].mxu0
      %1439 = vdwg.mxu0
      %v1440 = vmul.f32 %v1383, 0.70710677
      %v1441 = vmul.f32 %v1384, 0.70710677
      %v1442 = vand.u32 2147483647, %v1440
      %v1443 = vand.u32 2147483647, %v1441
      %v1444 = vmul.f32 %v1442, 0.3275911
      %v1445 = vmul.f32 %v1443, 0.3275911
      %v1446 = vadd.f32 %v1444, 1.0
      %v1447 = vadd.f32 %v1445, 1.0
      %v1448 = vrcp.pop %v1446
      %v1449 = vrcp.pop %v1447
      %v1450 = vmul.f32 %v1448, 1.0614054
      %v1451 = vmul.f32 %v1449, 1.0614054
      %v1452 = vsub.f32 %v1450, 1.4531521
      %v1453 = vsub.f32 %v1451, 1.4531521
      %v1454 = vmul.f32 %v1452, %v1448
      %v1455 = vmul.f32 %v1453, %v1449
      %v1456 = vadd.f32 %v1454, 1.4214138
      %v1457 = vadd.f32 %v1455, 1.4214138
      %v1458 = vmul.f32 %v1456, %v1448
      %v1459 = vmul.f32 %v1457, %v1449
      %v1460 = vsub.f32 %v1458, 0.28449672
      %v1461 = vsub.f32 %v1459, 0.28449672
      %v1462 = vmul.f32 %v1460, %v1448
      %v1463 = vmul.f32 %v1461, %v1449
      %v1464 = vadd.f32 %v1462, 0.2548296
      %v1465 = vadd.f32 %v1463, 0.2548296
      %v1466 = vmul.f32 %v1464, %v1448
      %v1467 = vmul.f32 %v1465, %v1449
      %v1468 = vsub.f32 0.0, %v1442
      %v1469 = vsub.f32 0.0, %v1443
      %v1470 = vmul.f32 %v1468, %v1442
      %v1471 = vmul.f32 %v1469, %v1443
      %v1472 = vmul.f32 %v1470, 1.442695
      %v1473 = vpow.pop %v1472
      %v1474 = vmul.f32 %v1471, 1.442695
      %v1475 = vpow.pop %v1474
      %v1476 = vmul.f32 %v1466, %v1473
      %v1477 = vmul.f32 %v1467, %v1475
      %v1478 = vsub.f32 1.0, %v1476
      %v1479 = vsub.f32 1.0, %v1477
      %vm1480 = vcmp.ge.f32.partialorder %v1440, 0.0
      %vm1481 = vcmp.ge.f32.partialorder %v1441, 0.0
      %v1482 = vsub.f32 0.0, %v1478
      %v1483 = vsub.f32 0.0, %v1479
      %v1484 = vsel %vm1480, %v1478, %v1482
      %v1485 = vsel %vm1481, %v1479, %v1483
      %v1486 = vmul.f32 %v1383, 0.5
      %v1487 = vmul.f32 %v1384, 0.5
      %v1488 = vadd.f32 %v1484, 1.0
      %v1489 = vadd.f32 %v1485, 1.0
      %v1490 = vmul.f32 %v1486, %v1488
      %v1491 = vmul.f32 %v1487, %v1489
      %v1492 = vpack.c.bf16 %v1491, %v1490
      %v1494 = vunpack.c.l.b16 %v1492
      %v1495 = vunpack.c.h.b16 %v1492
      %v1496 = vpack.c.b16 %v1494, %v1494
      %v1497 = vpack.c.b16 %v1495, %v1495
      %v1498 = vrot.slane %v1496, 7
      %v1499 = vrot.slane %v1498, 4
      %v1500 = vrot.slane %v1497, 7
      %v1501 = vsel %vm1159, %v1499, %v1500
      %v1502 = vrot.slane %v1500, 4
      %vm1506 = vcmask 125953
      %1507 = vst.msk [vmem:[#allocation2] sm:$0xe] %vm1506, %v1498
      %vm1508 = vcmask 125952
      %1509 = vst.msk [vmem:[#allocation2 + $0x4] sm:$0xf] %vm1508, %v1501
      %1510 = vst.msk [vmem:[#allocation2 + $0x8] sm:$0x1] %vm1092, %v1502
      %v1511 = vld [vmem:[#allocation2] sm:$0xf]
      %v1512 = vld [vmem:[#allocation2 + $0x4] sm:$0xf]
      %v1513 = vld [vmem:[#allocation2 + $0x8] sm:$0x1]
      %v1514 = vld [vmem:[#allocation2] sm:$0xe]
      %v1515 = vld [vmem:[#allocation2 + $0x8] sm:$0x3]
      %v1516 = vld [vmem:[#allocation2] sm:$0xc]
      %v1519 = vunpack.c.l.b16 %v1511
      %v1520 = vunpack.c.l.b16 %v1512
      %v1521 = vpack.c.b16 %v1520, %v1519
      %v1523 = vunpack.c.l.b16 %v1513
      %v1524 = vpack.c.b16 %v1523, %v1523
      %v1526 = vshrl.u32 %v1521, 16
      %v1528 = vshll.u32 %v1521, 16
      %v1530 = vrot.slane %v1528, 1
      %v1531 = vor.u32 %v1526, %v1530
      %v1533 = vshll.u32 %v1524, 16
      %v1535 = vrot.slane %v1533, 1
      %v1536 = vsel %vm1188, %v1531, %v1535
      %1537 = vrot.lane.b32.xlu0 %v1536, 16
      %v1538 = vpop.permute.xlu0 %1537
      %v1540 = vunpack.c.l.b16 %v1514
      %v1541 = vpack.c.b16 %v1520, %v1540
      %v1542 = vrot.slane %v1541, 1
      %v1543 = vrot.slane %v1524, 1
      %v1544 = vsel %vm1206, %v1542, %v1543
      %1545 = vrot.lane.b32.xlu0 %v1544, 32
      %v1546 = vpop.permute.xlu0 %1545
      %v1548 = vunpack.c.l.b16 %v1515
      %v1549 = vpack.c.b16 %v1548, %v1548
      %v1551 = vshrl.u32 %v1541, 16
      %v1553 = vrot.slane %v1551, 1
      %v1554 = vshll.u32 %v1541, 16
      %v1556 = vrot.slane %v1554, 2
      %v1557 = vor.u32 %v1553, %v1556
      %v1559 = vshrl.u32 %v1549, 16
      %v1561 = vrot.slane %v1559, 1
      %v1562 = vshll.u32 %v1549, 16
      %v1564 = vrot.slane %v1562, 2
      %v1565 = vor.u32 %v1561, %v1564
      %v1566 = vsel %vm1215, %v1557, %v1565
      %1567 = vrot.lane.b32.xlu0 %v1566, 48
      %v1568 = vpop.permute.xlu0 %1567
      %v1570 = vunpack.c.l.b16 %v1516
      %v1571 = vpack.c.b16 %v1520, %v1570
      %v1572 = vrot.slane %v1571, 2
      %v1573 = vrot.slane %v1549, 2
      %v1574 = vsel %vm1238, %v1572, %v1573
      %1575 = vrot.lane.b32.xlu0 %v1574, 64
      %v1576 = vpop.permute.xlu0 %1575
      %v1578 = vsel %vm1246, %v1521, %v1538
      %v1580 = vsel %vm1252, %v1578, %v1546
      %vm1581 = vcmask 392192
      %v1583 = vsel %vm1581, %v1580, %v1568
      %vm1584 = vcmask 523264
      %v1586 = vsel %vm1584, %v1583, %v1576
      %v1587 = vld [vmem:[%s17] sm:$0xf]
      %v1588 = vld [vmem:[%s17 + $0x4] sm:$0xf]
      %v1589 = vld [vmem:[%s17 + $0x8] sm:$0xf]
      %v1590 = vld [vmem:[%s17 + $0xc] sm:$0xf]
      %v1591 = vld [vmem:[%s17 + $0x10] sm:$0xf]
      %v1592 = vld [vmem:[%s17 + $0x14] sm:$0xf]
      %v1593 = vld [vmem:[%s17 + $0x18] sm:$0xf]
      %v1594 = vld [vmem:[%s17 + $0x1c] sm:$0xf]
      %v1595 = vld [vmem:[%s17 + $0x20] sm:$0xf]
      %v1596 = vld [vmem:[%s17 + $0x24] sm:$0xf]
      %v1597 = vmul.f32 %v1434, 0.70710677
      %v1598 = vmul.f32 %v1437, 0.70710677
      %v1599 = vand.u32 2147483647, %v1597
      %v1600 = vand.u32 2147483647, %v1598
      %v1601 = vmul.f32 %v1599, 0.3275911
      %v1602 = vmul.f32 %v1600, 0.3275911
      %v1603 = vadd.f32 %v1601, 1.0
      %v1604 = vadd.f32 %v1602, 1.0
      %v1605 = vrcp.pop %v1603
      %v1606 = vrcp.pop %v1604
      %v1607 = vmul.f32 %v1605, 1.0614054
      %v1608 = vmul.f32 %v1606, 1.0614054
      %v1609 = vsub.f32 %v1607, 1.4531521
      %v1610 = vsub.f32 %v1608, 1.4531521
      %v1611 = vmul.f32 %v1609, %v1605
      %v1612 = vmul.f32 %v1610, %v1606
      %v1613 = vadd.f32 %v1611, 1.4214138
      %v1614 = vadd.f32 %v1612, 1.4214138
      %v1615 = vmul.f32 %v1613, %v1605
      %v1616 = vmul.f32 %v1614, %v1606
      %v1617 = vsub.f32 %v1615, 0.28449672
      %v1618 = vsub.f32 %v1616, 0.28449672
      %v1619 = vmul.f32 %v1617, %v1605
      %v1620 = vmul.f32 %v1618, %v1606
      %v1621 = vadd.f32 %v1619, 0.2548296
      %v1622 = vadd.f32 %v1620, 0.2548296
      %v1623 = vmul.f32 %v1621, %v1605
      %v1624 = vmul.f32 %v1622, %v1606
      %v1625 = vsub.f32 0.0, %v1599
      %v1626 = vsub.f32 0.0, %v1600
      %v1627 = vmul.f32 %v1625, %v1599
      %v1628 = vmul.f32 %v1626, %v1600
      %v1629 = vmul.f32 %v1627, 1.442695
      %v1630 = vpow.pop %v1629
      %v1631 = vmul.f32 %v1628, 1.442695
      %v1632 = vpow.pop %v1631
      %v1633 = vmul.f32 %v1623, %v1630
      %v1634 = vmul.f32 %v1624, %v1632
      %v1635 = vsub.f32 1.0, %v1633
      %v1636 = vsub.f32 1.0, %v1634
      %vm1637 = vcmp.ge.f32.partialorder %v1597, 0.0
      %vm1638 = vcmp.ge.f32.partialorder %v1598, 0.0
      %v1639 = vsub.f32 0.0, %v1635
      %v1640 = vsub.f32 0.0, %v1636
      %v1641 = vsel %vm1637, %v1635, %v1639
      %v1642 = vsel %vm1638, %v1636, %v1640
      %v1643 = vmul.f32 %v1434, 0.5
      %v1644 = vmul.f32 %v1437, 0.5
      %v1645 = vadd.f32 %v1641, 1.0
      %v1646 = vadd.f32 %v1642, 1.0
      %v1647 = vmul.f32 %v1643, %v1645
      %v1648 = vmul.f32 %v1644, %v1646
      %v1649 = vpack.c.bf16 %v1648, %v1647
      %v1651 = vunpack.c.l.b16 %v1649
      %v1652 = vunpack.c.h.b16 %v1649
      %v1653 = vpack.c.b16 %v1651, %v1651
      %v1654 = vpack.c.b16 %v1652, %v1652
      %v1655 = vrot.slane %v1653, 7
      %v1656 = vrot.slane %v1655, 4
      %v1657 = vrot.slane %v1654, 7
      %v1658 = vsel %vm1159, %v1656, %v1657
      %v1659 = vrot.slane %v1657, 4
      %1663 = vst.msk [vmem:[#allocation2] sm:$0xe] %vm1506, %v1655
      %1664 = vst.msk [vmem:[#allocation2 + $0x4] sm:$0xf] %vm1508, %v1658
      %1665 = vst.msk [vmem:[#allocation2 + $0x8] sm:$0x1] %vm1092, %v1659
      %v1666 = vld [vmem:[#allocation2] sm:$0xf]
      %v1667 = vld [vmem:[#allocation2 + $0x4] sm:$0xf]
      %v1668 = vld [vmem:[#allocation2 + $0x8] sm:$0x1]
      %v1669 = vld [vmem:[#allocation2] sm:$0xe]
      %v1670 = vld [vmem:[#allocation2 + $0x8] sm:$0x3]
      %v1671 = vld [vmem:[#allocation2] sm:$0xc]
      %v1674 = vunpack.c.l.b16 %v1666
      %v1675 = vunpack.c.l.b16 %v1667
      %v1676 = vpack.c.b16 %v1675, %v1674
      %v1678 = vunpack.c.l.b16 %v1668
      %v1679 = vpack.c.b16 %v1678, %v1678
      %v1681 = vshrl.u32 %v1676, 16
      %v1683 = vshll.u32 %v1676, 16
      %v1685 = vrot.slane %v1683, 1
      %v1686 = vor.u32 %v1681, %v1685
      %v1688 = vshll.u32 %v1679, 16
      %v1690 = vrot.slane %v1688, 1
      %v1691 = vsel %vm1188, %v1686, %v1690
      %1692 = vrot.lane.b32.xlu0 %v1691, 16
      %v1693 = vpop.permute.xlu0 %1692
      %v1695 = vunpack.c.l.b16 %v1669
      %v1696 = vpack.c.b16 %v1675, %v1695
      %v1697 = vrot.slane %v1696, 1
      %v1698 = vrot.slane %v1679, 1
      %v1699 = vsel %vm1206, %v1697, %v1698
      %1700 = vrot.lane.b32.xlu0 %v1699, 32
      %v1701 = vpop.permute.xlu0 %1700
      %v1703 = vunpack.c.l.b16 %v1670
      %v1704 = vpack.c.b16 %v1703, %v1703
      %v1706 = vshrl.u32 %v1696, 16
      %v1708 = vrot.slane %v1706, 1
      %v1709 = vshll.u32 %v1696, 16
      %v1711 = vrot.slane %v1709, 2
      %v1712 = vor.u32 %v1708, %v1711
      %v1714 = vshrl.u32 %v1704, 16
      %v1716 = vrot.slane %v1714, 1
      %v1717 = vshll.u32 %v1704, 16
      %v1719 = vrot.slane %v1717, 2
      %v1720 = vor.u32 %v1716, %v1719
      %v1721 = vsel %vm1215, %v1712, %v1720
      %1722 = vrot.lane.b32.xlu0 %v1721, 48
      %v1723 = vpop.permute.xlu0 %1722
      %v1725 = vunpack.c.l.b16 %v1671
      %v1726 = vpack.c.b16 %v1675, %v1725
      %v1727 = vrot.slane %v1726, 2
      %v1728 = vrot.slane %v1704, 2
      %v1729 = vsel %vm1238, %v1727, %v1728
      %1730 = vrot.lane.b32.xlu0 %v1729, 64
      %v1731 = vpop.permute.xlu0 %1730
      %v1733 = vsel %vm1246, %v1676, %v1693
      %v1735 = vsel %vm1252, %v1733, %v1701
      %v1737 = vsel %vm1581, %v1735, %v1723
      %v1739 = vsel %vm1584, %v1737, %v1731
      %v1740 = vld [vmem:[%s19] sm:$0xf]
      %v1741 = vld [vmem:[%s19 + $0x4] sm:$0xf]
      %v1742 = vld [vmem:[%s19 + $0x8] sm:$0xf]
      %v1743 = vld [vmem:[%s19 + $0xc] sm:$0xf]
      %v1744 = vld [vmem:[%s19 + $0x10] sm:$0xf]
      %v1745 = vld [vmem:[%s19 + $0x14] sm:$0xf]
      %v1746 = vld [vmem:[%s19 + $0x18] sm:$0xf]
      %v1747 = vld [vmem:[%s19 + $0x1c] sm:$0xf]
      %v1748 = vld [vmem:[%s19 + $0x20] sm:$0xf]
      %v1749 = vld [vmem:[%s19 + $0x24] sm:$0xf]
      %v1760 = vunpack.c.l.b16 %v1740
      %v1761 = vunpack.c.l.b16 %v1741
      %v1762 = vunpack.c.l.b16 %v1742
      %v1763 = vunpack.c.l.b16 %v1743
      %v1764 = vunpack.c.l.b16 %v1744
      %v1765 = vunpack.c.l.b16 %v1745
      %v1766 = vunpack.c.l.b16 %v1746
      %v1767 = vunpack.c.l.b16 %v1747
      %v1768 = vunpack.c.l.b16 %v1748
      %v1769 = vunpack.c.l.b16 %v1749
      %v1770 = vpack.c.b16 %v1761, %v1760
      %v1771 = vpack.c.b16 %v1763, %v1762
      %v1772 = vpack.c.b16 %v1765, %v1764
      %v1773 = vpack.c.b16 %v1767, %v1766
      %v1774 = vpack.c.b16 %v1769, %v1768
      %vm1780 = vcmask 654336
      %v1781 = vsel %vm1780, %v1739, 0
      %1783 = vmatprep.subr.bf16.mxu0 0
      %1784 = vmatpush1.bf16.msra.mxu0 %v1770
      %1785 = vmatprep.subr.bf16.mxu0 0
      %1786 = vmatpush1.bf16.msra.mxu0 %v1771
      %1787 = vmatprep.subr.bf16.mxu0 0
      %1788 = vmatpush1.bf16.msra.mxu0 %v1772
      %1789 = vmatprep.subr.bf16.mxu0 0
      %1790 = vmatpush1.bf16.msra.mxu0 %v1773
      %1791 = vmatprep.subr.bf16.mxu0 0
      %1792 = vmatpush1.bf16.msra.mxu0 %v1774
      %1793 = vmatprep.subr.bf16.mxu0 0
      %1794 = vmatpush1.bf16.msra.mxu0 0
      %1795 = vmatprep.subr.bf16.mxu0 0
      %1796 = vmatpush1.bf16.msra.mxu0 0
      %1797 = vmatprep.subr.bf16.mxu0 0
      %1798 = vmatpush1.bf16.msra.mxu0 0
      %1799 = vmatprep.subr.bf16.mxu0 0
      %1800 = vmatpush1.bf16.msra.mxu0 0
      %1801 = vmatprep.subr.bf16.mxu0 0
      %1802 = vmatpush1.bf16.msra.mxu0 0
      %1803 = vmatprep.subr.bf16.mxu0 0
      %1804 = vmatpush1.bf16.msra.mxu0 0
      %1805 = vmatprep.subr.bf16.mxu0 0
      %1806 = vmatpush1.bf16.msra.mxu0 0
      %1807 = vmatprep.subr.bf16.mxu0 0
      %1808 = vmatpush1.bf16.msra.mxu0 0
      %1809 = vmatprep.subr.bf16.mxu0 0
      %1810 = vmatpush1.bf16.msra.mxu0 0
      %1811 = vmatprep.subr.bf16.mxu0 0
      %1812 = vmatpush1.bf16.msra.mxu0 0
      %1813 = vmatprep.subr.bf16.mxu0 0
      %1814 = vmatpush1.bf16.msra.mxu0 0
      %1815 = vmatprep.mubr.bf16.mxu0 0
      %1816 = vmatmul.mubr.bf16.gmra.mrb[0].mxu0 %v1781
      %v1817 = vpop.f32.mrb[0].mxu0
      %v1818 = vadd.f32 0.0, %v1817
      %v1819 = vpop.f32.mrb[0].mxu0
      %v1820 = vpop.f32.mrb[0].mxu0
      %v1821 = vadd.f32 0.0, %v1820
      %v1822 = vpop.f32.mrb[0].mxu0
      %1823 = vdwg.mxu0
      %v1834 = vunpack.c.l.b16 %v1587
      %v1835 = vunpack.c.l.b16 %v1588
      %v1836 = vunpack.c.l.b16 %v1589
      %v1837 = vunpack.c.l.b16 %v1590
      %v1838 = vunpack.c.l.b16 %v1591
      %v1839 = vunpack.c.l.b16 %v1592
      %v1840 = vunpack.c.l.b16 %v1593
      %v1841 = vunpack.c.l.b16 %v1594
      %v1842 = vunpack.c.l.b16 %v1595
      %v1843 = vunpack.c.l.b16 %v1596
      %v1844 = vpack.c.b16 %v1835, %v1834
      %v1845 = vpack.c.b16 %v1837, %v1836
      %v1846 = vpack.c.b16 %v1839, %v1838
      %v1847 = vpack.c.b16 %v1841, %v1840
      %v1848 = vpack.c.b16 %v1843, %v1842
      %v1854 = vsel %vm1780, %v1586, 0
      %1856 = vmatprep.subr.bf16.mxu0 0
      %1857 = vmatpush1.bf16.msra.mxu0 %v1844
      %1858 = vmatprep.subr.bf16.mxu0 0
      %1859 = vmatpush1.bf16.msra.mxu0 %v1845
      %1860 = vmatprep.subr.bf16.mxu0 0
      %1861 = vmatpush1.bf16.msra.mxu0 %v1846
      %1862 = vmatprep.subr.bf16.mxu0 0
      %1863 = vmatpush1.bf16.msra.mxu0 %v1847
      %1864 = vmatprep.subr.bf16.mxu0 0
      %1865 = vmatpush1.bf16.msra.mxu0 %v1848
      %1866 = vmatprep.subr.bf16.mxu0 0
      %1867 = vmatpush1.bf16.msra.mxu0 0
      %1868 = vmatprep.subr.bf16.mxu0 0
      %1869 = vmatpush1.bf16.msra.mxu0 0
      %1870 = vmatprep.subr.bf16.mxu0 0
      %1871 = vmatpush1.bf16.msra.mxu0 0
      %1872 = vmatprep.subr.bf16.mxu0 0
      %1873 = vmatpush1.bf16.msra.mxu0 0
      %1874 = vmatprep.subr.bf16.mxu0 0
      %1875 = vmatpush1.bf16.msra.mxu0 0
      %1876 = vmatprep.subr.bf16.mxu0 0
      %1877 = vmatpush1.bf16.msra.mxu0 0
      %1878 = vmatprep.subr.bf16.mxu0 0
      %1879 = vmatpush1.bf16.msra.mxu0 0
      %1880 = vmatprep.subr.bf16.mxu0 0
      %1881 = vmatpush1.bf16.msra.mxu0 0
      %1882 = vmatprep.subr.bf16.mxu0 0
      %1883 = vmatpush1.bf16.msra.mxu0 0
      %1884 = vmatprep.subr.bf16.mxu0 0
      %1885 = vmatpush1.bf16.msra.mxu0 0
      %1886 = vmatprep.subr.bf16.mxu0 0
      %1887 = vmatpush1.bf16.msra.mxu0 0
      %1888 = vmatprep.mubr.bf16.mxu0 0
      %1889 = vmatmul.mubr.bf16.gmra.mrb[0].mxu0 %v1854
      %v1890 = vpop.f32.mrb[0].mxu0
      %v1891 = vadd.f32 %v1818, %v1890
      %v1892 = vpop.f32.mrb[0].mxu0
      %v1893 = vpop.f32.mrb[0].mxu0
      %v1894 = vadd.f32 %v1821, %v1893
      %v1895 = vpop.f32.mrb[0].mxu0
      %1896 = vdwg.mxu0
      %v1897 = vld [vmem:[%s21] sm:$0x1]
      %v1899 = vlaneseq
      %v1900 = vshrl.u32 %v1899, 7
      %v1901 = vsub.s32 0, %v1900
      %v1902 = vrot.slane %v1897, %v1901
      %v1904 = vadd.f32 %v1891, %v1902
      %v1905 = vadd.f32 %v1894, %v1902
      %v1906 = vld [vmem:[%s23] sm:$0x1]
      %v1907 = vld [vmem:[%s25] sm:$0x1]
      %v1908 = vsel %vm1246, %v1904, 0.0
      %v1909 = vsel %vm1246, %v1905, 0.0
      %v1910 = vadd.f32 %v1908, %v1909
      %1911 = vadd.xlane.f32.xlu0 %v1910
      %v1912 = vpop.xlane.xlu0 %1911
      %v1913 = vrot.slane %v1912, 4
      %v1914 = vadd.f32 %v1912, %v1913
      %v1915 = vrot.slane %v1914, 2
      %v1916 = vadd.f32 %v1914, %v1915
      %v1917 = vrot.slane %v1916, 1
      %v1918 = vadd.f32 %v1916, %v1917
      %s1919 = vtos %v1918
      %v1920 = vstv %s1919
      %v1921 = vmul.f32 %v1920, 0.00390625
      %v1922 = vmul.f32 %v1904, %v1904
      %v1923 = vmul.f32 %v1905, %v1905
      %v1924 = vsel %vm1246, %v1922, 0.0
      %v1925 = vsel %vm1246, %v1923, 0.0
      %v1926 = vadd.f32 %v1924, %v1925
      %1927 = vadd.xlane.f32.xlu0 %v1926
      %v1928 = vpop.xlane.xlu0 %1927
      %v1929 = vrot.slane %v1928, 4
      %v1930 = vadd.f32 %v1928, %v1929
      %v1931 = vrot.slane %v1930, 2
      %v1932 = vadd.f32 %v1930, %v1931
      %v1933 = vrot.slane %v1932, 1
      %v1934 = vadd.f32 %v1932, %v1933
      %s1935 = vtos %v1934
      %v1936 = vstv %s1935
      %v1937 = vmul.f32 %v1936, 0.00390625
      %v1938 = vmul.f32 %v1921, %v1921
      %v1939 = vsub.f32 %v1937, %v1938
      %v1940 = vsub.f32 %v1904, %v1921
      %v1941 = vsub.f32 %v1905, %v1921
      %v1942 = vadd.f32 %v1939, 1e-05
      %v1943 = vrsqrt.pop %v1942
      %v1944 = vmul.f32 %v1940, %v1943
      %v1945 = vmul.f32 %v1941, %v1943
      %v1947 = vlaneseq
      %v1948 = vshrl.u32 %v1947, 7
      %v1949 = vsub.s32 0, %v1948
      %v1950 = vrot.slane %v1906, %v1949
      %v1952 = vmul.f32 %v1944, %v1950
      %v1953 = vmul.f32 %v1945, %v1950
      %v1955 = vlaneseq
      %v1956 = vshrl.u32 %v1955, 7
      %v1957 = vsub.s32 0, %v1956
      %v1958 = vrot.slane %v1907, %v1957
      %v1960 = vadd.f32 %v1952, %v1958
      %v1961 = vadd.f32 %v1953, %v1958
      %v1962 = vmul.f32 %v1960, 0.70710677
      %v1963 = vmul.f32 %v1961, 0.70710677
      %v1964 = vand.u32 2147483647, %v1962
      %v1965 = vand.u32 2147483647, %v1963
      %v1966 = vmul.f32 %v1964, 0.3275911
      %v1967 = vmul.f32 %v1965, 0.3275911
      %v1968 = vadd.f32 %v1966, 1.0
      %v1969 = vadd.f32 %v1967, 1.0
      %v1970 = vrcp.pop %v1968
      %v1971 = vrcp.pop %v1969
      %v1972 = vmul.f32 %v1970, 1.0614054
      %v1973 = vmul.f32 %v1971, 1.0614054
      %v1974 = vsub.f32 %v1972, 1.4531521
      %v1975 = vsub.f32 %v1973, 1.4531521
      %v1976 = vmul.f32 %v1974, %v1970
      %v1977 = vmul.f32 %v1975, %v1971
      %v1978 = vadd.f32 %v1976, 1.4214138
      %v1979 = vadd.f32 %v1977, 1.4214138
      %v1980 = vmul.f32 %v1978, %v1970
      %v1981 = vmul.f32 %v1979, %v1971
      %v1982 = vsub.f32 %v1980, 0.28449672
      %v1983 = vsub.f32 %v1981, 0.28449672
      %v1984 = vmul.f32 %v1982, %v1970
      %v1985 = vmul.f32 %v1983, %v1971
      %v1986 = vadd.f32 %v1984, 0.2548296
      %v1987 = vadd.f32 %v1985, 0.2548296
      %v1988 = vmul.f32 %v1986, %v1970
      %v1989 = vmul.f32 %v1987, %v1971
      %v1990 = vsub.f32 0.0, %v1964
      %v1991 = vsub.f32 0.0, %v1965
      %v1992 = vmul.f32 %v1990, %v1964
      %v1993 = vmul.f32 %v1991, %v1965
      %v1994 = vmul.f32 %v1992, 1.442695
      %v1995 = vpow.pop %v1994
      %v1996 = vmul.f32 %v1993, 1.442695
      %v1997 = vpow.pop %v1996
      %v1998 = vmul.f32 %v1988, %v1995
      %v1999 = vmul.f32 %v1989, %v1997
      %v2000 = vsub.f32 1.0, %v1998
      %v2001 = vsub.f32 1.0, %v1999
      %vm2002 = vcmp.ge.f32.partialorder %v1962, 0.0
      %vm2003 = vcmp.ge.f32.partialorder %v1963, 0.0
      %v2004 = vsub.f32 0.0, %v2000
      %v2005 = vsub.f32 0.0, %v2001
      %v2006 = vsel %vm2002, %v2000, %v2004
      %v2007 = vsel %vm2003, %v2001, %v2005
      %v2008 = vmul.f32 %v1960, 0.5
      %v2009 = vmul.f32 %v1961, 0.5
      %v2010 = vadd.f32 %v2006, 1.0
      %v2011 = vadd.f32 %v2007, 1.0
      %v2012 = vmul.f32 %v2008, %v2010
      %v2013 = vmul.f32 %v2009, %v2011
      %v2014 = vadd.f32 %v2012, %v1146
      %v2015 = vadd.f32 %v2013, %v1149
      %v2016 = vpack.c.bf16 %v2015, %v2014
      %v2018 = vunpack.c.l.b16 %v2016
      %v2019 = vunpack.c.h.b16 %v2016
      %v2020 = vpack.c.b16 %v2018, %v2018
      %v2021 = vpack.c.b16 %v2019, %v2019
      %v2022 = vrot.slane %v2020, 7
      %v2023 = vrot.slane %v2022, 4
      %v2024 = vrot.slane %v2021, 7
      %v2025 = vsel %vm1159, %v2023, %v2024
      %v2026 = vrot.slane %v2024, 4
      %2030 = vst.msk [vmem:[#allocation2] sm:$0xe] %vm1506, %v2022
      %2031 = vst.msk [vmem:[#allocation2 + $0x4] sm:$0xf] %vm1508, %v2025
      %2032 = vst.msk [vmem:[#allocation2 + $0x8] sm:$0x1] %vm1092, %v2026
      %v2033 = vld [vmem:[#allocation2] sm:$0xf]
      %v2034 = vld [vmem:[#allocation2 + $0x4] sm:$0xf]
      %v2035 = vld [vmem:[#allocation2 + $0x8] sm:$0x1]
      %v2036 = vld [vmem:[#allocation2] sm:$0xe]
      %v2037 = vld [vmem:[#allocation2 + $0x8] sm:$0x3]
      %v2038 = vld [vmem:[#allocation2] sm:$0xc]
      %v2041 = vunpack.c.l.b16 %v2033
      %v2042 = vunpack.c.l.b16 %v2034
      %v2043 = vpack.c.b16 %v2042, %v2041
      %v2045 = vunpack.c.l.b16 %v2035
      %v2046 = vpack.c.b16 %v2045, %v2045
      %v2048 = vshrl.u32 %v2043, 16
      %v2050 = vshll.u32 %v2043, 16
      %v2052 = vrot.slane %v2050, 1
      %v2053 = vor.u32 %v2048, %v2052
      %v2055 = vshll.u32 %v2046, 16
      %v2057 = vrot.slane %v2055, 1
      %v2058 = vsel %vm1188, %v2053, %v2057
      %2059 = vrot.lane.b32.xlu0 %v2058, 16
      %v2060 = vpop.permute.xlu0 %2059
      %v2062 = vunpack.c.l.b16 %v2036
      %v2063 = vpack.c.b16 %v2042, %v2062
      %v2064 = vrot.slane %v2063, 1
      %v2065 = vrot.slane %v2046, 1
      %v2066 = vsel %vm1206, %v2064, %v2065
      %2067 = vrot.lane.b32.xlu0 %v2066, 32
      %v2068 = vpop.permute.xlu0 %2067
      %v2070 = vunpack.c.l.b16 %v2037
      %v2071 = vpack.c.b16 %v2070, %v2070
      %v2073 = vshrl.u32 %v2063, 16
      %v2075 = vrot.slane %v2073, 1
      %v2076 = vshll.u32 %v2063, 16
      %v2078 = vrot.slane %v2076, 2
      %v2079 = vor.u32 %v2075, %v2078
      %v2081 = vshrl.u32 %v2071, 16
      %v2083 = vrot.slane %v2081, 1
      %v2084 = vshll.u32 %v2071, 16
      %v2086 = vrot.slane %v2084, 2
      %v2087 = vor.u32 %v2083, %v2086
      %v2088 = vsel %vm1215, %v2079, %v2087
      %2089 = vrot.lane.b32.xlu0 %v2088, 48
      %v2090 = vpop.permute.xlu0 %2089
      %v2092 = vunpack.c.l.b16 %v2038
      %v2093 = vpack.c.b16 %v2042, %v2092
      %v2094 = vrot.slane %v2093, 2
      %v2095 = vrot.slane %v2071, 2
      %v2096 = vsel %vm1238, %v2094, %v2095
      %2097 = vrot.lane.b32.xlu0 %v2096, 64
      %v2098 = vpop.permute.xlu0 %2097
      %v2100 = vsel %vm1246, %v2043, %v2060
      %v2102 = vsel %vm1252, %v2100, %v2068
      %v2104 = vsel %vm1581, %v2102, %v2090
      %v2106 = vsel %vm1584, %v2104, %v2098
      %v2107 = vld [vmem:[%s29] sm:$0xf]
      %v2108 = vld [vmem:[%s29 + $0x4] sm:$0xf]
      %v2109 = vld [vmem:[%s29 + $0x8] sm:$0xf]
      %v2110 = vld [vmem:[%s29 + $0xc] sm:$0xf]
      %v2111 = vld [vmem:[%s29 + $0x10] sm:$0xf]
      %v2112 = vld [vmem:[%s29 + $0x14] sm:$0xf]
      %v2113 = vld [vmem:[%s29 + $0x18] sm:$0xf]
      %v2114 = vld [vmem:[%s29 + $0x1c] sm:$0xf]
      %v2115 = vld [vmem:[%s29 + $0x20] sm:$0xf]
      %v2116 = vld [vmem:[%s29 + $0x24] sm:$0xf]
      %v2117 = vld [vmem:[%s31] sm:$0x1]
      %v2119 = vlaneseq
      %v2120 = vshrl.u32 %v2119, 7
      %v2121 = vsub.s32 0, %v2120
      %v2122 = vrot.slane %v2117, %v2121
      %v2134 = vunpack.c.l.b16 %v2107
      %v2135 = vunpack.c.l.b16 %v2108
      %v2136 = vunpack.c.l.b16 %v2109
      %v2137 = vunpack.c.l.b16 %v2110
      %v2138 = vunpack.c.l.b16 %v2111
      %v2139 = vunpack.c.l.b16 %v2112
      %v2140 = vunpack.c.l.b16 %v2113
      %v2141 = vunpack.c.l.b16 %v2114
      %v2142 = vunpack.c.l.b16 %v2115
      %v2143 = vunpack.c.l.b16 %v2116
      %v2144 = vpack.c.b16 %v2135, %v2134
      %v2145 = vpack.c.b16 %v2137, %v2136
      %v2146 = vpack.c.b16 %v2139, %v2138
      %v2147 = vpack.c.b16 %v2141, %v2140
      %v2148 = vpack.c.b16 %v2143, %v2142
      %v2154 = vsel %vm1780, %v2106, 0
      %2156 = vmatprep.subr.bf16.mxu0 0
      %2157 = vmatpush1.bf16.msra.mxu0 %v2144
      %2158 = vmatprep.subr.bf16.mxu0 0
      %2159 = vmatpush1.bf16.msra.mxu0 %v2145
      %2160 = vmatprep.subr.bf16.mxu0 0
      %2161 = vmatpush1.bf16.msra.mxu0 %v2146
      %2162 = vmatprep.subr.bf16.mxu0 0
      %2163 = vmatpush1.bf16.msra.mxu0 %v2147
      %2164 = vmatprep.subr.bf16.mxu0 0
      %2165 = vmatpush1.bf16.msra.mxu0 %v2148
      %2166 = vmatprep.subr.bf16.mxu0 0
      %2167 = vmatpush1.bf16.msra.mxu0 0
      %2168 = vmatprep.subr.bf16.mxu0 0
      %2169 = vmatpush1.bf16.msra.mxu0 0
      %2170 = vmatprep.subr.bf16.mxu0 0
      %2171 = vmatpush1.bf16.msra.mxu0 0
      %2172 = vmatprep.subr.bf16.mxu0 0
      %2173 = vmatpush1.bf16.msra.mxu0 0
      %2174 = vmatprep.subr.bf16.mxu0 0
      %2175 = vmatpush1.bf16.msra.mxu0 0
      %2176 = vmatprep.subr.bf16.mxu0 0
      %2177 = vmatpush1.bf16.msra.mxu0 0
      %2178 = vmatprep.subr.bf16.mxu0 0
      %2179 = vmatpush1.bf16.msra.mxu0 0
      %2180 = vmatprep.subr.bf16.mxu0 0
      %2181 = vmatpush1.bf16.msra.mxu0 0
      %2182 = vmatprep.subr.bf16.mxu0 0
      %2183 = vmatpush1.bf16.msra.mxu0 0
      %2184 = vmatprep.subr.bf16.mxu0 0
      %2185 = vmatpush1.bf16.msra.mxu0 0
      %2186 = vmatprep.subr.bf16.mxu0 0
      %2187 = vmatpush1.bf16.msra.mxu0 0
      %2188 = vmatprep.mubr.bf16.mxu0 0
      %2189 = vmatmul.mubr.bf16.gmra.mrb[0].mxu0 %v2154
      %v2190 = vpop.f32.mrb[0].mxu0
      %v2191 = vadd.f32 %v2122, %v2190
      %v2192 = vpop.f32.mrb[0].mxu0
      %v2193 = vpop.f32.mrb[0].mxu0
      %v2194 = vadd.f32 %v2122, %v2193
      %v2195 = vpop.f32.mrb[0].mxu0
      %2196 = vdwg.mxu0
      %v2197 = vld [vmem:[%s33] sm:$0x1]
      %v2198 = vld [vmem:[%s35] sm:$0x1]
      %v2199 = vsel %vm1246, %v2191, 0.0
      %v2200 = vsel %vm1246, %v2194, 0.0
      %v2201 = vadd.f32 %v2199, %v2200
      %2202 = vadd.xlane.f32.xlu0 %v2201
      %v2203 = vpop.xlane.xlu0 %2202
      %v2204 = vrot.slane %v2203, 4
      %v2205 = vadd.f32 %v2203, %v2204
      %v2206 = vrot.slane %v2205, 2
      %v2207 = vadd.f32 %v2205, %v2206
      %v2208 = vrot.slane %v2207, 1
      %v2209 = vadd.f32 %v2207, %v2208
      %s2210 = vtos %v2209
      %v2211 = vstv %s2210
      %v2212 = vmul.f32 %v2211, 0.00390625
      %v2213 = vmul.f32 %v2191, %v2191
      %v2214 = vmul.f32 %v2194, %v2194
      %v2215 = vsel %vm1246, %v2213, 0.0
      %v2216 = vsel %vm1246, %v2214, 0.0
      %v2217 = vadd.f32 %v2215, %v2216
      %2218 = vadd.xlane.f32.xlu0 %v2217
      %v2219 = vpop.xlane.xlu0 %2218
      %v2220 = vrot.slane %v2219, 4
      %v2221 = vadd.f32 %v2219, %v2220
      %v2222 = vrot.slane %v2221, 2
      %v2223 = vadd.f32 %v2221, %v2222
      %v2224 = vrot.slane %v2223, 1
      %v2225 = vadd.f32 %v2223, %v2224
      %s2226 = vtos %v2225
      %v2227 = vstv %s2226
      %v2228 = vmul.f32 %v2227, 0.00390625
      %v2229 = vmul.f32 %v2212, %v2212
      %v2230 = vsub.f32 %v2228, %v2229
      %v2231 = vsub.f32 %v2191, %v2212
      %v2232 = vsub.f32 %v2194, %v2212
      %v2233 = vadd.f32 %v2230, 1e-05
      %v2234 = vrsqrt.pop %v2233
      %v2235 = vmul.f32 %v2231, %v2234
      %v2236 = vmul.f32 %v2232, %v2234
      %v2238 = vlaneseq
      %v2239 = vshrl.u32 %v2238, 7
      %v2240 = vsub.s32 0, %v2239
      %v2241 = vrot.slane %v2197, %v2240
      %v2243 = vmul.f32 %v2235, %v2241
      %v2244 = vmul.f32 %v2236, %v2241
      %v2246 = vlaneseq
      %v2247 = vshrl.u32 %v2246, 7
      %v2248 = vsub.s32 0, %v2247
      %v2249 = vrot.slane %v2198, %v2248
      %v2251 = vadd.f32 %v2243, %v2249
      %v2252 = vadd.f32 %v2244, %v2249
      %v2253 = vld [vmem:[%s37] sm:$0xf]
      %v2254 = vld [vmem:[%s39] sm:$0x1]
      %v2256 = vlaneseq
      %v2257 = vshrl.u32 %v2256, 7
      %v2258 = vsub.s32 0, %v2257
      %v2259 = vrot.slane %v2254, %v2258
      %v2262 = vsel %vm1107, %v2253, 0
      %2264 = vmatprep.subr.bf16.mxu0 0
      %2265 = vmatpush1.bf16.msra.mxu0 %v2262
      %2266 = vmatprep.subr.bf16.mxu0 0
      %2267 = vmatpush1.bf16.msra.mxu0 0
      %2268 = vmatprep.subr.bf16.mxu0 0
      %2269 = vmatpush1.bf16.msra.mxu0 0
      %2270 = vmatprep.subr.bf16.mxu0 0
      %2271 = vmatpush1.bf16.msra.mxu0 0
      %2272 = vmatprep.subr.bf16.mxu0 0
      %2273 = vmatpush1.bf16.msra.mxu0 0
      %2274 = vmatprep.subr.bf16.mxu0 0
      %2275 = vmatpush1.bf16.msra.mxu0 0
      %2276 = vmatprep.subr.bf16.mxu0 0
      %2277 = vmatpush1.bf16.msra.mxu0 0
      %2278 = vmatprep.subr.bf16.mxu0 0
      %2279 = vmatpush1.bf16.msra.mxu0 0
      %2280 = vmatprep.subr.bf16.mxu0 0
      %2281 = vmatpush1.bf16.msra.mxu0 0
      %2282 = vmatprep.subr.bf16.mxu0 0
      %2283 = vmatpush1.bf16.msra.mxu0 0
      %2284 = vmatprep.subr.bf16.mxu0 0
      %2285 = vmatpush1.bf16.msra.mxu0 0
      %2286 = vmatprep.subr.bf16.mxu0 0
      %2287 = vmatpush1.bf16.msra.mxu0 0
      %2288 = vmatprep.subr.bf16.mxu0 0
      %2289 = vmatpush1.bf16.msra.mxu0 0
      %2290 = vmatprep.subr.bf16.mxu0 0
      %2291 = vmatpush1.bf16.msra.mxu0 0
      %2292 = vmatprep.subr.bf16.mxu0 0
      %2293 = vmatpush1.bf16.msra.mxu0 0
      %2294 = vmatprep.subr.bf16.mxu0 0
      %2295 = vmatpush1.bf16.msra.mxu0 0
      %2296 = vmatprep.mubr.bf16.mxu0 0
      %2297 = vmatmul.mubr.bf16.gmra.mrb[0].mxu0 %v1394
      %v2298 = vpop.f32.mrb[0].mxu0
      %v2299 = vadd.f32 %v2259, %v2298
      %v2300 = vpop.f32.mrb[0].mxu0
      %v2301 = vpop.f32.mrb[0].mxu0
      %v2302 = vadd.f32 %v2259, %v2301
      %v2303 = vpop.f32.mrb[0].mxu0
      %2304 = vdwg.mxu0
      %v2305 = vmul.f32 %v2251, 0.70710677
      %v2306 = vmul.f32 %v2252, 0.70710677
      %v2307 = vand.u32 2147483647, %v2305
      %v2308 = vand.u32 2147483647, %v2306
      %v2309 = vmul.f32 %v2307, 0.3275911
      %v2310 = vmul.f32 %v2308, 0.3275911
      %v2311 = vadd.f32 %v2309, 1.0
      %v2312 = vadd.f32 %v2310, 1.0
      %v2313 = vrcp.pop %v2311
      %v2314 = vrcp.pop %v2312
      %v2315 = vmul.f32 %v2313, 1.0614054
      %v2316 = vmul.f32 %v2314, 1.0614054
      %v2317 = vsub.f32 %v2315, 1.4531521
      %v2318 = vsub.f32 %v2316, 1.4531521
      %v2319 = vmul.f32 %v2317, %v2313
      %v2320 = vmul.f32 %v2318, %v2314
      %v2321 = vadd.f32 %v2319, 1.4214138
      %v2322 = vadd.f32 %v2320, 1.4214138
      %v2323 = vmul.f32 %v2321, %v2313
      %v2324 = vmul.f32 %v2322, %v2314
      %v2325 = vsub.f32 %v2323, 0.28449672
      %v2326 = vsub.f32 %v2324, 0.28449672
      %v2327 = vmul.f32 %v2325, %v2313
      %v2328 = vmul.f32 %v2326, %v2314
      %v2329 = vadd.f32 %v2327, 0.2548296
      %v2330 = vadd.f32 %v2328, 0.2548296
      %v2331 = vmul.f32 %v2329, %v2313
      %v2332 = vmul.f32 %v2330, %v2314
      %v2333 = vsub.f32 0.0, %v2307
      %v2334 = vsub.f32 0.0, %v2308
      %v2335 = vmul.f32 %v2333, %v2307
      %v2336 = vmul.f32 %v2334, %v2308
      %v2337 = vmul.f32 %v2335, 1.442695
      %v2338 = vpow.pop %v2337
      %v2339 = vmul.f32 %v2336, 1.442695
      %v2340 = vpow.pop %v2339
      %v2341 = vmul.f32 %v2331, %v2338
      %v2342 = vmul.f32 %v2332, %v2340
      %v2343 = vsub.f32 1.0, %v2341
      %v2344 = vsub.f32 1.0, %v2342
      %vm2345 = vcmp.ge.f32.partialorder %v2305, 0.0
      %vm2346 = vcmp.ge.f32.partialorder %v2306, 0.0
      %v2347 = vsub.f32 0.0, %v2343
      %v2348 = vsub.f32 0.0, %v2344
      %v2349 = vsel %vm2345, %v2343, %v2347
      %v2350 = vsel %vm2346, %v2344, %v2348
      %v2351 = vmul.f32 %v2251, 0.5
      %v2352 = vmul.f32 %v2252, 0.5
      %v2353 = vadd.f32 %v2349, 1.0
      %v2354 = vadd.f32 %v2350, 1.0
      %v2355 = vmul.f32 %v2351, %v2353
      %v2356 = vmul.f32 %v2352, %v2354
      %v2357 = vpack.c.bf16 %v2356, %v2355
      %v2359 = vunpack.c.l.b16 %v2357
      %v2360 = vunpack.c.h.b16 %v2357
      %v2361 = vpack.c.b16 %v2359, %v2359
      %v2362 = vpack.c.b16 %v2360, %v2360
      %v2363 = vrot.slane %v2361, 7
      %v2364 = vrot.slane %v2363, 4
      %v2365 = vrot.slane %v2362, 7
      %v2366 = vsel %vm1159, %v2364, %v2365
      %v2367 = vrot.slane %v2365, 4
      %2371 = vst.msk [vmem:[#allocation2] sm:$0xe] %vm1506, %v2363
      %2372 = vst.msk [vmem:[#allocation2 + $0x4] sm:$0xf] %vm1508, %v2366
      %2373 = vst.msk [vmem:[#allocation2 + $0x8] sm:$0x1] %vm1092, %v2367
      %v2374 = vld [vmem:[#allocation2] sm:$0xf]
      %v2375 = vld [vmem:[#allocation2 + $0x4] sm:$0xf]
      %v2376 = vld [vmem:[#allocation2 + $0x8] sm:$0x1]
      %v2377 = vld [vmem:[#allocation2] sm:$0xe]
      %v2378 = vld [vmem:[#allocation2 + $0x8] sm:$0x3]
      %v2379 = vld [vmem:[#allocation2] sm:$0xc]
      %v2382 = vunpack.c.l.b16 %v2374
      %v2383 = vunpack.c.l.b16 %v2375
      %v2384 = vpack.c.b16 %v2383, %v2382
      %v2386 = vunpack.c.l.b16 %v2376
      %v2387 = vpack.c.b16 %v2386, %v2386
      %v2389 = vshrl.u32 %v2384, 16
      %v2391 = vshll.u32 %v2384, 16
      %v2393 = vrot.slane %v2391, 1
      %v2394 = vor.u32 %v2389, %v2393
      %v2396 = vshll.u32 %v2387, 16
      %v2398 = vrot.slane %v2396, 1
      %v2399 = vsel %vm1188, %v2394, %v2398
      %2400 = vrot.lane.b32.xlu0 %v2399, 16
      %v2401 = vpop.permute.xlu0 %2400
      %v2403 = vunpack.c.l.b16 %v2377
      %v2404 = vpack.c.b16 %v2383, %v2403
      %v2405 = vrot.slane %v2404, 1
      %v2406 = vrot.slane %v2387, 1
      %v2407 = vsel %vm1206, %v2405, %v2406
      %2408 = vrot.lane.b32.xlu0 %v2407, 32
      %v2409 = vpop.permute.xlu0 %2408
      %v2411 = vunpack.c.l.b16 %v2378
      %v2412 = vpack.c.b16 %v2411, %v2411
      %v2414 = vshrl.u32 %v2404, 16
      %v2416 = vrot.slane %v2414, 1
      %v2417 = vshll.u32 %v2404, 16
      %v2419 = vrot.slane %v2417, 2
      %v2420 = vor.u32 %v2416, %v2419
      %v2422 = vshrl.u32 %v2412, 16
      %v2424 = vrot.slane %v2422, 1
      %v2425 = vshll.u32 %v2412, 16
      %v2427 = vrot.slane %v2425, 2
      %v2428 = vor.u32 %v2424, %v2427
      %v2429 = vsel %vm1215, %v2420, %v2428
      %2430 = vrot.lane.b32.xlu0 %v2429, 48
      %v2431 = vpop.permute.xlu0 %2430
      %v2433 = vunpack.c.l.b16 %v2379
      %v2434 = vpack.c.b16 %v2383, %v2433
      %v2435 = vrot.slane %v2434, 2
      %v2436 = vrot.slane %v2412, 2
      %v2437 = vsel %vm1238, %v2435, %v2436
      %2438 = vrot.lane.b32.xlu0 %v2437, 64
      %v2439 = vpop.permute.xlu0 %2438
      %v2441 = vsel %vm1246, %v2384, %v2401
      %v2443 = vsel %vm1252, %v2441, %v2409
      %v2445 = vsel %vm1581, %v2443, %v2431
      %v2447 = vsel %vm1584, %v2445, %v2439
      %v2448 = vld [vmem:[%s41] sm:$0xf]
      %v2449 = vld [vmem:[%s41 + $0x4] sm:$0xf]
      %v2450 = vld [vmem:[%s41 + $0x8] sm:$0xf]
      %v2451 = vld [vmem:[%s41 + $0xc] sm:$0xf]
      %v2452 = vld [vmem:[%s41 + $0x10] sm:$0xf]
      %v2453 = vld [vmem:[%s41 + $0x14] sm:$0xf]
      %v2454 = vld [vmem:[%s41 + $0x18] sm:$0xf]
      %v2455 = vld [vmem:[%s41 + $0x1c] sm:$0xf]
      %v2456 = vld [vmem:[%s41 + $0x20] sm:$0xf]
      %v2457 = vld [vmem:[%s41 + $0x24] sm:$0xf]
      %v2458 = vmul.f32 %v2299, 0.70710677
      %v2459 = vmul.f32 %v2302, 0.70710677
      %v2460 = vand.u32 2147483647, %v2458
      %v2461 = vand.u32 2147483647, %v2459
      %v2462 = vmul.f32 %v2460, 0.3275911
      %v2463 = vmul.f32 %v2461, 0.3275911
      %v2464 = vadd.f32 %v2462, 1.0
      %v2465 = vadd.f32 %v2463, 1.0
      %v2466 = vrcp.pop %v2464
      %v2467 = vrcp.pop %v2465
      %v2468 = vmul.f32 %v2466, 1.0614054
      %v2469 = vmul.f32 %v2467, 1.0614054
      %v2470 = vsub.f32 %v2468, 1.4531521
      %v2471 = vsub.f32 %v2469, 1.4531521
      %v2472 = vmul.f32 %v2470, %v2466
      %v2473 = vmul.f32 %v2471, %v2467
      %v2474 = vadd.f32 %v2472, 1.4214138
      %v2475 = vadd.f32 %v2473, 1.4214138
      %v2476 = vmul.f32 %v2474, %v2466
      %v2477 = vmul.f32 %v2475, %v2467
      %v2478 = vsub.f32 %v2476, 0.28449672
      %v2479 = vsub.f32 %v2477, 0.28449672
      %v2480 = vmul.f32 %v2478, %v2466
      %v2481 = vmul.f32 %v2479, %v2467
      %v2482 = vadd.f32 %v2480, 0.2548296
      %v2483 = vadd.f32 %v2481, 0.2548296
      %v2484 = vmul.f32 %v2482, %v2466
      %v2485 = vmul.f32 %v2483, %v2467
      %v2486 = vsub.f32 0.0, %v2460
      %v2487 = vsub.f32 0.0, %v2461
      %v2488 = vmul.f32 %v2486, %v2460
      %v2489 = vmul.f32 %v2487, %v2461
      %v2490 = vmul.f32 %v2488, 1.442695
      %v2491 = vpow.pop %v2490
      %v2492 = vmul.f32 %v2489, 1.442695
      %v2493 = vpow.pop %v2492
      %v2494 = vmul.f32 %v2484, %v2491
      %v2495 = vmul.f32 %v2485, %v2493
      %v2496 = vsub.f32 1.0, %v2494
      %v2497 = vsub.f32 1.0, %v2495
      %vm2498 = vcmp.ge.f32.partialorder %v2458, 0.0
      %vm2499 = vcmp.ge.f32.partialorder %v2459, 0.0
      %v2500 = vsub.f32 0.0, %v2496
      %v2501 = vsub.f32 0.0, %v2497
      %v2502 = vsel %vm2498, %v2496, %v2500
      %v2503 = vsel %vm2499, %v2497, %v2501
      %v2504 = vmul.f32 %v2299, 0.5
      %v2505 = vmul.f32 %v2302, 0.5
      %v2506 = vadd.f32 %v2502, 1.0
      %v2507 = vadd.f32 %v2503, 1.0
      %v2508 = vmul.f32 %v2504, %v2506
      %v2509 = vmul.f32 %v2505, %v2507
      %v2510 = vpack.c.bf16 %v2509, %v2508
      %v2512 = vunpack.c.l.b16 %v2510
      %v2513 = vunpack.c.h.b16 %v2510
      %v2514 = vpack.c.b16 %v2512, %v2512
      %v2515 = vpack.c.b16 %v2513, %v2513
      %v2516 = vrot.slane %v2514, 7
      %v2517 = vrot.slane %v2516, 4
      %v2518 = vrot.slane %v2515, 7
      %v2519 = vsel %vm1159, %v2517, %v2518
      %v2520 = vrot.slane %v2518, 4
      %2524 = vst.msk [vmem:[#allocation2] sm:$0xe] %vm1506, %v2516
      %2525 = vst.msk [vmem:[#allocation2 + $0x4] sm:$0xf] %vm1508, %v2519
      %2526 = vst.msk [vmem:[#allocation2 + $0x8] sm:$0x1] %vm1092, %v2520
      %v2527 = vld [vmem:[#allocation2] sm:$0xf]
      %v2528 = vld [vmem:[#allocation2 + $0x4] sm:$0xf]
      %v2529 = vld [vmem:[#allocation2 + $0x8] sm:$0x1]
      %v2530 = vld [vmem:[#allocation2] sm:$0xe]
      %v2531 = vld [vmem:[#allocation2 + $0x8] sm:$0x3]
      %v2532 = vld [vmem:[#allocation2] sm:$0xc]
      %v2535 = vunpack.c.l.b16 %v2527
      %v2536 = vunpack.c.l.b16 %v2528
      %v2537 = vpack.c.b16 %v2536, %v2535
      %v2539 = vunpack.c.l.b16 %v2529
      %v2540 = vpack.c.b16 %v2539, %v2539
      %v2542 = vshrl.u32 %v2537, 16
      %v2544 = vshll.u32 %v2537, 16
      %v2546 = vrot.slane %v2544, 1
      %v2547 = vor.u32 %v2542, %v2546
      %v2549 = vshll.u32 %v2540, 16
      %v2551 = vrot.slane %v2549, 1
      %v2552 = vsel %vm1188, %v2547, %v2551
      %2553 = vrot.lane.b32.xlu0 %v2552, 16
      %v2554 = vpop.permute.xlu0 %2553
      %v2556 = vunpack.c.l.b16 %v2530
      %v2557 = vpack.c.b16 %v2536, %v2556
      %v2558 = vrot.slane %v2557, 1
      %v2559 = vrot.slane %v2540, 1
      %v2560 = vsel %vm1206, %v2558, %v2559
      %2561 = vrot.lane.b32.xlu0 %v2560, 32
      %v2562 = vpop.permute.xlu0 %2561
      %v2564 = vunpack.c.l.b16 %v2531
      %v2565 = vpack.c.b16 %v2564, %v2564
      %v2567 = vshrl.u32 %v2557, 16
      %v2569 = vrot.slane %v2567, 1
      %v2570 = vshll.u32 %v2557, 16
      %v2572 = vrot.slane %v2570, 2
      %v2573 = vor.u32 %v2569, %v2572
      %v2575 = vshrl.u32 %v2565, 16
      %v2577 = vrot.slane %v2575, 1
      %v2578 = vshll.u32 %v2565, 16
      %v2580 = vrot.slane %v2578, 2
      %v2581 = vor.u32 %v2577, %v2580
      %v2582 = vsel %vm1215, %v2573, %v2581
      %2583 = vrot.lane.b32.xlu0 %v2582, 48
      %v2584 = vpop.permute.xlu0 %2583
      %v2586 = vunpack.c.l.b16 %v2532
      %v2587 = vpack.c.b16 %v2536, %v2586
      %v2588 = vrot.slane %v2587, 2
      %v2589 = vrot.slane %v2565, 2
      %v2590 = vsel %vm1238, %v2588, %v2589
      %2591 = vrot.lane.b32.xlu0 %v2590, 64
      %v2592 = vpop.permute.xlu0 %2591
      %v2594 = vsel %vm1246, %v2537, %v2554
      %v2596 = vsel %vm1252, %v2594, %v2562
      %v2598 = vsel %vm1581, %v2596, %v2584
      %v2600 = vsel %vm1584, %v2598, %v2592
      %v2601 = vld [vmem:[%s43] sm:$0xf]
      %v2602 = vld [vmem:[%s43 + $0x4] sm:$0xf]
      %v2603 = vld [vmem:[%s43 + $0x8] sm:$0xf]
      %v2604 = vld [vmem:[%s43 + $0xc] sm:$0xf]
      %v2605 = vld [vmem:[%s43 + $0x10] sm:$0xf]
      %v2606 = vld [vmem:[%s43 + $0x14] sm:$0xf]
      %v2607 = vld [vmem:[%s43 + $0x18] sm:$0xf]
      %v2608 = vld [vmem:[%s43 + $0x1c] sm:$0xf]
      %v2609 = vld [vmem:[%s43 + $0x20] sm:$0xf]
      %v2610 = vld [vmem:[%s43 + $0x24] sm:$0xf]
      %v2621 = vunpack.c.l.b16 %v2601
      %v2622 = vunpack.c.l.b16 %v2602
      %v2623 = vunpack.c.l.b16 %v2603
      %v2624 = vunpack.c.l.b16 %v2604
      %v2625 = vunpack.c.l.b16 %v2605
      %v2626 = vunpack.c.l.b16 %v2606
      %v2627 = vunpack.c.l.b16 %v2607
      %v2628 = vunpack.c.l.b16 %v2608
      %v2629 = vunpack.c.l.b16 %v2609
      %v2630 = vunpack.c.l.b16 %v2610
      %v2631 = vpack.c.b16 %v2622, %v2621
      %v2632 = vpack.c.b16 %v2624, %v2623
      %v2633 = vpack.c.b16 %v2626, %v2625
      %v2634 = vpack.c.b16 %v2628, %v2627
      %v2635 = vpack.c.b16 %v2630, %v2629
      %v2641 = vsel %vm1780, %v2600, 0
      %2643 = vmatprep.subr.bf16.mxu0 0
      %2644 = vmatpush1.bf16.msra.mxu0 %v2631
      %2645 = vmatprep.subr.bf16.mxu0 0
      %2646 = vmatpush1.bf16.msra.mxu0 %v2632
      %2647 = vmatprep.subr.bf16.mxu0 0
      %2648 = vmatpush1.bf16.msra.mxu0 %v2633
      %2649 = vmatprep.subr.bf16.mxu0 0
      %2650 = vmatpush1.bf16.msra.mxu0 %v2634
      %2651 = vmatprep.subr.bf16.mxu0 0
      %2652 = vmatpush1.bf16.msra.mxu0 %v2635
      %2653 = vmatprep.subr.bf16.mxu0 0
      %2654 = vmatpush1.bf16.msra.mxu0 0
      %2655 = vmatprep.subr.bf16.mxu0 0
      %2656 = vmatpush1.bf16.msra.mxu0 0
      %2657 = vmatprep.subr.bf16.mxu0 0
      %2658 = vmatpush1.bf16.msra.mxu0 0
      %2659 = vmatprep.subr.bf16.mxu0 0
      %2660 = vmatpush1.bf16.msra.mxu0 0
      %2661 = vmatprep.subr.bf16.mxu0 0
      %2662 = vmatpush1.bf16.msra.mxu0 0
      %2663 = vmatprep.subr.bf16.mxu0 0
      %2664 = vmatpush1.bf16.msra.mxu0 0
      %2665 = vmatprep.subr.bf16.mxu0 0
      %2666 = vmatpush1.bf16.msra.mxu0 0
      %2667 = vmatprep.subr.bf16.mxu0 0
      %2668 = vmatpush1.bf16.msra.mxu0 0
      %2669 = vmatprep.subr.bf16.mxu0 0
      %2670 = vmatpush1.bf16.msra.mxu0 0
      %2671 = vmatprep.subr.bf16.mxu0 0
      %2672 = vmatpush1.bf16.msra.mxu0 0
      %2673 = vmatprep.subr.bf16.mxu0 0
      %2674 = vmatpush1.bf16.msra.mxu0 0
      %2675 = vmatprep.mubr.bf16.mxu0 0
      %2676 = vmatmul.mubr.bf16.gmra.mrb[0].mxu0 %v2641
      %v2677 = vpop.f32.mrb[0].mxu0
      %v2678 = vadd.f32 0.0, %v2677
      %v2679 = vpop.f32.mrb[0].mxu0
      %v2680 = vpop.f32.mrb[0].mxu0
      %v2681 = vadd.f32 0.0, %v2680
      %v2682 = vpop.f32.mrb[0].mxu0
      %2683 = vdwg.mxu0
      %v2694 = vunpack.c.l.b16 %v2448
      %v2695 = vunpack.c.l.b16 %v2449
      %v2696 = vunpack.c.l.b16 %v2450
      %v2697 = vunpack.c.l.b16 %v2451
      %v2698 = vunpack.c.l.b16 %v2452
      %v2699 = vunpack.c.l.b16 %v2453
      %v2700 = vunpack.c.l.b16 %v2454
      %v2701 = vunpack.c.l.b16 %v2455
      %v2702 = vunpack.c.l.b16 %v2456
      %v2703 = vunpack.c.l.b16 %v2457
      %v2704 = vpack.c.b16 %v2695, %v2694
      %v2705 = vpack.c.b16 %v2697, %v2696
      %v2706 = vpack.c.b16 %v2699, %v2698
      %v2707 = vpack.c.b16 %v2701, %v2700
      %v2708 = vpack.c.b16 %v2703, %v2702
      %v2714 = vsel %vm1780, %v2447, 0
      %2716 = vmatprep.subr.bf16.mxu0 0
      %2717 = vmatpush1.bf16.msra.mxu0 %v2704
      %2718 = vmatprep.subr.bf16.mxu0 0
      %2719 = vmatpush1.bf16.msra.mxu0 %v2705
      %2720 = vmatprep.subr.bf16.mxu0 0
      %2721 = vmatpush1.bf16.msra.mxu0 %v2706
      %2722 = vmatprep.subr.bf16.mxu0 0
      %2723 = vmatpush1.bf16.msra.mxu0 %v2707
      %2724 = vmatprep.subr.bf16.mxu0 0
      %2725 = vmatpush1.bf16.msra.mxu0 %v2708
      %2726 = vmatprep.subr.bf16.mxu0 0
      %2727 = vmatpush1.bf16.msra.mxu0 0
      %2728 = vmatprep.subr.bf16.mxu0 0
      %2729 = vmatpush1.bf16.msra.mxu0 0
      %2730 = vmatprep.subr.bf16.mxu0 0
      %2731 = vmatpush1.bf16.msra.mxu0 0
      %2732 = vmatprep.subr.bf16.mxu0 0
      %2733 = vmatpush1.bf16.msra.mxu0 0
      %2734 = vmatprep.subr.bf16.mxu0 0
      %2735 = vmatpush1.bf16.msra.mxu0 0
      %2736 = vmatprep.subr.bf16.mxu0 0
      %2737 = vmatpush1.bf16.msra.mxu0 0
      %2738 = vmatprep.subr.bf16.mxu0 0
      %2739 = vmatpush1.bf16.msra.mxu0 0
      %2740 = vmatprep.subr.bf16.mxu0 0
      %2741 = vmatpush1.bf16.msra.mxu0 0
      %2742 = vmatprep.subr.bf16.mxu0 0
      %2743 = vmatpush1.bf16.msra.mxu0 0
      %2744 = vmatprep.subr.bf16.mxu0 0
      %2745 = vmatpush1.bf16.msra.mxu0 0
      %2746 = vmatprep.subr.bf16.mxu0 0
      %2747 = vmatpush1.bf16.msra.mxu0 0
      %2748 = vmatprep.mubr.bf16.mxu0 0
      %2749 = vmatmul.mubr.bf16.gmra.mrb[0].mxu0 %v2714
      %v2750 = vpop.f32.mrb[0].mxu0
      %v2751 = vadd.f32 %v2678, %v2750
      %v2752 = vpop.f32.mrb[0].mxu0
      %v2753 = vpop.f32.mrb[0].mxu0
      %v2754 = vadd.f32 %v2681, %v2753
      %v2755 = vpop.f32.mrb[0].mxu0
      %2756 = vdwg.mxu0
      %v2757 = vld [vmem:[%s45] sm:$0x1]
      %v2759 = vlaneseq
      %v2760 = vshrl.u32 %v2759, 7
      %v2761 = vsub.s32 0, %v2760
      %v2762 = vrot.slane %v2757, %v2761
      %v2764 = vadd.f32 %v2751, %v2762
      %v2765 = vadd.f32 %v2754, %v2762
      %v2766 = vld [vmem:[%s47] sm:$0x1]
      %v2767 = vld [vmem:[%s49] sm:$0x1]
      %v2768 = vsel %vm1246, %v2764, 0.0
      %v2769 = vsel %vm1246, %v2765, 0.0
      %v2770 = vadd.f32 %v2768, %v2769
      %2771 = vadd.xlane.f32.xlu0 %v2770
      %v2772 = vpop.xlane.xlu0 %2771
      %v2773 = vrot.slane %v2772, 4
      %v2774 = vadd.f32 %v2772, %v2773
      %v2775 = vrot.slane %v2774, 2
      %v2776 = vadd.f32 %v2774, %v2775
      %v2777 = vrot.slane %v2776, 1
      %v2778 = vadd.f32 %v2776, %v2777
      %s2779 = vtos %v2778
      %v2780 = vstv %s2779
      %v2781 = vmul.f32 %v2780, 0.00390625
      %v2782 = vmul.f32 %v2764, %v2764
      %v2783 = vmul.f32 %v2765, %v2765
      %v2784 = vsel %vm1246, %v2782, 0.0
      %v2785 = vsel %vm1246, %v2783, 0.0
      %v2786 = vadd.f32 %v2784, %v2785
      %2787 = vadd.xlane.f32.xlu0 %v2786
      %v2788 = vpop.xlane.xlu0 %2787
      %v2789 = vrot.slane %v2788, 4
      %v2790 = vadd.f32 %v2788, %v2789
      %v2791 = vrot.slane %v2790, 2
      %v2792 = vadd.f32 %v2790, %v2791
      %v2793 = vrot.slane %v2792, 1
      %v2794 = vadd.f32 %v2792, %v2793
      %s2795 = vtos %v2794
      %v2796 = vstv %s2795
      %v2797 = vmul.f32 %v2796, 0.00390625
      %v2798 = vmul.f32 %v2781, %v2781
      %v2799 = vsub.f32 %v2797, %v2798
      %v2800 = vsub.f32 %v2764, %v2781
      %v2801 = vsub.f32 %v2765, %v2781
      %v2802 = vadd.f32 %v2799, 1e-05
      %v2803 = vrsqrt.pop %v2802
      %v2804 = vmul.f32 %v2800, %v2803
      %v2805 = vmul.f32 %v2801, %v2803
      %v2807 = vlaneseq
      %v2808 = vshrl.u32 %v2807, 7
      %v2809 = vsub.s32 0, %v2808
      %v2810 = vrot.slane %v2766, %v2809
      %v2812 = vmul.f32 %v2804, %v2810
      %v2813 = vmul.f32 %v2805, %v2810
      %v2815 = vlaneseq
      %v2816 = vshrl.u32 %v2815, 7
      %v2817 = vsub.s32 0, %v2816
      %v2818 = vrot.slane %v2767, %v2817
      %v2820 = vadd.f32 %v2812, %v2818
      %v2821 = vadd.f32 %v2813, %v2818
      %v2822 = vmul.f32 %v2820, 0.70710677
      %v2823 = vmul.f32 %v2821, 0.70710677
      %v2824 = vand.u32 2147483647, %v2822
      %v2825 = vand.u32 2147483647, %v2823
      %v2826 = vmul.f32 %v2824, 0.3275911
      %v2827 = vmul.f32 %v2825, 0.3275911
      %v2828 = vadd.f32 %v2826, 1.0
      %v2829 = vadd.f32 %v2827, 1.0
      %v2830 = vrcp.pop %v2828
      %v2831 = vrcp.pop %v2829
      %v2832 = vmul.f32 %v2830, 1.0614054
      %v2833 = vmul.f32 %v2831, 1.0614054
      %v2834 = vsub.f32 %v2832, 1.4531521
      %v2835 = vsub.f32 %v2833, 1.4531521
      %v2836 = vmul.f32 %v2834, %v2830
      %v2837 = vmul.f32 %v2835, %v2831
      %v2838 = vadd.f32 %v2836, 1.4214138
      %v2839 = vadd.f32 %v2837, 1.4214138
      %v2840 = vmul.f32 %v2838, %v2830
      %v2841 = vmul.f32 %v2839, %v2831
      %v2842 = vsub.f32 %v2840, 0.28449672
      %v2843 = vsub.f32 %v2841, 0.28449672
      %v2844 = vmul.f32 %v2842, %v2830
      %v2845 = vmul.f32 %v2843, %v2831
      %v2846 = vadd.f32 %v2844, 0.2548296
      %v2847 = vadd.f32 %v2845, 0.2548296
      %v2848 = vmul.f32 %v2846, %v2830
      %v2849 = vmul.f32 %v2847, %v2831
      %v2850 = vsub.f32 0.0, %v2824
      %v2851 = vsub.f32 0.0, %v2825
      %v2852 = vmul.f32 %v2850, %v2824
      %v2853 = vmul.f32 %v2851, %v2825
      %v2854 = vmul.f32 %v2852, 1.442695
      %v2855 = vpow.pop %v2854
      %v2856 = vmul.f32 %v2853, 1.442695
      %v2857 = vpow.pop %v2856
      %v2858 = vmul.f32 %v2848, %v2855
      %v2859 = vmul.f32 %v2849, %v2857
      %v2860 = vsub.f32 1.0, %v2858
      %v2861 = vsub.f32 1.0, %v2859
      %vm2862 = vcmp.ge.f32.partialorder %v2822, 0.0
      %vm2863 = vcmp.ge.f32.partialorder %v2823, 0.0
      %v2864 = vsub.f32 0.0, %v2860
      %v2865 = vsub.f32 0.0, %v2861
      %v2866 = vsel %vm2862, %v2860, %v2864
      %v2867 = vsel %vm2863, %v2861, %v2865
      %v2868 = vmul.f32 %v2820, 0.5
      %v2869 = vmul.f32 %v2821, 0.5
      %v2870 = vadd.f32 %v2866, 1.0
      %v2871 = vadd.f32 %v2867, 1.0
      %v2872 = vmul.f32 %v2868, %v2870
      %v2873 = vmul.f32 %v2869, %v2871
      %v2874 = vadd.f32 %v2872, %v2014
      %v2875 = vadd.f32 %v2873, %v2015
      %v2876 = vpack.c.bf16 %v2875, %v2874
      %v2877 = vld [vmem:[%s69] sm:$0xf]
      %v2878 = vld [vmem:[%s69 + $0x4] sm:$0xf]
      %v2881 = vunpack.c.l.b16 %v2877
      %v2882 = vunpack.c.l.b16 %v2878
      %v2883 = vpack.c.b16 %v2882, %v2881
      %v2886 = vsel %vm1246, %v2876, 0
      %2888 = vmatprep.subr.bf16.mxu0 0
      %2889 = vmatpush1.bf16.msra.mxu0 %v2883
      %2890 = vmatprep.subr.bf16.mxu0 0
      %2891 = vmatpush1.bf16.msra.mxu0 0
      %2892 = vmatprep.subr.bf16.mxu0 0
      %2893 = vmatpush1.bf16.msra.mxu0 0
      %2894 = vmatprep.subr.bf16.mxu0 0
      %2895 = vmatpush1.bf16.msra.mxu0 0
      %2896 = vmatprep.subr.bf16.mxu0 0
      %2897 = vmatpush1.bf16.msra.mxu0 0
      %2898 = vmatprep.subr.bf16.mxu0 0
      %2899 = vmatpush1.bf16.msra.mxu0 0
      %2900 = vmatprep.subr.bf16.mxu0 0
      %2901 = vmatpush1.bf16.msra.mxu0 0
      %2902 = vmatprep.subr.bf16.mxu0 0
      %2903 = vmatpush1.bf16.msra.mxu0 0
      %2904 = vmatprep.subr.bf16.mxu0 0
      %2905 = vmatpush1.bf16.msra.mxu0 0
      %2906 = vmatprep.subr.bf16.mxu0 0
      %2907 = vmatpush1.bf16.msra.mxu0 0
      %2908 = vmatprep.subr.bf16.mxu0 0
      %2909 = vmatpush1.bf16.msra.mxu0 0
      %2910 = vmatprep.subr.bf16.mxu0 0
      %2911 = vmatpush1.bf16.msra.mxu0 0
      %2912 = vmatprep.subr.bf16.mxu0 0
      %2913 = vmatpush1.bf16.msra.mxu0 0
      %2914 = vmatprep.subr.bf16.mxu0 0
      %2915 = vmatpush1.bf16.msra.mxu0 0
      %2916 = vmatprep.subr.bf16.mxu0 0
      %2917 = vmatpush1.bf16.msra.mxu0 0
      %2918 = vmatprep.subr.bf16.mxu0 0
      %2919 = vmatpush1.bf16.msra.mxu0 0
      %2920 = vmatprep.mubr.bf16.mxu0 0
      %2921 = vmatmul.mubr.bf16.gmra.mrb[0].mxu0 %v2886
      %v2922 = vpop.f32.mrb[0].mxu0
      %v2923 = vadd.f32 0.0, %v2922
      %v2924 = vpop.f32.mrb[0].mxu0
      %v2925 = vpop.f32.mrb[0].mxu0
      %v2926 = vadd.f32 0.0, %v2925
      %v2927 = vpop.f32.mrb[0].mxu0
      %2928 = vdwg.mxu0
      %v2930 = vunpack.c.l.b16 %v2876
      %v2931 = vunpack.c.h.b16 %v2876
      %v2932 = vpack.c.b16 %v2930, %v2930
      %v2933 = vpack.c.b16 %v2931, %v2931
      %v2934 = vrot.slane %v2932, 7
      %v2935 = vrot.slane %v2934, 4
      %v2936 = vrot.slane %v2933, 7
      %v2937 = vsel %vm1159, %v2935, %v2936
      %v2938 = vrot.slane %v2936, 4
      %2942 = vst.msk [vmem:[#allocation2] sm:$0xe] %vm1506, %v2934
      %2943 = vst.msk [vmem:[#allocation2 + $0x4] sm:$0xf] %vm1508, %v2937
      %2944 = vst.msk [vmem:[#allocation2 + $0x8] sm:$0x1] %vm1092, %v2938
      %v2945 = vld [vmem:[#allocation2] sm:$0xf]
      %v2946 = vld [vmem:[#allocation2 + $0x4] sm:$0xf]
      %v2947 = vld [vmem:[#allocation2 + $0x8] sm:$0x1]
      %v2948 = vld [vmem:[#allocation2] sm:$0xe]
      %v2949 = vld [vmem:[#allocation2 + $0x8] sm:$0x3]
      %v2950 = vld [vmem:[#allocation2] sm:$0xc]
      %v2953 = vunpack.c.l.b16 %v2945
      %v2954 = vunpack.c.l.b16 %v2946
      %v2955 = vpack.c.b16 %v2954, %v2953
      %v2957 = vunpack.c.l.b16 %v2947
      %v2958 = vpack.c.b16 %v2957, %v2957
      %v2960 = vshrl.u32 %v2955, 16
      %v2962 = vshll.u32 %v2955, 16
      %v2964 = vrot.slane %v2962, 1
      %v2965 = vor.u32 %v2960, %v2964
      %v2967 = vshll.u32 %v2958, 16
      %v2969 = vrot.slane %v2967, 1
      %v2970 = vsel %vm1188, %v2965, %v2969
      %2971 = vrot.lane.b32.xlu0 %v2970, 16
      %v2972 = vpop.permute.xlu0 %2971
      %v2974 = vunpack.c.l.b16 %v2948
      %v2975 = vpack.c.b16 %v2954, %v2974
      %v2976 = vrot.slane %v2975, 1
      %v2977 = vrot.slane %v2958, 1
      %v2978 = vsel %vm1206, %v2976, %v2977
      %2979 = vrot.lane.b32.xlu0 %v2978, 32
      %v2980 = vpop.permute.xlu0 %2979
      %v2982 = vunpack.c.l.b16 %v2949
      %v2983 = vpack.c.b16 %v2982, %v2982
      %v2985 = vshrl.u32 %v2975, 16
      %v2987 = vrot.slane %v2985, 1
      %v2988 = vshll.u32 %v2975, 16
      %v2990 = vrot.slane %v2988, 2
      %v2991 = vor.u32 %v2987, %v2990
      %v2993 = vshrl.u32 %v2983, 16
      %v2995 = vrot.slane %v2993, 1
      %v2996 = vshll.u32 %v2983, 16
      %v2998 = vrot.slane %v2996, 2
      %v2999 = vor.u32 %v2995, %v2998
      %v3000 = vsel %vm1215, %v2991, %v2999
      %3001 = vrot.lane.b32.xlu0 %v3000, 48
      %v3002 = vpop.permute.xlu0 %3001
      %v3004 = vunpack.c.l.b16 %v2950
      %v3005 = vpack.c.b16 %v2954, %v3004
      %v3006 = vrot.slane %v3005, 2
      %v3007 = vrot.slane %v2983, 2
      %v3008 = vsel %vm1238, %v3006, %v3007
      %3009 = vrot.lane.b32.xlu0 %v3008, 64
      %v3010 = vpop.permute.xlu0 %3009
      %v3012 = vsel %vm1246, %v2955, %v2972
      %v3014 = vsel %vm1252, %v3012, %v2980
      %v3016 = vsel %vm1581, %v3014, %v3002
      %v3018 = vsel %vm1584, %v3016, %v3010
      %v3019 = vld [vmem:[%s51] sm:$0xf]
      %v3020 = vld [vmem:[%s51 + $0x4] sm:$0xf]
      %v3021 = vld [vmem:[%s51 + $0x8] sm:$0xf]
      %v3022 = vld [vmem:[%s51 + $0xc] sm:$0xf]
      %v3023 = vld [vmem:[%s51 + $0x10] sm:$0xf]
      %v3024 = vld [vmem:[%s51 + $0x14] sm:$0xf]
      %v3025 = vld [vmem:[%s51 + $0x18] sm:$0xf]
      %v3026 = vld [vmem:[%s51 + $0x1c] sm:$0xf]
      %v3027 = vld [vmem:[%s51 + $0x20] sm:$0xf]
      %v3028 = vld [vmem:[%s51 + $0x24] sm:$0xf]
      %v3029 = vld [vmem:[%s53] sm:$0x1]
      %v3031 = vlaneseq
      %v3032 = vshrl.u32 %v3031, 7
      %v3033 = vsub.s32 0, %v3032
      %v3034 = vrot.slane %v3029, %v3033
      %v3046 = vunpack.c.l.b16 %v3019
      %v3047 = vunpack.c.l.b16 %v3020
      %v3048 = vunpack.c.l.b16 %v3021
      %v3049 = vunpack.c.l.b16 %v3022
      %v3050 = vunpack.c.l.b16 %v3023
      %v3051 = vunpack.c.l.b16 %v3024
      %v3052 = vunpack.c.l.b16 %v3025
      %v3053 = vunpack.c.l.b16 %v3026
      %v3054 = vunpack.c.l.b16 %v3027
      %v3055 = vunpack.c.l.b16 %v3028
      %v3056 = vpack.c.b16 %v3047, %v3046
      %v3057 = vpack.c.b16 %v3049, %v3048
      %v3058 = vpack.c.b16 %v3051, %v3050
      %v3059 = vpack.c.b16 %v3053, %v3052
      %v3060 = vpack.c.b16 %v3055, %v3054
      %v3066 = vsel %vm1780, %v3018, 0
      %3068 = vmatprep.subr.bf16.mxu0 0
      %3069 = vmatpush1.bf16.msra.mxu0 %v3056
      %3070 = vmatprep.subr.bf16.mxu0 0
      %3071 = vmatpush1.bf16.msra.mxu0 %v3057
      %3072 = vmatprep.subr.bf16.mxu0 0
      %3073 = vmatpush1.bf16.msra.mxu0 %v3058
      %3074 = vmatprep.subr.bf16.mxu0 0
      %3075 = vmatpush1.bf16.msra.mxu0 %v3059
      %3076 = vmatprep.subr.bf16.mxu0 0
      %3077 = vmatpush1.bf16.msra.mxu0 %v3060
      %3078 = vmatprep.subr.bf16.mxu0 0
      %3079 = vmatpush1.bf16.msra.mxu0 0
      %3080 = vmatprep.subr.bf16.mxu0 0
      %3081 = vmatpush1.bf16.msra.mxu0 0
      %3082 = vmatprep.subr.bf16.mxu0 0
      %3083 = vmatpush1.bf16.msra.mxu0 0
      %3084 = vmatprep.subr.bf16.mxu0 0
      %3085 = vmatpush1.bf16.msra.mxu0 0
      %3086 = vmatprep.subr.bf16.mxu0 0
      %3087 = vmatpush1.bf16.msra.mxu0 0
      %3088 = vmatprep.subr.bf16.mxu0 0
      %3089 = vmatpush1.bf16.msra.mxu0 0
      %3090 = vmatprep.subr.bf16.mxu0 0
      %3091 = vmatpush1.bf16.msra.mxu0 0
      %3092 = vmatprep.subr.bf16.mxu0 0
      %3093 = vmatpush1.bf16.msra.mxu0 0
      %3094 = vmatprep.subr.bf16.mxu0 0
      %3095 = vmatpush1.bf16.msra.mxu0 0
      %3096 = vmatprep.subr.bf16.mxu0 0
      %3097 = vmatpush1.bf16.msra.mxu0 0
      %3098 = vmatprep.subr.bf16.mxu0 0
      %3099 = vmatpush1.bf16.msra.mxu0 0
      %3100 = vmatprep.mubr.bf16.mxu0 0
      %3101 = vmatmul.mubr.bf16.gmra.mrb[0].mxu0 %v3066
      %v3102 = vpop.f32.mrb[0].mxu0
      %v3103 = vadd.f32 %v3034, %v3102
      %v3104 = vpop.f32.mrb[0].mxu0
      %v3105 = vpop.f32.mrb[0].mxu0
      %v3106 = vadd.f32 %v3034, %v3105
      %v3107 = vpop.f32.mrb[0].mxu0
      %3108 = vdwg.mxu0
      %v3109 = vld [vmem:[%s55] sm:$0x1]
      %v3110 = vld [vmem:[%s57] sm:$0x1]
      %v3111 = vsel %vm1246, %v3103, 0.0
      %v3112 = vsel %vm1246, %v3106, 0.0
      %v3113 = vadd.f32 %v3111, %v3112
      %3114 = vadd.xlane.f32.xlu0 %v3113
      %v3115 = vpop.xlane.xlu0 %3114
      %v3116 = vrot.slane %v3115, 4
      %v3117 = vadd.f32 %v3115, %v3116
      %v3118 = vrot.slane %v3117, 2
      %v3119 = vadd.f32 %v3117, %v3118
      %v3120 = vrot.slane %v3119, 1
      %v3121 = vadd.f32 %v3119, %v3120
      %s3122 = vtos %v3121
      %v3123 = vstv %s3122
      %v3124 = vmul.f32 %v3123, 0.00390625
      %v3125 = vmul.f32 %v3103, %v3103
      %v3126 = vmul.f32 %v3106, %v3106
      %v3127 = vsel %vm1246, %v3125, 0.0
      %v3128 = vsel %vm1246, %v3126, 0.0
      %v3129 = vadd.f32 %v3127, %v3128
      %3130 = vadd.xlane.f32.xlu0 %v3129
      %v3131 = vpop.xlane.xlu0 %3130
      %v3132 = vrot.slane %v3131, 4
      %v3133 = vadd.f32 %v3131, %v3132
      %v3134 = vrot.slane %v3133, 2
      %v3135 = vadd.f32 %v3133, %v3134
      %v3136 = vrot.slane %v3135, 1
      %v3137 = vadd.f32 %v3135, %v3136
      %s3138 = vtos %v3137
      %v3139 = vstv %s3138
      %v3140 = vmul.f32 %v3139, 0.00390625
      %v3141 = vmul.f32 %v3124, %v3124
      %v3142 = vsub.f32 %v3140, %v3141
      %v3143 = vsub.f32 %v3103, %v3124
      %v3144 = vsub.f32 %v3106, %v3124
      %v3145 = vadd.f32 %v3142, 1e-05
      %v3146 = vrsqrt.pop %v3145
      %v3147 = vmul.f32 %v3143, %v3146
      %v3148 = vmul.f32 %v3144, %v3146
      %v3150 = vlaneseq
      %v3151 = vshrl.u32 %v3150, 7
      %v3152 = vsub.s32 0, %v3151
      %v3153 = vrot.slane %v3109, %v3152
      %v3155 = vmul.f32 %v3147, %v3153
      %v3156 = vmul.f32 %v3148, %v3153
      %v3158 = vlaneseq
      %v3159 = vshrl.u32 %v3158, 7
      %v3160 = vsub.s32 0, %v3159
      %v3161 = vrot.slane %v3110, %v3160
      %v3163 = vadd.f32 %v3155, %v3161
      %v3164 = vadd.f32 %v3156, %v3161
      %v3165 = vld [vmem:[%s59] sm:$0xf]
      %v3166 = vld [vmem:[%s61] sm:$0x1]
      %v3168 = vlaneseq
      %v3169 = vshrl.u32 %v3168, 7
      %v3170 = vsub.s32 0, %v3169
      %v3171 = vrot.slane %v3166, %v3170
      %v3174 = vsel %vm1107, %v3165, 0
      %3176 = vmatprep.subr.bf16.mxu0 0
      %3177 = vmatpush1.bf16.msra.mxu0 %v3174
      %3178 = vmatprep.subr.bf16.mxu0 0
      %3179 = vmatpush1.bf16.msra.mxu0 0
      %3180 = vmatprep.subr.bf16.mxu0 0
      %3181 = vmatpush1.bf16.msra.mxu0 0
      %3182 = vmatprep.subr.bf16.mxu0 0
      %3183 = vmatpush1.bf16.msra.mxu0 0
      %3184 = vmatprep.subr.bf16.mxu0 0
      %3185 = vmatpush1.bf16.msra.mxu0 0
      %3186 = vmatprep.subr.bf16.mxu0 0
      %3187 = vmatpush1.bf16.msra.mxu0 0
      %3188 = vmatprep.subr.bf16.mxu0 0
      %3189 = vmatpush1.bf16.msra.mxu0 0
      %3190 = vmatprep.subr.bf16.mxu0 0
      %3191 = vmatpush1.bf16.msra.mxu0 0
      %3192 = vmatprep.subr.bf16.mxu0 0
      %3193 = vmatpush1.bf16.msra.mxu0 0
      %3194 = vmatprep.subr.bf16.mxu0 0
      %3195 = vmatpush1.bf16.msra.mxu0 0
      %3196 = vmatprep.subr.bf16.mxu0 0
      %3197 = vmatpush1.bf16.msra.mxu0 0
      %3198 = vmatprep.subr.bf16.mxu0 0
      %3199 = vmatpush1.bf16.msra.mxu0 0
      %3200 = vmatprep.subr.bf16.mxu0 0
      %3201 = vmatpush1.bf16.msra.mxu0 0
      %3202 = vmatprep.subr.bf16.mxu0 0
      %3203 = vmatpush1.bf16.msra.mxu0 0
      %3204 = vmatprep.subr.bf16.mxu0 0
      %3205 = vmatpush1.bf16.msra.mxu0 0
      %3206 = vmatprep.subr.bf16.mxu0 0
      %3207 = vmatpush1.bf16.msra.mxu0 0
      %3208 = vmatprep.mubr.bf16.mxu0 0
      %3209 = vmatmul.mubr.bf16.gmra.mrb[0].mxu0 %v1394
      %v3210 = vpop.f32.mrb[0].mxu0
      %v3211 = vadd.f32 %v3171, %v3210
      %v3212 = vpop.f32.mrb[0].mxu0
      %v3213 = vpop.f32.mrb[0].mxu0
      %v3214 = vadd.f32 %v3171, %v3213
      %v3215 = vpop.f32.mrb[0].mxu0
      %3216 = vdwg.mxu0
      %v3217 = vmul.f32 %v3163, 0.70710677
      %v3218 = vmul.f32 %v3164, 0.70710677
      %v3219 = vand.u32 2147483647, %v3217
      %v3220 = vand.u32 2147483647, %v3218
      %v3221 = vmul.f32 %v3219, 0.3275911
      %v3222 = vmul.f32 %v3220, 0.3275911
      %v3223 = vadd.f32 %v3221, 1.0
      %v3224 = vadd.f32 %v3222, 1.0
      %v3225 = vrcp.pop %v3223
      %v3226 = vrcp.pop %v3224
      %v3227 = vmul.f32 %v3225, 1.0614054
      %v3228 = vmul.f32 %v3226, 1.0614054
      %v3229 = vsub.f32 %v3227, 1.4531521
      %v3230 = vsub.f32 %v3228, 1.4531521
      %v3231 = vmul.f32 %v3229, %v3225
      %v3232 = vmul.f32 %v3230, %v3226
      %v3233 = vadd.f32 %v3231, 1.4214138
      %v3234 = vadd.f32 %v3232, 1.4214138
      %v3235 = vmul.f32 %v3233, %v3225
      %v3236 = vmul.f32 %v3234, %v3226
      %v3237 = vsub.f32 %v3235, 0.28449672
      %v3238 = vsub.f32 %v3236, 0.28449672
      %v3239 = vmul.f32 %v3237, %v3225
      %v3240 = vmul.f32 %v3238, %v3226
      %v3241 = vadd.f32 %v3239, 0.2548296
      %v3242 = vadd.f32 %v3240, 0.2548296
      %v3243 = vmul.f32 %v3241, %v3225
      %v3244 = vmul.f32 %v3242, %v3226
      %v3245 = vsub.f32 0.0, %v3219
      %v3246 = vsub.f32 0.0, %v3220
      %v3247 = vmul.f32 %v3245, %v3219
      %v3248 = vmul.f32 %v3246, %v3220
      %v3249 = vmul.f32 %v3247, 1.442695
      %v3250 = vpow.pop %v3249
      %v3251 = vmul.f32 %v3248, 1.442695
      %v3252 = vpow.pop %v3251
      %v3253 = vmul.f32 %v3243, %v3250
      %v3254 = vmul.f32 %v3244, %v3252
      %v3255 = vsub.f32 1.0, %v3253
      %v3256 = vsub.f32 1.0, %v3254
      %vm3257 = vcmp.ge.f32.partialorder %v3217, 0.0
      %vm3258 = vcmp.ge.f32.partialorder %v3218, 0.0
      %v3259 = vsub.f32 0.0, %v3255
      %v3260 = vsub.f32 0.0, %v3256
      %v3261 = vsel %vm3257, %v3255, %v3259
      %v3262 = vsel %vm3258, %v3256, %v3260
      %v3263 = vmul.f32 %v3163, 0.5
      %v3264 = vmul.f32 %v3164, 0.5
      %v3265 = vadd.f32 %v3261, 1.0
      %v3266 = vadd.f32 %v3262, 1.0
      %v3267 = vmul.f32 %v3263, %v3265
      %v3268 = vmul.f32 %v3264, %v3266
      %v3269 = vpack.c.bf16 %v3268, %v3267
      %v3271 = vunpack.c.l.b16 %v3269
      %v3272 = vunpack.c.h.b16 %v3269
      %v3273 = vpack.c.b16 %v3271, %v3271
      %v3274 = vpack.c.b16 %v3272, %v3272
      %v3275 = vrot.slane %v3273, 7
      %v3276 = vrot.slane %v3275, 4
      %v3277 = vrot.slane %v3274, 7
      %v3278 = vsel %vm1159, %v3276, %v3277
      %v3279 = vrot.slane %v3277, 4
      %3283 = vst.msk [vmem:[#allocation2] sm:$0xe] %vm1506, %v3275
      %3284 = vst.msk [vmem:[#allocation2 + $0x4] sm:$0xf] %vm1508, %v3278
      %3285 = vst.msk [vmem:[#allocation2 + $0x8] sm:$0x1] %vm1092, %v3279
      %v3286 = vld [vmem:[#allocation2] sm:$0xf]
      %v3287 = vld [vmem:[#allocation2 + $0x4] sm:$0xf]
      %v3288 = vld [vmem:[#allocation2 + $0x8] sm:$0x1]
      %v3289 = vld [vmem:[#allocation2] sm:$0xe]
      %v3290 = vld [vmem:[#allocation2 + $0x8] sm:$0x3]
      %v3291 = vld [vmem:[#allocation2] sm:$0xc]
      %v3294 = vunpack.c.l.b16 %v3286
      %v3295 = vunpack.c.l.b16 %v3287
      %v3296 = vpack.c.b16 %v3295, %v3294
      %v3298 = vunpack.c.l.b16 %v3288
      %v3299 = vpack.c.b16 %v3298, %v3298
      %v3301 = vshrl.u32 %v3296, 16
      %v3303 = vshll.u32 %v3296, 16
      %v3305 = vrot.slane %v3303, 1
      %v3306 = vor.u32 %v3301, %v3305
      %v3308 = vshll.u32 %v3299, 16
      %v3310 = vrot.slane %v3308, 1
      %v3311 = vsel %vm1188, %v3306, %v3310
      %3312 = vrot.lane.b32.xlu0 %v3311, 16
      %v3313 = vpop.permute.xlu0 %3312
      %v3315 = vunpack.c.l.b16 %v3289
      %v3316 = vpack.c.b16 %v3295, %v3315
      %v3317 = vrot.slane %v3316, 1
      %v3318 = vrot.slane %v3299, 1
      %v3319 = vsel %vm1206, %v3317, %v3318
      %3320 = vrot.lane.b32.xlu0 %v3319, 32
      %v3321 = vpop.permute.xlu0 %3320
      %v3323 = vunpack.c.l.b16 %v3290
      %v3324 = vpack.c.b16 %v3323, %v3323
      %v3326 = vshrl.u32 %v3316, 16
      %v3328 = vrot.slane %v3326, 1
      %v3329 = vshll.u32 %v3316, 16
      %v3331 = vrot.slane %v3329, 2
      %v3332 = vor.u32 %v3328, %v3331
      %v3334 = vshrl.u32 %v3324, 16
      %v3336 = vrot.slane %v3334, 1
      %v3337 = vshll.u32 %v3324, 16
      %v3339 = vrot.slane %v3337, 2
      %v3340 = vor.u32 %v3336, %v3339
      %v3341 = vsel %vm1215, %v3332, %v3340
      %3342 = vrot.lane.b32.xlu0 %v3341, 48
      %v3343 = vpop.permute.xlu0 %3342
      %v3345 = vunpack.c.l.b16 %v3291
      %v3346 = vpack.c.b16 %v3295, %v3345
      %v3347 = vrot.slane %v3346, 2
      %v3348 = vrot.slane %v3324, 2
      %v3349 = vsel %vm1238, %v3347, %v3348
      %3350 = vrot.lane.b32.xlu0 %v3349, 64
      %v3351 = vpop.permute.xlu0 %3350
      %v3353 = vsel %vm1246, %v3296, %v3313
      %v3355 = vsel %vm1252, %v3353, %v3321
      %v3357 = vsel %vm1581, %v3355, %v3343
      %v3359 = vsel %vm1584, %v3357, %v3351
      %v3360 = vld [vmem:[%s63] sm:$0xf]
      %v3361 = vld [vmem:[%s63 + $0x4] sm:$0xf]
      %v3362 = vld [vmem:[%s63 + $0x8] sm:$0xf]
      %v3363 = vld [vmem:[%s63 + $0xc] sm:$0xf]
      %v3364 = vld [vmem:[%s63 + $0x10] sm:$0xf]
      %v3365 = vld [vmem:[%s63 + $0x14] sm:$0xf]
      %v3366 = vld [vmem:[%s63 + $0x18] sm:$0xf]
      %v3367 = vld [vmem:[%s63 + $0x1c] sm:$0xf]
      %v3368 = vld [vmem:[%s63 + $0x20] sm:$0xf]
      %v3369 = vld [vmem:[%s63 + $0x24] sm:$0xf]
      %v3370 = vmul.f32 %v3211, 0.70710677
      %v3371 = vmul.f32 %v3214, 0.70710677
      %v3372 = vand.u32 2147483647, %v3370
      %v3373 = vand.u32 2147483647, %v3371
      %v3374 = vmul.f32 %v3372, 0.3275911
      %v3375 = vmul.f32 %v3373, 0.3275911
      %v3376 = vadd.f32 %v3374, 1.0
      %v3377 = vadd.f32 %v3375, 1.0
      %v3378 = vrcp.pop %v3376
      %v3379 = vrcp.pop %v3377
      %v3380 = vmul.f32 %v3378, 1.0614054
      %v3381 = vmul.f32 %v3379, 1.0614054
      %v3382 = vsub.f32 %v3380, 1.4531521
      %v3383 = vsub.f32 %v3381, 1.4531521
      %v3384 = vmul.f32 %v3382, %v3378
      %v3385 = vmul.f32 %v3383, %v3379
      %v3386 = vadd.f32 %v3384, 1.4214138
      %v3387 = vadd.f32 %v3385, 1.4214138
      %v3388 = vmul.f32 %v3386, %v3378
      %v3389 = vmul.f32 %v3387, %v3379
      %v3390 = vsub.f32 %v3388, 0.28449672
      %v3391 = vsub.f32 %v3389, 0.28449672
      %v3392 = vmul.f32 %v3390, %v3378
      %v3393 = vmul.f32 %v3391, %v3379
      %v3394 = vadd.f32 %v3392, 0.2548296
      %v3395 = vadd.f32 %v3393, 0.2548296
      %v3396 = vmul.f32 %v3394, %v3378
      %v3397 = vmul.f32 %v3395, %v3379
      %v3398 = vsub.f32 0.0, %v3372
      %v3399 = vsub.f32 0.0, %v3373
      %v3400 = vmul.f32 %v3398, %v3372
      %v3401 = vmul.f32 %v3399, %v3373
      %v3402 = vmul.f32 %v3400, 1.442695
      %v3403 = vpow.pop %v3402
      %v3404 = vmul.f32 %v3401, 1.442695
      %v3405 = vpow.pop %v3404
      %v3406 = vmul.f32 %v3396, %v3403
      %v3407 = vmul.f32 %v3397, %v3405
      %v3408 = vsub.f32 1.0, %v3406
      %v3409 = vsub.f32 1.0, %v3407
      %vm3410 = vcmp.ge.f32.partialorder %v3370, 0.0
      %vm3411 = vcmp.ge.f32.partialorder %v3371, 0.0
      %v3412 = vsub.f32 0.0, %v3408
      %v3413 = vsub.f32 0.0, %v3409
      %v3414 = vsel %vm3410, %v3408, %v3412
      %v3415 = vsel %vm3411, %v3409, %v3413
      %v3416 = vmul.f32 %v3211, 0.5
      %v3417 = vmul.f32 %v3214, 0.5
      %v3418 = vadd.f32 %v3414, 1.0
      %v3419 = vadd.f32 %v3415, 1.0
      %v3420 = vmul.f32 %v3416, %v3418
      %v3421 = vmul.f32 %v3417, %v3419
      %v3422 = vpack.c.bf16 %v3421, %v3420
      %v3424 = vunpack.c.l.b16 %v3422
      %v3425 = vunpack.c.h.b16 %v3422
      %v3426 = vpack.c.b16 %v3424, %v3424
      %v3427 = vpack.c.b16 %v3425, %v3425
      %v3428 = vrot.slane %v3426, 7
      %v3429 = vrot.slane %v3428, 4
      %v3430 = vrot.slane %v3427, 7
      %v3431 = vsel %vm1159, %v3429, %v3430
      %v3432 = vrot.slane %v3430, 4
      %3436 = vst.msk [vmem:[#allocation2] sm:$0xe] %vm1506, %v3428
      %3437 = vst.msk [vmem:[#allocation2 + $0x4] sm:$0xf] %vm1508, %v3431
      %3438 = vst.msk [vmem:[#allocation2 + $0x8] sm:$0x1] %vm1092, %v3432
      %v3439 = vld [vmem:[#allocation2] sm:$0xf]
      %v3440 = vld [vmem:[#allocation2 + $0x4] sm:$0xf]
      %v3441 = vld [vmem:[#allocation2 + $0x8] sm:$0x1]
      %v3442 = vld [vmem:[#allocation2] sm:$0xe]
      %v3443 = vld [vmem:[#allocation2 + $0x8] sm:$0x3]
      %v3444 = vld [vmem:[#allocation2] sm:$0xc]
      %v3447 = vunpack.c.l.b16 %v3439
      %v3448 = vunpack.c.l.b16 %v3440
      %v3449 = vpack.c.b16 %v3448, %v3447
      %v3451 = vunpack.c.l.b16 %v3441
      %v3452 = vpack.c.b16 %v3451, %v3451
      %v3454 = vshrl.u32 %v3449, 16
      %v3456 = vshll.u32 %v3449, 16
      %v3458 = vrot.slane %v3456, 1
      %v3459 = vor.u32 %v3454, %v3458
      %v3461 = vshll.u32 %v3452, 16
      %v3463 = vrot.slane %v3461, 1
      %v3464 = vsel %vm1188, %v3459, %v3463
      %3465 = vrot.lane.b32.xlu0 %v3464, 16
      %v3466 = vpop.permute.xlu0 %3465
      %v3468 = vunpack.c.l.b16 %v3442
      %v3469 = vpack.c.b16 %v3448, %v3468
      %v3470 = vrot.slane %v3469, 1
      %v3471 = vrot.slane %v3452, 1
      %v3472 = vsel %vm1206, %v3470, %v3471
      %3473 = vrot.lane.b32.xlu0 %v3472, 32
      %v3474 = vpop.permute.xlu0 %3473
      %v3476 = vunpack.c.l.b16 %v3443
      %v3477 = vpack.c.b16 %v3476, %v3476
      %v3479 = vshrl.u32 %v3469, 16
      %v3481 = vrot.slane %v3479, 1
      %v3482 = vshll.u32 %v3469, 16
      %v3484 = vrot.slane %v3482, 2
      %v3485 = vor.u32 %v3481, %v3484
      %v3487 = vshrl.u32 %v3477, 16
      %v3489 = vrot.slane %v3487, 1
      %v3490 = vshll.u32 %v3477, 16
      %v3492 = vrot.slane %v3490, 2
      %v3493 = vor.u32 %v3489, %v3492
      %v3494 = vsel %vm1215, %v3485, %v3493
      %3495 = vrot.lane.b32.xlu0 %v3494, 48
      %v3496 = vpop.permute.xlu0 %3495
      %v3498 = vunpack.c.l.b16 %v3444
      %v3499 = vpack.c.b16 %v3448, %v3498
      %v3500 = vrot.slane %v3499, 2
      %v3501 = vrot.slane %v3477, 2
      %v3502 = vsel %vm1238, %v3500, %v3501
      %3503 = vrot.lane.b32.xlu0 %v3502, 64
      %v3504 = vpop.permute.xlu0 %3503
      %v3506 = vsel %vm1246, %v3449, %v3466
      %v3508 = vsel %vm1252, %v3506, %v3474
      %v3510 = vsel %vm1581, %v3508, %v3496
      %v3512 = vsel %vm1584, %v3510, %v3504
      %v3513 = vld [vmem:[%s65] sm:$0xf]
      %v3514 = vld [vmem:[%s65 + $0x4] sm:$0xf]
      %v3515 = vld [vmem:[%s65 + $0x8] sm:$0xf]
      %v3516 = vld [vmem:[%s65 + $0xc] sm:$0xf]
      %v3517 = vld [vmem:[%s65 + $0x10] sm:$0xf]
      %v3518 = vld [vmem:[%s65 + $0x14] sm:$0xf]
      %v3519 = vld [vmem:[%s65 + $0x18] sm:$0xf]
      %v3520 = vld [vmem:[%s65 + $0x1c] sm:$0xf]
      %v3521 = vld [vmem:[%s65 + $0x20] sm:$0xf]
      %v3522 = vld [vmem:[%s65 + $0x24] sm:$0xf]
      %v3533 = vunpack.c.l.b16 %v3513
      %v3534 = vunpack.c.l.b16 %v3514
      %v3535 = vunpack.c.l.b16 %v3515
      %v3536 = vunpack.c.l.b16 %v3516
      %v3537 = vunpack.c.l.b16 %v3517
      %v3538 = vunpack.c.l.b16 %v3518
      %v3539 = vunpack.c.l.b16 %v3519
      %v3540 = vunpack.c.l.b16 %v3520
      %v3541 = vunpack.c.l.b16 %v3521
      %v3542 = vunpack.c.l.b16 %v3522
      %v3543 = vpack.c.b16 %v3534, %v3533
      %v3544 = vpack.c.b16 %v3536, %v3535
      %v3545 = vpack.c.b16 %v3538, %v3537
      %v3546 = vpack.c.b16 %v3540, %v3539
      %v3547 = vpack.c.b16 %v3542, %v3541
      %v3553 = vsel %vm1780, %v3512, 0
      %3555 = vmatprep.subr.bf16.mxu0 0
      %3556 = vmatpush1.bf16.msra.mxu0 %v3543
      %3557 = vmatprep.subr.bf16.mxu0 0
      %3558 = vmatpush1.bf16.msra.mxu0 %v3544
      %3559 = vmatprep.subr.bf16.mxu0 0
      %3560 = vmatpush1.bf16.msra.mxu0 %v3545
      %3561 = vmatprep.subr.bf16.mxu0 0
      %3562 = vmatpush1.bf16.msra.mxu0 %v3546
      %3563 = vmatprep.subr.bf16.mxu0 0
      %3564 = vmatpush1.bf16.msra.mxu0 %v3547
      %3565 = vmatprep.subr.bf16.mxu0 0
      %3566 = vmatpush1.bf16.msra.mxu0 0
      %3567 = vmatprep.subr.bf16.mxu0 0
      %3568 = vmatpush1.bf16.msra.mxu0 0
      %3569 = vmatprep.subr.bf16.mxu0 0
      %3570 = vmatpush1.bf16.msra.mxu0 0
      %3571 = vmatprep.subr.bf16.mxu0 0
      %3572 = vmatpush1.bf16.msra.mxu0 0
      %3573 = vmatprep.subr.bf16.mxu0 0
      %3574 = vmatpush1.bf16.msra.mxu0 0
      %3575 = vmatprep.subr.bf16.mxu0 0
      %3576 = vmatpush1.bf16.msra.mxu0 0
      %3577 = vmatprep.subr.bf16.mxu0 0
      %3578 = vmatpush1.bf16.msra.mxu0 0
      %3579 = vmatprep.subr.bf16.mxu0 0
      %3580 = vmatpush1.bf16.msra.mxu0 0
      %3581 = vmatprep.subr.bf16.mxu0 0
      %3582 = vmatpush1.bf16.msra.mxu0 0
      %3583 = vmatprep.subr.bf16.mxu0 0
      %3584 = vmatpush1.bf16.msra.mxu0 0
      %3585 = vmatprep.subr.bf16.mxu0 0
      %3586 = vmatpush1.bf16.msra.mxu0 0
      %3587 = vmatprep.mubr.bf16.mxu0 0
      %3588 = vmatmul.mubr.bf16.gmra.mrb[0].mxu0 %v3553
      %v3589 = vpop.f32.mrb[0].mxu0
      %v3590 = vadd.f32 0.0, %v3589
      %v3591 = vpop.f32.mrb[0].mxu0
      %v3592 = vpop.f32.mrb[0].mxu0
      %v3593 = vadd.f32 0.0, %v3592
      %v3594 = vpop.f32.mrb[0].mxu0
      %3595 = vdwg.mxu0
      %v3606 = vunpack.c.l.b16 %v3360
      %v3607 = vunpack.c.l.b16 %v3361
      %v3608 = vunpack.c.l.b16 %v3362
      %v3609 = vunpack.c.l.b16 %v3363
      %v3610 = vunpack.c.l.b16 %v3364
      %v3611 = vunpack.c.l.b16 %v3365
      %v3612 = vunpack.c.l.b16 %v3366
      %v3613 = vunpack.c.l.b16 %v3367
      %v3614 = vunpack.c.l.b16 %v3368
      %v3615 = vunpack.c.l.b16 %v3369
      %v3616 = vpack.c.b16 %v3607, %v3606
      %v3617 = vpack.c.b16 %v3609, %v3608
      %v3618 = vpack.c.b16 %v3611, %v3610
      %v3619 = vpack.c.b16 %v3613, %v3612
      %v3620 = vpack.c.b16 %v3615, %v3614
      %v3626 = vsel %vm1780, %v3359, 0
      %3628 = vmatprep.subr.bf16.mxu0 0
      %3629 = vmatpush1.bf16.msra.mxu0 %v3616
      %3630 = vmatprep.subr.bf16.mxu0 0
      %3631 = vmatpush1.bf16.msra.mxu0 %v3617
      %3632 = vmatprep.subr.bf16.mxu0 0
      %3633 = vmatpush1.bf16.msra.mxu0 %v3618
      %3634 = vmatprep.subr.bf16.mxu0 0
      %3635 = vmatpush1.bf16.msra.mxu0 %v3619
      %3636 = vmatprep.subr.bf16.mxu0 0
      %3637 = vmatpush1.bf16.msra.mxu0 %v3620
      %3638 = vmatprep.subr.bf16.mxu0 0
      %3639 = vmatpush1.bf16.msra.mxu0 0
      %3640 = vmatprep.subr.bf16.mxu0 0
      %3641 = vmatpush1.bf16.msra.mxu0 0
      %3642 = vmatprep.subr.bf16.mxu0 0
      %3643 = vmatpush1.bf16.msra.mxu0 0
      %3644 = vmatprep.subr.bf16.mxu0 0
      %3645 = vmatpush1.bf16.msra.mxu0 0
      %3646 = vmatprep.subr.bf16.mxu0 0
      %3647 = vmatpush1.bf16.msra.mxu0 0
      %3648 = vmatprep.subr.bf16.mxu0 0
      %3649 = vmatpush1.bf16.msra.mxu0 0
      %3650 = vmatprep.subr.bf16.mxu0 0
      %3651 = vmatpush1.bf16.msra.mxu0 0
      %3652 = vmatprep.subr.bf16.mxu0 0
      %3653 = vmatpush1.bf16.msra.mxu0 0
      %3654 = vmatprep.subr.bf16.mxu0 0
      %3655 = vmatpush1.bf16.msra.mxu0 0
      %3656 = vmatprep.subr.bf16.mxu0 0
      %3657 = vmatpush1.bf16.msra.mxu0 0
      %3658 = vmatprep.subr.bf16.mxu0 0
      %3659 = vmatpush1.bf16.msra.mxu0 0
      %3660 = vmatprep.mubr.bf16.mxu0 0
      %3661 = vmatmul.mubr.bf16.gmra.mrb[0].mxu0 %v3626
      %v3662 = vpop.f32.mrb[0].mxu0
      %v3663 = vadd.f32 %v3590, %v3662
      %v3664 = vpop.f32.mrb[0].mxu0
      %v3665 = vpop.f32.mrb[0].mxu0
      %v3666 = vadd.f32 %v3593, %v3665
      %v3667 = vpop.f32.mrb[0].mxu0
      %3668 = vdwg.mxu0
      %v3669 = vld [vmem:[%s67] sm:$0x1]
      %v3671 = vlaneseq
      %v3672 = vshrl.u32 %v3671, 7
      %v3673 = vsub.s32 0, %v3672
      %v3674 = vrot.slane %v3669, %v3673
      %v3676 = vadd.f32 %v3663, %v3674
      %v3677 = vadd.f32 %v3666, %v3674
      %v3678 = vadd.f32 %v3676, %v2923
      %v3679 = vadd.f32 %v3677, %v2926
      %3680 = vst.msk [vmem:[%s1090] sm:$0xff] %vm1103, %v3678
      %3681 = vst.msk [vmem:[%s1090 + $0x8] sm:$0xff] %vm1103, %v3679
      %p3682 = scmp.lt.s32.totalorder %s82, 1
      %s3683 = scalar_select %p3682, %s82, 1
      %s3684 = smul.addr %s3683, 2
      %s3685 = smul.addr %s3684, 8
      %s3686 = scalar_lea.vmem %s71, %s3685
      // Predicated region
      $region161: #{up_block_forward.1} parent=159 // pred_check
        %p3687 = pneg %p845
      $region162: #{up_block_forward.1} parent=159 // pred_check_branch
        %3689 = sbr.rel (%p3687) target = $region164
      $region163: #{up_block_forward.1} parent=159 // pred_region
        _
      $region164: #{up_block_forward.1} parent=159 // pred_fallthru
        _
    $region160: #{up_block_forward.1} parent=5 // pred_fallthru
      _
    %p3690 = scmp.le.s32.totalorder 2, %s77
    // Predicated region
    $region165: #{up_block_forward.1} parent=5 // pred_check
      %p3691 = pneg %p3690
    $region166: #{up_block_forward.1} parent=5 // pred_check_branch
      %3693 = sbr.rel (%p3691) target = $region168
    $region167: #{up_block_forward.1} parent=5 // pred_region
      %s3694 = ssub.s32 %s77, 2
      // Predicated region
      $region169: #{up_block_forward.1} parent=167 // pred_check
        %p3695 = pneg %p851
      $region170: #{up_block_forward.1} parent=167 // pred_check_branch
        %3697 = sbr.rel (%p3695) target = $region172
      $region171: #{up_block_forward.1} parent=167 // pred_region
        %p3698 = scmp.lt.s32.totalorder %s83, 1
        %s3699 = scalar_select %p3698, %s83, 1
        %s3700 = smul.addr %s3699, 2
        %s3701 = smul.addr %s3700, 8
        %s3702 = scalar_lea.vmem %s71, %s3701
      $region172: #{up_block_forward.1} parent=167 // pred_fallthru
        _
    $region168: #{up_block_forward.1} parent=5 // pred_fallthru
      _
  $region6: #{up_block_forward.1} parent=0 // loop_footer
    %s81 = sadd.s32 1, %s77
  $region7: #{up_block_forward.1} parent=0 // loop_footer_branch
    %76 = sbr.rel target = $region3
  $region8: #{up_block_forward.1} parent=0 // loop_exit
    _

</llo_original>
